<compile_context>
chip_gen: v7x
topology: tpu7x:2x2x1
jax: 0.10.0
libtpu: 0.0.40
codegen_flags: <defaults>
</compile_context>

<pallas_src>
import jax
import jax.numpy as jnp
from jax import lax
from jax.experimental import pallas as pl
from jax.experimental.pallas import tpu as pltpu

# bf16 MXU inputs would halve the dominant HBM stream on v5e/v6e (review item);
# the default stays f32 so the numerical self-checks below stay tight.
_COMPUTE_DTYPE = jnp.float32
_CONV_IN_TILE_BYTES = 2 << 20      # per-step conv input-tile budget
_APPLY_TILE_BYTES = 4 << 20        # per-step BN-apply tile budget
_VMEM_LIMIT_BYTES = 48 << 20       # < v7x 64 MiB physical, > v5e 16 MiB default
_BN_EPS = 1e-5


# --------------------------- Pallas kernel bodies --------------------------- #

def _make_conv_kernel(TH, W, Wp, Cin, Cout, cdtype, with_stats):
    """3x3/pad=1 conv over a flattened (rows, Cin) tile via 9 tap matmuls."""
    TW = TH * Wp   # output rows per tile (includes 2 don't-care cols per row)

    def _cast(v):
        return v if v.dtype == cdtype else v.astype(cdtype)

    def _accumulate(x_ref, w_ref, z_ref):
        i = 0
        for kh in range(3):
            for kw in range(3):
                lhs = _cast(x_ref[pl.ds(kh * Wp + kw, TW), :])       # (TW, Cin)
                contrib = jnp.dot(lhs, _cast(w_ref[kh, kw]),
                                  preferred_element_type=jnp.float32)
                if i == 0:
                    z_ref[...] = contrib
                else:
                    z_ref[...] = z_ref[...] + contrib
                i += 1

    if with_stats:
        def kernel(x_ref, w_ref, z_ref, stats_ref):
            _accumulate(x_ref, w_ref, z_ref)
            z = z_ref[...]
            col = lax.broadcasted_iota(jnp.int32, (TW, 1), 0) % Wp
            valid = (col < W).astype(jnp.float32)        # mask don't-care cols
            zv = z * valid
            part = jnp.concatenate(
                [jnp.sum(zv, axis=0, keepdims=True),
                 jnp.sum(zv * z, axis=0, keepdims=True)], axis=0)    # (2, Cout)
            t = pl.program_id(1)

            @pl.when(t == 0)
            def _init():
                stats_ref[...] = part

            @pl.when(t > 0)
            def _acc():
                stats_ref[...] = stats_ref[...] + part

        return kernel

    def kernel(x_ref, w_ref, b_ref, z_ref):
        _accumulate(x_ref, w_ref, z_ref)
        z_ref[...] = z_ref[...] + b_ref[...]

    return kernel


def _bn_relu_kernel(z_ref, s_ref, b_ref, o_ref):
    o_ref[...] = jnp.maximum(z_ref[...] * s_ref[...] + b_ref[...], 0.0)


# ------------------------------ tile selection ------------------------------ #

def _conv_row_tile(H, Wp, Cin, itemsize):
    row_bytes = Wp * Cin * itemsize
    if (H + 2) * row_bytes + 2 * Cin * itemsize <= _CONV_IN_TILE_BYTES:
        return H
    for th in range(H - 1, 0, -1):
        if H % th == 0 and (th * Wp) % 8 == 0 and (th + 2) * row_bytes <= _CONV_IN_TILE_BYTES:
            return th
    return H


def _apply_row_tile(R, C):
    if R * C * 4 <= _APPLY_TILE_BYTES:
        return R
    for tr in range(R - 1, 0, -1):
        if R % tr == 0 and tr % 8 == 0 and tr * C * 4 <= _APPLY_TILE_BYTES:
            return tr
    return R


# ----------------------------- pallas_call wrappers ------------------------- #

def _conv3x3_pallas(a, W, w_oihw, bias=None):
    """3x3 / pad=1 convolution as in-kernel tap-accumulated matmuls.

    a      : (N, H, >=W, Cin) activation; only columns [0, W) are read.
    w_oihw : (Cout, Cin, 3, 3) PyTorch-layout weight.
    Returns z_wide (N, H, W+2, Cout) f32 (last 2 columns are don't-care) and,
    when bias is None, per-image (sum, sum_sq) BN partials of shape (N, 2, Cout).
    """
    N, H = a.shape[0], a.shape[1]
    Cin = a.shape[3]
    Cout = w_oihw.shape[0]
    Wp = W + 2
    w_hwio = jnp.transpose(w_oihw, (2, 3, 1, 0))           # (3, 3, Cin, Cout)

    # zero-pad the valid region (pad=1), flatten (row, col), add 2 guard rows so
    # every tap is a contiguous 2-D slice of the flattened tile.
    xp = jnp.pad(a[:, :, :W, :], ((0, 0), (1, 1), (1, 1), (0, 0)))
    xpf = jnp.pad(xp.reshape(N, (H + 2) * Wp, Cin), ((0, 0), (0, 2), (0, 0)))

    TH = _conv_row_tile(H, Wp, Cin, a.dtype.itemsize)
    T = H // TH
    L = (TH + 2) * Wp + 2
    if T == 1:
        xwin = xpf.reshape(N, 1, L, Cin)
    else:
        # Overlapping row windows: (TH+2)/TH read amplification (tiny), keeps
        # BlockSpec auto double-buffering for arbitrarily large images.
        xwin = jnp.stack(
            [lax.slice_in_dim(xpf, t * TH * Wp, t * TH * Wp + L, axis=1)
             for t in range(T)], axis=1)

    x_spec = pl.BlockSpec((None, None, L, Cin), lambda n, t: (n, t, 0, 0))
    w_spec = pl.BlockSpec((3, 3, Cin, Cout), lambda n, t: (0, 0, 0, 0))
    z_spec = pl.BlockSpec((None, TH * Wp, Cout), lambda n, t: (n, t, 0))
    z_shape = jax.ShapeDtypeStruct((N, H * Wp, Cout), jnp.float32)
    cparams = pltpu.CompilerParams(
        dimension_semantics=("parallel", "arbitrary"),
        vmem_limit_bytes=_VMEM_LIMIT_BYTES)

    if bias is None:
        kernel = _make_conv_kernel(TH, W, Wp, Cin, Cout, _COMPUTE_DTYPE, True)
        z, stats = pl.pallas_call(
            kernel,
            grid=(N, T),
            in_specs=[x_spec, w_spec],
            out_specs=(z_spec,
                       pl.BlockSpec((None, 2, Cout), lambda n, t: (n, 0, 0))),
            out_shape=(z_shape,
                       jax.ShapeDtypeStruct((N, 2, Cout), jnp.float32)),
            compiler_params=cparams,
        )(xwin, w_hwio)
        return z.reshape(N, H, Wp, Cout), stats

    kernel = _make_conv_kernel(TH, W, Wp, Cin, Cout, _COMPUTE_DTYPE, False)
    z = pl.pallas_call(
        kernel,
        grid=(N, T),
        in_specs=[x_spec, w_spec, pl.BlockSpec((1, Cout), lambda n, t: (0, 0))],
        out_specs=z_spec,
        out_shape=z_shape,
        compiler_params=cparams,
    )(xwin, w_hwio, bias.reshape(1, Cout))
    return z.reshape(N, H, Wp, Cout)


def _bn_relu_pallas(z_wide, scale, shift):
    N, H, Wp, C = z_wide.shape
    R = H * Wp
    TR = _apply_row_tile(R, C)
    T = R // TR
    out = pl.pallas_call(
        _bn_relu_kernel,
        grid=(N, T),
        in_specs=[pl.BlockSpec((None, TR, C), lambda n, t: (n, t, 0)),
                  pl.BlockSpec((1, C), lambda n, t: (0, 0)),
                  pl.BlockSpec((1, C), lambda n, t: (0, 0))],
        out_specs=pl.BlockSpec((None, TR, C), lambda n, t: (n, t, 0)),
        out_shape=jax.ShapeDtypeStruct((N, R, C), jnp.float32),
        compiler_params=pltpu.CompilerParams(
            dimension_semantics=("parallel", "parallel"),
            vmem_limit_bytes=_VMEM_LIMIT_BYTES),
    )(z_wide.reshape(N, R, C), scale.reshape(1, C), shift.reshape(1, C))
    return out.reshape(N, H, Wp, C)


# Fused layer ops on activation records (array, valid_width).
def _pallas_conv_bn_relu(act, w_oihw, gamma, beta):
    a, W = act
    N, H = a.shape[0], a.shape[1]
    z_wide, stats = _conv3x3_pallas(a, W, w_oihw, bias=None)
    cnt = float(N * H * W)
    mean = jnp.sum(stats[:, 0, :], axis=0) / cnt
    var = jnp.maximum(jnp.sum(stats[:, 1, :], axis=0) / cnt - mean * mean, 0.0)
    scale = gamma * lax.rsqrt(var + _BN_EPS)          # biased var: training BN
    shift = beta - mean * scale
    return _bn_relu_pallas(z_wide, scale, shift), W


def _pallas_conv_bias(act, w_oihw, bias):
    a, W = act
    return _conv3x3_pallas(a, W, w_oihw, bias=bias), W


# --------------------------- plain-JAX glue (pool) -------------------------- #
# TODO(synk): pooling/unpooling (pure data movement) stays in plain JAX; it
# could be folded into the BN-apply / next-conv kernels to save one HBM pass.

def _maxpool2x2(act):
    # F.max_pool2d(2, 2, return_indices=True): the one-hot of the (first) argmax
    # inside each 2x2 window plays the role of the returned indices.
    a, W = act
    a = a[:, :, :W, :]
    N, H, _, C = a.shape
    win = a.reshape(N, H // 2, 2, W // 2, 2, C)
    win = win.transpose(0, 1, 3, 2, 4, 5).reshape(N, H // 2, W // 2, 4, C)
    pooled = jnp.max(win, axis=3)
    mask = jax.nn.one_hot(jnp.argmax(win, axis=3), 4, axis=3, dtype=a.dtype)
    return (pooled, W // 2), mask


def _maxunpool2x2(act, mask):
    # F.max_unpool2d(2, 2): scatter values back to the recorded argmax slots.
    a, W = act
    a = a[:, :, :W, :]
    N, h, _, C = a.shape
    scat = a[:, :, :, None, :] * mask
    scat = scat.reshape(N, h, W, 2, 2, C).transpose(0, 1, 3, 2, 4, 5)
    return (scat.reshape(N, 2 * h, 2 * W, C), 2 * W)


# ----------------------- plain-JAX reference conv ops ----------------------- #

def _ref_conv3x3(a, w_oihw):
    w = jnp.transpose(w_oihw, (2, 3, 1, 0))
    return lax.conv_general_dilated(
        a, w, (1, 1), ((1, 1), (1, 1)),
        dimension_numbers=("NHWC", "HWIO", "NHWC"),
        precision=lax.Precision.HIGHEST)


def _ref_conv_bn_relu(act, w_oihw, gamma, beta):
    a, W = act
    z = _ref_conv3x3(a[:, :, :W, :], w_oihw)
    mean = jnp.mean(z, axis=(0, 1, 2), keepdims=True)
    var = jnp.mean(jnp.square(z - mean), axis=(0, 1, 2), keepdims=True)
    y = (z - mean) * lax.rsqrt(var + _BN_EPS) * gamma + beta
    return jnp.maximum(y, 0.0), W


def _ref_conv_bias(act, w_oihw, bias):
    a, W = act
    return _ref_conv3x3(a[:, :, :W, :], w_oihw) + bias, W


# ------------------------------ SegNet skeleton ------------------------------ #

_ENC_STAGES = [["conv11", "conv12"],
               ["conv21", "conv22"],
               ["conv31", "conv32", "conv33"],
               ["conv41", "conv42", "conv43"],
               ["conv51", "conv52", "conv53"]]
_DEC_STAGES = [["conv53d", "conv52d", "conv51d"],
               ["conv43d", "conv42d", "conv41d"],
               ["conv33d", "conv32d", "conv31d"],
               ["conv22d", "conv21d"],
               ["conv12d"]]


def segnet_forward(x_nchw, params, conv_bn_relu, conv_bias):
    """SegNet forward (training-mode BatchNorm). NCHW in / NCHW out."""
    act = (jnp.transpose(x_nchw, (0, 2, 3, 1)), x_nchw.shape[3])
    masks = []
    for stage in _ENC_STAGES:
        for name in stage:
            p = params[name]
            act = conv_bn_relu(act, p["w"], p["gamma"], p["beta"])
        act, m = _maxpool2x2(act)
        masks.append(m)
    for i, stage in enumerate(_DEC_STAGES):
        act = _maxunpool2x2(act, masks[-1 - i])
        for name in stage:
            p = params[name]
            act = conv_bn_relu(act, p["w"], p["gamma"], p["beta"])
    act = conv_bias(act, params["conv11d"]["w"], params["conv11d"]["bias"])
    a, W = act
    return jnp.transpose(a[:, :, :W, :], (0, 3, 1, 2))


def _layer_channels(input_nbr):
    return [("conv11", input_nbr, 64), ("conv12", 64, 64),
            ("conv21", 64, 128), ("conv22", 128, 128),
            ("conv31", 128, 256), ("conv32", 256, 256), ("conv33", 256, 256),
            ("conv41", 256, 512), ("conv42", 512, 512), ("conv43", 512, 512),
            ("conv51", 512, 512), ("conv52", 512, 512), ("conv53", 512, 512),
            ("conv53d", 512, 512), ("conv52d", 512, 512), ("conv51d", 512, 512),
            ("conv43d", 512, 512), ("conv42d", 512, 512), ("conv41d", 512, 256),
            ("conv33d", 256, 256), ("conv32d", 256, 256), ("conv31d", 256, 128),
            ("conv22d", 128, 128), ("conv21d", 128, 64),
            ("conv12d", 64, 64)]


def init_params(key, input_nbr, label_nbr):
    layers = _layer_channels(input_nbr)
    keys = jax.random.split(key, 3 * len(layers) + 2)
    params = {}
    k = 0
    for name, cin, cout in layers:
        std = (2.0 / (9.0 * cin)) ** 0.5
        # Conv biases in front of training-mode BN cancel exactly against the
        # batch mean, so they are omitted (perf-review item).
        params[name] = {
            "w": std * jax.random.normal(keys[k], (cout, cin, 3, 3), jnp.float32),
            "gamma": 1.0 + 0.1 * jax.random.normal(keys[k + 1], (cout,), jnp.float32),
            "beta": 0.1 * jax.random.normal(keys[k + 2], (cout,), jnp.float32),
        }
        k += 3
    std = (2.0 / (9.0 * 64.0)) ** 0.5
    params["conv11d"] = {
        "w": std * jax.random.normal(keys[k], (label_nbr, 64, 3, 3), jnp.float32),
        "bias": 0.1 * jax.random.normal(keys[k + 1], (label_nbr,), jnp.float32),
    }
    return params


# ----------------------------------- main ------------------------------------ #

def _unit_checks(key):
    # Tight checks of the Pallas building blocks against lax.conv references
    # (deterministic -- no pooling-argmax routing involved).
    kx, kw, kg, kb, kw2, kb2 = jax.random.split(key, 6)
    N, H, W, Cin, Cout = 2, 16, 16, 64, 128
    a = jax.random.normal(kx, (N, H, W, Cin), jnp.float32)
    w = 0.05 * jax.random.normal(kw, (Cout, Cin, 3, 3), jnp.float32)
    g = 1.0 + 0.1 * jax.random.normal(kg, (Cout,), jnp.float32)
    b = 0.1 * jax.random.normal(kb, (Cout,), jnp.float32)
    act = (a, W)

    got = _pallas_conv_bn_relu(act, w, g, b)[0][:, :, :W, :]
    want = _ref_conv_bn_relu(act, w, g, b)[0]
    assert got.shape == want.shape, (got.shape, want.shape)
    assert jnp.allclose(got, want, atol=2e-2, rtol=2e-2), \
        float(jnp.max(jnp.abs(got - want)))

    w2 = 0.05 * jax.random.normal(kw2, (4, Cin, 3, 3), jnp.float32)
    b2 = 0.1 * jax.random.normal(kb2, (4,), jnp.float32)
    got2 = _pallas_conv_bias(act, w2, b2)[0][:, :, :W, :]
    want2 = _ref_conv_bias(act, w2, b2)[0]
    assert jnp.allclose(got2, want2, atol=2e-2, rtol=2e-2), \
        float(jnp.max(jnp.abs(got2 - want2)))


if __name__ == "__main__":
    key = jax.random.PRNGKey(0)
    k_param, k_x, k_unit = jax.random.split(key, 3)

    input_nbr, label_nbr = 3, 4
    N, H, W = 2, 32, 32          # 5 pooling stages -> spatial must be a multiple of 32
    params = init_params(k_param, input_nbr, label_nbr)
    x = jax.random.normal(k_x, (N, input_nbr, H, W), jnp.float32)

    _unit_checks(k_unit)

    seg_pallas = jax.jit(
        lambda xx, pp: segnet_forward(xx, pp, _pallas_conv_bn_relu, _pallas_conv_bias))
    out = jax.block_until_ready(seg_pallas(x, params))
    assert out.shape == (N, label_nbr, H, W), out.shape
    assert bool(jnp.all(jnp.isfinite(out)))

    # Full-network sanity vs. a plain-JAX reference.  Deliberately loose:
    # max-pool argmax routing is discontinuous, so sub-1e-5 numerical
    # differences between conv implementations can relocate a decoder value
    # inside a 2x2 window (same semantics, not strictly elementwise
    # comparable).  The tight per-kernel checks above are the real gate.
    seg_ref = jax.jit(
        lambda xx, pp: segnet_forward(xx, pp, _ref_conv_bn_relu, _ref_conv_bias))
    ref = jax.block_until_ready(seg_ref(x, params))
    diff = jnp.abs(out - ref)
    assert float(jnp.median(diff)) < 2e-2, float(jnp.median(diff))
    assert float(jnp.mean(diff)) < 0.5, float(jnp.mean(diff))

    print("KERNEL_OK")
</pallas_src>

<mosaic_0001>
module attributes {stable_mosaic.version = 11 : i64} {
  func.func @kernel(%arg0: i32, %arg1: i32, %arg2: memref<1x1x326x64xf32, #tpu.memory_space<vmem>>, %arg3: memref<3x3x64x128xf32, #tpu.memory_space<vmem>>, %arg4: memref<1x288x128xf32, #tpu.memory_space<vmem>>, %arg5: memref<1x2x128xf32, #tpu.memory_space<vmem>>) attributes {dimension_semantics = [#tpu.dimension_semantics<parallel>, #tpu.dimension_semantics<arbitrary>], iteration_bounds = array<i64: 2, 1>, scalar_prefetch = 0 : i64, scratch_operands = 0 : i64, tpu.core_type = #tpu.core_type<tc>, window_params = [{transform_indices = @transform_0, window_bounds = array<i64: 1, 1, 326, 64>}, {pipeline_mode = #tpu.pipeline_mode<synchronous>, transform_indices = @transform_1, window_bounds = array<i64: 3, 3, 64, 128>}, {transform_indices = @transform_2, window_bounds = array<i64: 1, 288, 128>}, {transform_indices = @transform_3, window_bounds = array<i64: 1, 2, 128>}]} {
    %c0 = arith.constant 0 : index
    %c0_0 = arith.constant 0 : index
    %c0_1 = arith.constant 0 : index
    %c0_2 = arith.constant 0 : index
    %0 = vector.load %arg2[%c0, %c0_0, %c0_1, %c0_2] : memref<1x1x326x64xf32, #tpu.memory_space<vmem>>, vector<1x1x288x64xf32>
    %1 = vector.shape_cast %0 : vector<1x1x288x64xf32> to vector<288x64xf32>
    %c0_3 = arith.constant 0 : index
    %c0_4 = arith.constant 0 : index
    %c0_5 = arith.constant 0 : index
    %c0_6 = arith.constant 0 : index
    %2 = vector.load %arg3[%c0_3, %c0_4, %c0_5, %c0_6] : memref<3x3x64x128xf32, #tpu.memory_space<vmem>>, vector<1x1x64x128xf32>
    %3 = vector.shape_cast %2 : vector<1x1x64x128xf32> to vector<64x128xf32>
    %cst = arith.constant dense<0.000000e+00> : vector<288x128xf32>
    %4 = tpu.matmul %1, %3, %cst {dimension_numbers = #tpu.dot_dimension_numbers<[1], [0], [0], [1], [0, 0, 1, 1], [], []>} : vector<288x64xf32>, vector<64x128xf32>, vector<288x128xf32> -> vector<288x128xf32>
    %c0_7 = arith.constant 0 : index
    %c0_8 = arith.constant 0 : index
    %c0_9 = arith.constant 0 : index
    %5 = vector.load %arg4[%c0_7, %c0_8, %c0_9] : memref<1x288x128xf32, #tpu.memory_space<vmem>>, vector<1x288x128xf32>
    %6 = vector.shape_cast %5 : vector<1x288x128xf32> to vector<288x128xf32>
    %7 = vector.shape_cast %4 : vector<288x128xf32> to vector<1x288x128xf32>
    tpu.vector_store %arg4[%c0_7, %c0_8, %c0_9], %7 {strides = array<i32>} : memref<1x288x128xf32, #tpu.memory_space<vmem>>, vector<1x288x128xf32>,
    %c0_10 = arith.constant 0 : index
    %c0_11 = arith.constant 0 : index
    %c1 = arith.constant 1 : index
    %c0_12 = arith.constant 0 : index
    %8 = vector.load %arg2[%c0_10, %c0_11, %c1, %c0_12] : memref<1x1x326x64xf32, #tpu.memory_space<vmem>>, vector<1x1x288x64xf32>
    %9 = vector.shape_cast %8 : vector<1x1x288x64xf32> to vector<288x64xf32>
    %c0_13 = arith.constant 0 : index
    %c1_14 = arith.constant 1 : index
    %c0_15 = arith.constant 0 : index
    %c0_16 = arith.constant 0 : index
    %10 = vector.load %arg3[%c0_13, %c1_14, %c0_15, %c0_16] : memref<3x3x64x128xf32, #tpu.memory_space<vmem>>, vector<1x1x64x128xf32>
    %11 = vector.shape_cast %10 : vector<1x1x64x128xf32> to vector<64x128xf32>
    %cst_17 = arith.constant dense<0.000000e+00> : vector<288x128xf32>
    %12 = tpu.matmul %9, %11, %cst_17 {dimension_numbers = #tpu.dot_dimension_numbers<[1], [0], [0], [1], [0, 0, 1, 1], [], []>} : vector<288x64xf32>, vector<64x128xf32>, vector<288x128xf32> -> vector<288x128xf32>
    %c0_18 = arith.constant 0 : index
    %c0_19 = arith.constant 0 : index
    %c0_20 = arith.constant 0 : index
    %13 = vector.load %arg4[%c0_18, %c0_19, %c0_20] : memref<1x288x128xf32, #tpu.memory_space<vmem>>, vector<1x288x128xf32>
    %14 = vector.shape_cast %13 : vector<1x288x128xf32> to vector<288x128xf32>
    %15 = arith.addf %14, %12 : vector<288x128xf32>
    %c0_21 = arith.constant 0 : index
    %c0_22 = arith.constant 0 : index
    %c0_23 = arith.constant 0 : index
    %16 = vector.load %arg4[%c0_21, %c0_22, %c0_23] : memref<1x288x128xf32, #tpu.memory_space<vmem>>, vector<1x288x128xf32>
    %17 = vector.shape_cast %16 : vector<1x288x128xf32> to vector<288x128xf32>
    %18 = vector.shape_cast %15 : vector<288x128xf32> to vector<1x288x128xf32>
    tpu.vector_store %arg4[%c0_21, %c0_22, %c0_23], %18 {strides = array<i32>} : memref<1x288x128xf32, #tpu.memory_space<vmem>>, vector<1x288x128xf32>,
    %c0_24 = arith.constant 0 : index
    %c0_25 = arith.constant 0 : index
    %c2 = arith.constant 2 : index
    %c0_26 = arith.constant 0 : index
    %19 = vector.load %arg2[%c0_24, %c0_25, %c2, %c0_26] : memref<1x1x326x64xf32, #tpu.memory_space<vmem>>, vector<1x1x288x64xf32>
    %20 = vector.shape_cast %19 : vector<1x1x288x64xf32> to vector<288x64xf32>
    %c0_27 = arith.constant 0 : index
    %c2_28 = arith.constant 2 : index
    %c0_29 = arith.constant 0 : index
    %c0_30 = arith.constant 0 : index
    %21 = vector.load %arg3[%c0_27, %c2_28, %c0_29, %c0_30] : memref<3x3x64x128xf32, #tpu.memory_space<vmem>>, vector<1x1x64x128xf32>
    %22 = vector.shape_cast %21 : vector<1x1x64x128xf32> to vector<64x128xf32>
    %cst_31 = arith.constant dense<0.000000e+00> : vector<288x128xf32>
    %23 = tpu.matmul %20, %22, %cst_31 {dimension_numbers = #tpu.dot_dimension_numbers<[1], [0], [0], [1], [0, 0, 1, 1], [], []>} : vector<288x64xf32>, vector<64x128xf32>, vector<288x128xf32> -> vector<288x128xf32>
    %c0_32 = arith.constant 0 : index
    %c0_33 = arith.constant 0 : index
    %c0_34 = arith.constant 0 : index
    %24 = vector.load %arg4[%c0_32, %c0_33, %c0_34] : memref<1x288x128xf32, #tpu.memory_space<vmem>>, vector<1x288x128xf32>
    %25 = vector.shape_cast %24 : vector<1x288x128xf32> to vector<288x128xf32>
    %26 = arith.addf %25, %23 : vector<288x128xf32>
    %c0_35 = arith.constant 0 : index
    %c0_36 = arith.constant 0 : index
    %c0_37 = arith.constant 0 : index
    %27 = vector.load %arg4[%c0_35, %c0_36, %c0_37] : memref<1x288x128xf32, #tpu.memory_space<vmem>>, vector<1x288x128xf32>
    %28 = vector.shape_cast %27 : vector<1x288x128xf32> to vector<288x128xf32>
    %29 = vector.shape_cast %26 : vector<288x128xf32> to vector<1x288x128xf32>
    tpu.vector_store %arg4[%c0_35, %c0_36, %c0_37], %29 {strides = array<i32>} : memref<1x288x128xf32, #tpu.memory_space<vmem>>, vector<1x288x128xf32>,
    %c0_38 = arith.constant 0 : index
    %c0_39 = arith.constant 0 : index
    %c18 = arith.constant 18 : index
    %c0_40 = arith.constant 0 : index
    %30 = vector.load %arg2[%c0_38, %c0_39, %c18, %c0_40] : memref<1x1x326x64xf32, #tpu.memory_space<vmem>>, vector<1x1x288x64xf32>
    %31 = vector.shape_cast %30 : vector<1x1x288x64xf32> to vector<288x64xf32>
    %c1_41 = arith.constant 1 : index
    %c0_42 = arith.constant 0 : index
    %c0_43 = arith.constant 0 : index
    %c0_44 = arith.constant 0 : index
    %32 = vector.load %arg3[%c1_41, %c0_42, %c0_43, %c0_44] : memref<3x3x64x128xf32, #tpu.memory_space<vmem>>, vector<1x1x64x128xf32>
    %33 = vector.shape_cast %32 : vector<1x1x64x128xf32> to vector<64x128xf32>
    %cst_45 = arith.constant dense<0.000000e+00> : vector<288x128xf32>
    %34 = tpu.matmul %31, %33, %cst_45 {dimension_numbers = #tpu.dot_dimension_numbers<[1], [0], [0], [1], [0, 0, 1, 1], [], []>} : vector<288x64xf32>, vector<64x128xf32>, vector<288x128xf32> -> vector<288x128xf32>
    %c0_46 = arith.constant 0 : index
    %c0_47 = arith.constant 0 : index
    %c0_48 = arith.constant 0 : index
    %35 = vector.load %arg4[%c0_46, %c0_47, %c0_48] : memref<1x288x128xf32, #tpu.memory_space<vmem>>, vector<1x288x128xf32>
    %36 = vector.shape_cast %35 : vector<1x288x128xf32> to vector<288x128xf32>
    %37 = arith.addf %36, %34 : vector<288x128xf32>
    %c0_49 = arith.constant 0 : index
    %c0_50 = arith.constant 0 : index
    %c0_51 = arith.constant 0 : index
    %38 = vector.load %arg4[%c0_49, %c0_50, %c0_51] : memref<1x288x128xf32, #tpu.memory_space<vmem>>, vector<1x288x128xf32>
    %39 = vector.shape_cast %38 : vector<1x288x128xf32> to vector<288x128xf32>
    %40 = vector.shape_cast %37 : vector<288x128xf32> to vector<1x288x128xf32>
    tpu.vector_store %arg4[%c0_49, %c0_50, %c0_51], %40 {strides = array<i32>} : memref<1x288x128xf32, #tpu.memory_space<vmem>>, vector<1x288x128xf32>,
    %c0_52 = arith.constant 0 : index
    %c0_53 = arith.constant 0 : index
    %c19 = arith.constant 19 : index
    %c0_54 = arith.constant 0 : index
    %41 = vector.load %arg2[%c0_52, %c0_53, %c19, %c0_54] : memref<1x1x326x64xf32, #tpu.memory_space<vmem>>, vector<1x1x288x64xf32>
    %42 = vector.shape_cast %41 : vector<1x1x288x64xf32> to vector<288x64xf32>
    %c1_55 = arith.constant 1 : index
    %c1_56 = arith.constant 1 : index
    %c0_57 = arith.constant 0 : index
    %c0_58 = arith.constant 0 : index
    %43 = vector.load %arg3[%c1_55, %c1_56, %c0_57, %c0_58] : memref<3x3x64x128xf32, #tpu.memory_space<vmem>>, vector<1x1x64x128xf32>
    %44 = vector.shape_cast %43 : vector<1x1x64x128xf32> to vector<64x128xf32>
    %cst_59 = arith.constant dense<0.000000e+00> : vector<288x128xf32>
    %45 = tpu.matmul %42, %44, %cst_59 {dimension_numbers = #tpu.dot_dimension_numbers<[1], [0], [0], [1], [0, 0, 1, 1], [], []>} : vector<288x64xf32>, vector<64x128xf32>, vector<288x128xf32> -> vector<288x128xf32>
    %c0_60 = arith.constant 0 : index
    %c0_61 = arith.constant 0 : index
    %c0_62 = arith.constant 0 : index
    %46 = vector.load %arg4[%c0_60, %c0_61, %c0_62] : memref<1x288x128xf32, #tpu.memory_space<vmem>>, vector<1x288x128xf32>
    %47 = vector.shape_cast %46 : vector<1x288x128xf32> to vector<288x128xf32>
    %48 = arith.addf %47, %45 : vector<288x128xf32>
    %c0_63 = arith.constant 0 : index
    %c0_64 = arith.constant 0 : index
    %c0_65 = arith.constant 0 : index
    %49 = vector.load %arg4[%c0_63, %c0_64, %c0_65] : memref<1x288x128xf32, #tpu.memory_space<vmem>>, vector<1x288x128xf32>
    %50 = vector.shape_cast %49 : vector<1x288x128xf32> to vector<288x128xf32>
    %51 = vector.shape_cast %48 : vector<288x128xf32> to vector<1x288x128xf32>
    tpu.vector_store %arg4[%c0_63, %c0_64, %c0_65], %51 {strides = array<i32>} : memref<1x288x128xf32, #tpu.memory_space<vmem>>, vector<1x288x128xf32>,
    %c0_66 = arith.constant 0 : index
    %c0_67 = arith.constant 0 : index
    %c20 = arith.constant 20 : index
    %c0_68 = arith.constant 0 : index
    %52 = vector.load %arg2[%c0_66, %c0_67, %c20, %c0_68] : memref<1x1x326x64xf32, #tpu.memory_space<vmem>>, vector<1x1x288x64xf32>
    %53 = vector.shape_cast %52 : vector<1x1x288x64xf32> to vector<288x64xf32>
    %c1_69 = arith.constant 1 : index
    %c2_70 = arith.constant 2 : index
    %c0_71 = arith.constant 0 : index
    %c0_72 = arith.constant 0 : index
    %54 = vector.load %arg3[%c1_69, %c2_70, %c0_71, %c0_72] : memref<3x3x64x128xf32, #tpu.memory_space<vmem>>, vector<1x1x64x128xf32>
    %55 = vector.shape_cast %54 : vector<1x1x64x128xf32> to vector<64x128xf32>
    %cst_73 = arith.constant dense<0.000000e+00> : vector<288x128xf32>
    %56 = tpu.matmul %53, %55, %cst_73 {dimension_numbers = #tpu.dot_dimension_numbers<[1], [0], [0], [1], [0, 0, 1, 1], [], []>} : vector<288x64xf32>, vector<64x128xf32>, vector<288x128xf32> -> vector<288x128xf32>
    %c0_74 = arith.constant 0 : index
    %c0_75 = arith.constant 0 : index
    %c0_76 = arith.constant 0 : index
    %57 = vector.load %arg4[%c0_74, %c0_75, %c0_76] : memref<1x288x128xf32, #tpu.memory_space<vmem>>, vector<1x288x128xf32>
    %58 = vector.shape_cast %57 : vector<1x288x128xf32> to vector<288x128xf32>
    %59 = arith.addf %58, %56 : vector<288x128xf32>
    %c0_77 = arith.constant 0 : index
    %c0_78 = arith.constant 0 : index
    %c0_79 = arith.constant 0 : index
    %60 = vector.load %arg4[%c0_77, %c0_78, %c0_79] : memref<1x288x128xf32, #tpu.memory_space<vmem>>, vector<1x288x128xf32>
    %61 = vector.shape_cast %60 : vector<1x288x128xf32> to vector<288x128xf32>
    %62 = vector.shape_cast %59 : vector<288x128xf32> to vector<1x288x128xf32>
    tpu.vector_store %arg4[%c0_77, %c0_78, %c0_79], %62 {strides = array<i32>} : memref<1x288x128xf32, #tpu.memory_space<vmem>>, vector<1x288x128xf32>,
    %c0_80 = arith.constant 0 : index
    %c0_81 = arith.constant 0 : index
    %c36 = arith.constant 36 : index
    %c0_82 = arith.constant 0 : index
    %63 = vector.load %arg2[%c0_80, %c0_81, %c36, %c0_82] : memref<1x1x326x64xf32, #tpu.memory_space<vmem>>, vector<1x1x288x64xf32>
    %64 = vector.shape_cast %63 : vector<1x1x288x64xf32> to vector<288x64xf32>
    %c2_83 = arith.constant 2 : index
    %c0_84 = arith.constant 0 : index
    %c0_85 = arith.constant 0 : index
    %c0_86 = arith.constant 0 : index
    %65 = vector.load %arg3[%c2_83, %c0_84, %c0_85, %c0_86] : memref<3x3x64x128xf32, #tpu.memory_space<vmem>>, vector<1x1x64x128xf32>
    %66 = vector.shape_cast %65 : vector<1x1x64x128xf32> to vector<64x128xf32>
    %cst_87 = arith.constant dense<0.000000e+00> : vector<288x128xf32>
    %67 = tpu.matmul %64, %66, %cst_87 {dimension_numbers = #tpu.dot_dimension_numbers<[1], [0], [0], [1], [0, 0, 1, 1], [], []>} : vector<288x64xf32>, vector<64x128xf32>, vector<288x128xf32> -> vector<288x128xf32>
    %c0_88 = arith.constant 0 : index
    %c0_89 = arith.constant 0 : index
    %c0_90 = arith.constant 0 : index
    %68 = vector.load %arg4[%c0_88, %c0_89, %c0_90] : memref<1x288x128xf32, #tpu.memory_space<vmem>>, vector<1x288x128xf32>
    %69 = vector.shape_cast %68 : vector<1x288x128xf32> to vector<288x128xf32>
    %70 = arith.addf %69, %67 : vector<288x128xf32>
    %c0_91 = arith.constant 0 : index
    %c0_92 = arith.constant 0 : index
    %c0_93 = arith.constant 0 : index
    %71 = vector.load %arg4[%c0_91, %c0_92, %c0_93] : memref<1x288x128xf32, #tpu.memory_space<vmem>>, vector<1x288x128xf32>
    %72 = vector.shape_cast %71 : vector<1x288x128xf32> to vector<288x128xf32>
    %73 = vector.shape_cast %70 : vector<288x128xf32> to vector<1x288x128xf32>
    tpu.vector_store %arg4[%c0_91, %c0_92, %c0_93], %73 {strides = array<i32>} : memref<1x288x128xf32, #tpu.memory_space<vmem>>, vector<1x288x128xf32>,
    %c0_94 = arith.constant 0 : index
    %c0_95 = arith.constant 0 : index
    %c37 = arith.constant 37 : index
    %c0_96 = arith.constant 0 : index
    %74 = vector.load %arg2[%c0_94, %c0_95, %c37, %c0_96] : memref<1x1x326x64xf32, #tpu.memory_space<vmem>>, vector<1x1x288x64xf32>
    %75 = vector.shape_cast %74 : vector<1x1x288x64xf32> to vector<288x64xf32>
    %c2_97 = arith.constant 2 : index
    %c1_98 = arith.constant 1 : index
    %c0_99 = arith.constant 0 : index
    %c0_100 = arith.constant 0 : index
    %76 = vector.load %arg3[%c2_97, %c1_98, %c0_99, %c0_100] : memref<3x3x64x128xf32, #tpu.memory_space<vmem>>, vector<1x1x64x128xf32>
    %77 = vector.shape_cast %76 : vector<1x1x64x128xf32> to vector<64x128xf32>
    %cst_101 = arith.constant dense<0.000000e+00> : vector<288x128xf32>
    %78 = tpu.matmul %75, %77, %cst_101 {dimension_numbers = #tpu.dot_dimension_numbers<[1], [0], [0], [1], [0, 0, 1, 1], [], []>} : vector<288x64xf32>, vector<64x128xf32>, vector<288x128xf32> -> vector<288x128xf32>
    %c0_102 = arith.constant 0 : index
    %c0_103 = arith.constant 0 : index
    %c0_104 = arith.constant 0 : index
    %79 = vector.load %arg4[%c0_102, %c0_103, %c0_104] : memref<1x288x128xf32, #tpu.memory_space<vmem>>, vector<1x288x128xf32>
    %80 = vector.shape_cast %79 : vector<1x288x128xf32> to vector<288x128xf32>
    %81 = arith.addf %80, %78 : vector<288x128xf32>
    %c0_105 = arith.constant 0 : index
    %c0_106 = arith.constant 0 : index
    %c0_107 = arith.constant 0 : index
    %82 = vector.load %arg4[%c0_105, %c0_106, %c0_107] : memref<1x288x128xf32, #tpu.memory_space<vmem>>, vector<1x288x128xf32>
    %83 = vector.shape_cast %82 : vector<1x288x128xf32> to vector<288x128xf32>
    %84 = vector.shape_cast %81 : vector<288x128xf32> to vector<1x288x128xf32>
    tpu.vector_store %arg4[%c0_105, %c0_106, %c0_107], %84 {strides = array<i32>} : memref<1x288x128xf32, #tpu.memory_space<vmem>>, vector<1x288x128xf32>,
    %c0_108 = arith.constant 0 : index
    %c0_109 = arith.constant 0 : index
    %c38 = arith.constant 38 : index
    %c0_110 = arith.constant 0 : index
    %85 = vector.load %arg2[%c0_108, %c0_109, %c38, %c0_110] : memref<1x1x326x64xf32, #tpu.memory_space<vmem>>, vector<1x1x288x64xf32>
    %86 = vector.shape_cast %85 : vector<1x1x288x64xf32> to vector<288x64xf32>
    %c2_111 = arith.constant 2 : index
    %c2_112 = arith.constant 2 : index
    %c0_113 = arith.constant 0 : index
    %c0_114 = arith.constant 0 : index
    %87 = vector.load %arg3[%c2_111, %c2_112, %c0_113, %c0_114] : memref<3x3x64x128xf32, #tpu.memory_space<vmem>>, vector<1x1x64x128xf32>
    %88 = vector.shape_cast %87 : vector<1x1x64x128xf32> to vector<64x128xf32>
    %cst_115 = arith.constant dense<0.000000e+00> : vector<288x128xf32>
    %89 = tpu.matmul %86, %88, %cst_115 {dimension_numbers = #tpu.dot_dimension_numbers<[1], [0], [0], [1], [0, 0, 1, 1], [], []>} : vector<288x64xf32>, vector<64x128xf32>, vector<288x128xf32> -> vector<288x128xf32>
    %c0_116 = arith.constant 0 : index
    %c0_117 = arith.constant 0 : index
    %c0_118 = arith.constant 0 : index
    %90 = vector.load %arg4[%c0_116, %c0_117, %c0_118] : memref<1x288x128xf32, #tpu.memory_space<vmem>>, vector<1x288x128xf32>
    %91 = vector.shape_cast %90 : vector<1x288x128xf32> to vector<288x128xf32>
    %92 = arith.addf %91, %89 : vector<288x128xf32>
    %c0_119 = arith.constant 0 : index
    %c0_120 = arith.constant 0 : index
    %c0_121 = arith.constant 0 : index
    %93 = vector.load %arg4[%c0_119, %c0_120, %c0_121] : memref<1x288x128xf32, #tpu.memory_space<vmem>>, vector<1x288x128xf32>
    %94 = vector.shape_cast %93 : vector<1x288x128xf32> to vector<288x128xf32>
    %95 = vector.shape_cast %92 : vector<288x128xf32> to vector<1x288x128xf32>
    tpu.vector_store %arg4[%c0_119, %c0_120, %c0_121], %95 {strides = array<i32>} : memref<1x288x128xf32, #tpu.memory_space<vmem>>, vector<1x288x128xf32>,
    %c0_122 = arith.constant 0 : index
    %c0_123 = arith.constant 0 : index
    %c0_124 = arith.constant 0 : index
    %96 = vector.load %arg4[%c0_122, %c0_123, %c0_124] : memref<1x288x128xf32, #tpu.memory_space<vmem>>, vector<1x288x128xf32>
    %97 = vector.shape_cast %96 : vector<1x288x128xf32> to vector<288x128xf32>
    %98 = tpu.iota {dimensions = array<i32: 0>} : vector<288x1xi32>
    %c18_i32 = arith.constant 18 : i32
    %c0_i32 = arith.constant 0 : i32
    %99 = arith.cmpi eq, %c18_i32, %c0_i32 : i32
    %c1_i32 = arith.constant 1 : i32
    %100 = arith.select %99, %c1_i32, %c18_i32 : i32
    %101 = vector.broadcast %100 : i32 to vector<288x1xi32>
    %102 = arith.remsi %98, %101 : vector<288x1xi32>
    %c0_i32_125 = arith.constant 0 : i32
    %103 = vector.broadcast %c0_i32_125 : i32 to vector<288x1xi32>
    %104 = arith.cmpi ne, %102, %103 : vector<288x1xi32>
    %c0_i32_126 = arith.constant 0 : i32
    %105 = vector.broadcast %c0_i32_126 : i32 to vector<288x1xi32>
    %106 = arith.cmpi slt, %102, %105 : vector<288x1xi32>
    %c0_i32_127 = arith.constant 0 : i32
    %107 = arith.cmpi slt, %100, %c0_i32_127 : i32
    %108 = vector.broadcast %107 : i1 to vector<288x1xi1>
    %109 = vector.broadcast %108 : vector<288x1xi1> to vector<288x1xi1>
    %110 = arith.xori %106, %109 : vector<288x1xi1>
    %111 = arith.andi %110, %104 : vector<288x1xi1>
    %112 = vector.broadcast %100 : i32 to vector<288x1xi32>
    %113 = arith.addi %102, %112 : vector<288x1xi32>
    %114 = arith.select %111, %113, %102 : vector<288x1xi1>, vector<288x1xi32>
    %c16_i32 = arith.constant 16 : i32
    %115 = vector.broadcast %c16_i32 : i32 to vector<288x1xi32>
    %116 = arith.cmpi slt, %114, %115 : vector<288x1xi32>
    %117 = arith.extui %116 : vector<288x1xi1> to vector<288x1xi32>
    %118 = arith.sitofp %117 : vector<288x1xi32> to vector<288x1xf32>
    %119 = vector.broadcast %118 : vector<288x1xf32> to vector<288x128xf32>
    %120 = arith.mulf %97, %119 : vector<288x128xf32>
    %cst_128 = arith.constant dense<0.000000e+00> : vector<128xf32>
    %121 = vector.multi_reduction <add>, %120, %cst_128 [0] : vector<288x128xf32> to vector<128xf32>
    %122 = vector.shape_cast %121 : vector<128xf32> to vector<1x128xf32>
    %123 = arith.mulf %120, %97 : vector<288x128xf32>
    %cst_129 = arith.constant dense<0.000000e+00> : vector<128xf32>
    %124 = vector.multi_reduction <add>, %123, %cst_129 [0] : vector<288x128xf32> to vector<128xf32>
    %125 = vector.shape_cast %124 : vector<128xf32> to vector<1x128xf32>
    %126 = tpu.concatenate %122, %125 in 0 : vector<1x128xf32>, vector<1x128xf32> -> vector<2x128xf32>
    %c0_i32_130 = arith.constant 0 : i32
    %127 = arith.cmpi eq, %arg1, %c0_i32_130 : i32
    %128 = arith.extui %127 : i1 to i32
    %c0_i32_131 = arith.constant 0 : i32
    %129 = arith.cmpi ne, %128, %c0_i32_131 : i32
    scf.if %129 {
      %c0_134 = arith.constant 0 : index
      %c0_135 = arith.constant 0 : index
      %c0_136 = arith.constant 0 : index
      %133 = vector.load %arg5[%c0_134, %c0_135, %c0_136] : memref<1x2x128xf32, #tpu.memory_space<vmem>>, vector<1x2x128xf32>
      %134 = vector.shape_cast %133 : vector<1x2x128xf32> to vector<2x128xf32>
      %135 = vector.shape_cast %126 : vector<2x128xf32> to vector<1x2x128xf32>
      tpu.vector_store %arg5[%c0_134, %c0_135, %c0_136], %135 {strides = array<i32>} : memref<1x2x128xf32, #tpu.memory_space<vmem>>, vector<1x2x128xf32>,
    } else {
    }
    %c0_i32_132 = arith.constant 0 : i32
    %130 = arith.cmpi sgt, %arg1, %c0_i32_132 : i32
    %131 = arith.extui %130 : i1 to i32
    %c0_i32_133 = arith.constant 0 : i32
    %132 = arith.cmpi ne, %131, %c0_i32_133 : i32
    scf.if %132 {
      %c0_134 = arith.constant 0 : index
      %c0_135 = arith.constant 0 : index
      %c0_136 = arith.constant 0 : index
      %133 = vector.load %arg5[%c0_134, %c0_135, %c0_136] : memref<1x2x128xf32, #tpu.memory_space<vmem>>, vector<1x2x128xf32>
      %134 = vector.shape_cast %133 : vector<1x2x128xf32> to vector<2x128xf32>
      %135 = arith.addf %134, %126 : vector<2x128xf32>
      %c0_137 = arith.constant 0 : index
      %c0_138 = arith.constant 0 : index
      %c0_139 = arith.constant 0 : index
      %136 = vector.load %arg5[%c0_137, %c0_138, %c0_139] : memref<1x2x128xf32, #tpu.memory_space<vmem>>, vector<1x2x128xf32>
      %137 = vector.shape_cast %136 : vector<1x2x128xf32> to vector<2x128xf32>
      %138 = vector.shape_cast %135 : vector<2x128xf32> to vector<1x2x128xf32>
      tpu.vector_store %arg5[%c0_137, %c0_138, %c0_139], %138 {strides = array<i32>} : memref<1x2x128xf32, #tpu.memory_space<vmem>>, vector<1x2x128xf32>,
    } else {
    }
    return
  }
  func.func @transform_0(%arg0: i32, %arg1: i32) -> (i32, i32, i32, i32) {
    %c0_i32 = arith.constant 0 : i32
    %c0_i32_0 = arith.constant 0 : i32
    %c0_i32_1 = arith.constant 0 : i32
    return %arg0, %arg1, %c0_i32, %c0_i32_0 : i32, i32, i32, i32
  }
  func.func @transform_1(%arg0: i32, %arg1: i32) -> (i32, i32, i32, i32) {
    %c0_i32 = arith.constant 0 : i32
    %c0_i32_0 = arith.constant 0 : i32
    %c0_i32_1 = arith.constant 0 : i32
    %c0_i32_2 = arith.constant 0 : i32
    %c0_i32_3 = arith.constant 0 : i32
    return %c0_i32, %c0_i32_0, %c0_i32_1, %c0_i32_2 : i32, i32, i32, i32
  }
  func.func @transform_2(%arg0: i32, %arg1: i32) -> (i32, i32, i32) {
    %c0_i32 = arith.constant 0 : i32
    %c0_i32_0 = arith.constant 0 : i32
    return %arg0, %arg1, %c0_i32 : i32, i32, i32
  }
  func.func @transform_3(%arg0: i32, %arg1: i32) -> (i32, i32, i32) {
    %c0_i32 = arith.constant 0 : i32
    %c0_i32_0 = arith.constant 0 : i32
    %c0_i32_1 = arith.constant 0 : i32
    return %arg0, %c0_i32, %c0_i32_0 : i32, i32, i32
  }
}

</mosaic_0001>

<llo_original>
// kernel: tpu_custom_call.1
$region0: #{tpu_custom_call.1}
  #allocation0 [shape = 'u32[]', space=smem, size = 0x4, offset = 0x4, fixed_abs, tag = 'smem constant byte address 0x4 - core index']
  #allocation1 [shape = 'u32[144,128]{1,0:T(1,128)}', space=vmem, size = 0x12000, scoped, tag = 'internal scratch']
  %s0 = inlined_call_operand.vmem [shape: f32[2,1,326,64], index: 0, kind: input, shape index: {}]
  %s1 = inlined_call_operand.vmem [shape: f32[3,3,64,128], index: 1, kind: input, shape index: {}]
  %s2 = inlined_call_operand.hbm [shape: f32[2,288,128], index: 2, kind: output, shape index: {0}]
  %s3 = inlined_call_operand.hbm [shape: f32[2,2,128], index: 3, kind: output, shape index: {1}]
  %4 = xla_tuple %s2, %s3
  %s5 = sld [smem:[#allocation0]]
  $region57: #{tpu_custom_call.1} parent=0
    _
  %s7 = ssub.s32 1, %s5
  %s8 = scalar_select 0, %s7, %s5
  $region1: #{tpu_custom_call.1} parent=0
    #allocation2 [shape = 'u8[294912]{0}', space=vmem, size = 0x48000, scoped, tag = 'output window, operand 0']
    #allocation3 [shape = 's32[2]{0}', space=sflag, size = 0x8, scoped, tag = 'scoped memory for tpu_custom_call.1']
    #allocation4 [shape = 'u8[2048]{0}', space=vmem, size = 0x800, scoped, tag = 'output window, operand 1']
    #allocation5 [shape = 's32[2]{0}', space=sflag, size = 0x8, scoped, tag = 'scoped memory for tpu_custom_call.1']
    %9 = vsyncpa [#allocation3], 0
    %s10 = scalar_lea.sflag [#allocation3], 1
    %11 = vsyncpa %s10, 0
    %12 = vsyncpa [#allocation5], 0
    %s13 = scalar_lea.sflag [#allocation5], 1
    %14 = vsyncpa %s13, 0
    loop: start=0, step=1, limit=4
    $region2: #{tpu_custom_call.1} parent=1 // loop_pre_header
      _
    $region3: #{tpu_custom_call.1} parent=1 // loop_header
      %s16 = sphi 0, %s20
      %p17 = scmp.ge.s32.totalorder %s16, 4
      %s23 = sphi 0, %s35
      %s24 = sphi 0, %s31
      %s25 = sphi 0, %s23
      %s26 = sphi 0, %s24
      %s27 = sphi 0, %s25
      %s28 = sphi 0, %s26
      %s40 = sphi 0, %s42
      %s43 = sphi 0, %s40
      %s44 = sphi 0, %s43
      %s60 = sphi 0, %s44
      %s64 = sphi 0, %s64
      %s66 = sphi 0, %s64
      %s67 = sphi 0, %s66
      %s81 = sphi 0, %s67
      %s89 = sphi 0, %s91
      %s92 = sphi 0, %s89
      %s93 = sphi 0, %s92
      %s109 = sphi 0, %s93
      %s115 = sphi 0, %s117
      %s118 = sphi 0, %s115
      %s119 = sphi 0, %s118
      %s135 = sphi 0, %s119
    $region4: #{tpu_custom_call.1} parent=1 // loop_header_branch
      %19 = sbr.rel (%p17) target = $region8
    $region5: #{tpu_custom_call.1} parent=1 // loop_body
      %s21 = ssub.s32 %s16, 1
      %s22 = ssub.s32 %s16, 2
      %s29 = sadd.s32 1, %s24
      %p30 = scmp.ge.s32.totalorder %s29, 1
      %s31 = scalar_select %p30, 0, %s29
      %s32 = sadd.s32 1, %s23
      %s33 = scalar_select %p30, %s32, %s23
      %p34 = scmp.ge.s32.totalorder %s33, 2
      %s35 = scalar_select %p34, 0, %s33
      %s36 = ssub.s32 %s23, %s35
      %s37 = ssub.s32 %s24, %s31
      %s38 = sor.u32 %s36, %s37
      %p39 = scmp.eq.s32.totalorder %s38, 0
      %s41 = sadd.s32 %s40, 1
      %s42 = scalar_select %p39, %s40, %s41
      %p45 = pneg %p39
      %p46 = scmp.eq.s32.totalorder %s16, 1
      %p47 = por %p45, %p46
      %p48 = scmp.ne.s32.totalorder %s40, %s43
      %p49 = scmp.eq.s32.totalorder %s16, 0
      %p50 = por %p48, %p49
      %p51 = scmp.ne.s32.totalorder %s40, %s43
      %p52 = scmp.eq.s32.totalorder %s21, 1
      %p53 = por %p51, %p52
      %p54 = scmp.ne.s32.totalorder %s43, %s44
      %p55 = scmp.eq.s32.totalorder %s21, 0
      %p56 = por %p54, %p55
      %p57 = scmp.ne.s32.totalorder %s43, %s44
      %p58 = scmp.eq.s32.totalorder %s22, 1
      %p59 = por %p57, %p58
      %p61 = scmp.ne.s32.totalorder %s44, %s60
      %p62 = scmp.eq.s32.totalorder %s22, 0
      %p63 = por %p61, %p62
      %s65 = sadd.s32 %s64, 1
      %p68 = scmp.eq.s32.totalorder %s16, 1
      %p69 = scmp.ne.s32.totalorder %s64, %s66
      %p70 = scmp.eq.s32.totalorder %s16, 0
      %p71 = por %p69, %p70
      %p72 = scmp.ne.s32.totalorder %s64, %s66
      %p73 = scmp.eq.s32.totalorder %s21, 1
      %p74 = por %p72, %p73
      %p75 = scmp.ne.s32.totalorder %s66, %s67
      %p76 = scmp.eq.s32.totalorder %s21, 0
      %p77 = por %p75, %p76
      %p78 = scmp.ne.s32.totalorder %s66, %s67
      %p79 = scmp.eq.s32.totalorder %s22, 1
      %p80 = por %p78, %p79
      %p82 = scmp.ne.s32.totalorder %s67, %s81
      %p83 = scmp.eq.s32.totalorder %s22, 0
      %p84 = por %p82, %p83
      %s85 = ssub.s32 %s23, %s35
      %s86 = ssub.s32 %s24, %s31
      %s87 = sor.u32 %s85, %s86
      %p88 = scmp.eq.s32.totalorder %s87, 0
      %s90 = sadd.s32 %s89, 1
      %s91 = scalar_select %p88, %s89, %s90
      %p94 = pneg %p88
      %p95 = scmp.eq.s32.totalorder %s16, 1
      %p96 = por %p94, %p95
      %p97 = scmp.ne.s32.totalorder %s89, %s92
      %p98 = scmp.eq.s32.totalorder %s16, 0
      %p99 = por %p97, %p98
      %p100 = scmp.ne.s32.totalorder %s89, %s92
      %p101 = scmp.eq.s32.totalorder %s21, 1
      %p102 = por %p100, %p101
      %p103 = scmp.ne.s32.totalorder %s92, %s93
      %p104 = scmp.eq.s32.totalorder %s21, 0
      %p105 = por %p103, %p104
      %p106 = scmp.ne.s32.totalorder %s92, %s93
      %p107 = scmp.eq.s32.totalorder %s22, 1
      %p108 = por %p106, %p107
      %p110 = scmp.ne.s32.totalorder %s93, %s109
      %p111 = scmp.eq.s32.totalorder %s22, 0
      %p112 = por %p110, %p111
      %s113 = ssub.s32 %s23, %s35
      %p114 = scmp.eq.s32.totalorder %s113, 0
      %s116 = sadd.s32 %s115, 1
      %s117 = scalar_select %p114, %s115, %s116
      %p120 = pneg %p114
      %p121 = scmp.eq.s32.totalorder %s16, 1
      %p122 = por %p120, %p121
      %p123 = scmp.ne.s32.totalorder %s115, %s118
      %p124 = scmp.eq.s32.totalorder %s16, 0
      %p125 = por %p123, %p124
      %p126 = scmp.ne.s32.totalorder %s115, %s118
      %p127 = scmp.eq.s32.totalorder %s21, 1
      %p128 = por %p126, %p127
      %p129 = scmp.ne.s32.totalorder %s118, %s119
      %p130 = scmp.eq.s32.totalorder %s21, 0
      %p131 = por %p129, %p130
      %p132 = scmp.ne.s32.totalorder %s118, %s119
      %p133 = scmp.eq.s32.totalorder %s22, 1
      %p134 = por %p132, %p133
      %p136 = scmp.ne.s32.totalorder %s119, %s135
      %p137 = scmp.eq.s32.totalorder %s22, 0
      %p138 = por %p136, %p137
      %p139 = scmp.le.s32.totalorder 1, %s16
      %p140 = scmp.lt.s32.totalorder %s16, 3
      %p141 = pnand %p139, %p140
      %p142 = pneg %p141
      // Predicated region
      $region9: #{tpu_custom_call.1} parent=5 // pred_check
        _
      $region10: #{tpu_custom_call.1} parent=5 // pred_check_branch
        %144 = sbr.rel (%p141) target = $region12
      $region11: #{tpu_custom_call.1} parent=5 // pred_region
        %s145 = ssub.s32 %s16, 1
        // Predicated region
        $region13: #{tpu_custom_call.1} parent=11 // pred_check
          %p146 = pneg %p77
        $region14: #{tpu_custom_call.1} parent=11 // pred_check_branch
          %148 = sbr.rel (%p146) target = $region16
        $region15: #{tpu_custom_call.1} parent=11 // pred_region
          _
        $region16: #{tpu_custom_call.1} parent=11 // pred_fallthru
          _
      $region12: #{tpu_custom_call.1} parent=5 // pred_fallthru
        _
      %p149 = scmp.lt.s32.totalorder %s16, 2
      // Predicated region
      $region17: #{tpu_custom_call.1} parent=5 // pred_check
        %p150 = pneg %p149
      $region18: #{tpu_custom_call.1} parent=5 // pred_check_branch
        %152 = sbr.rel (%p150) target = $region20
      $region19: #{tpu_custom_call.1} parent=5 // pred_region
        // Predicated region
        $region21: #{tpu_custom_call.1} parent=19 // pred_check
          %p153 = pneg %p50
        $region22: #{tpu_custom_call.1} parent=19 // pred_check_branch
          %155 = sbr.rel (%p153) target = $region24
        $region23: #{tpu_custom_call.1} parent=19 // pred_region
          %p156 = scmp.lt.s32.totalorder %s23, 1
          %s157 = scalar_select %p156, %s23, 1
          %p158 = scmp.lt.s32.totalorder %s24, 0
          %s159 = scalar_select %p158, %s24, 0
          %s160 = smul.addr %s159, 41
          %s161 = smul.addr %s157, 41
          %s162 = sadd.s32 %s160, %s161
          %s163 = smul.addr %s162, 8
          %s164 = scalar_lea.vmem %s0, %s163
        $region24: #{tpu_custom_call.1} parent=19 // pred_fallthru
          _
      $region20: #{tpu_custom_call.1} parent=5 // pred_fallthru
        _
      %p165 = scmp.le.s32.totalorder 1, %s16
      %p166 = scmp.lt.s32.totalorder %s16, 3
      %p167 = pnand %p165, %p166
      %p168 = pneg %p167
      // Predicated region
      $region25: #{tpu_custom_call.1} parent=5 // pred_check
        _
      $region26: #{tpu_custom_call.1} parent=5 // pred_check_branch
        %170 = sbr.rel (%p167) target = $region28
      $region27: #{tpu_custom_call.1} parent=5 // pred_region
        %s171 = ssub.s32 %s16, 1
        %p172 = scmp.lt.s32.totalorder %s25, 1
        %s173 = scalar_select %p172, %s25, 1
        %p174 = scmp.lt.s32.totalorder %s26, 0
        %s175 = scalar_select %p174, %s26, 0
        %s176 = smul.addr %s175, 41
        %s177 = smul.addr %s173, 41
        %s178 = sadd.s32 %s176, %s177
        %s179 = smul.addr %s178, 8
        %s180 = scalar_lea.vmem %s0, %s179
        %p181 = pneg %p56
        %p182 = pneg %p53
        %p183 = pneg %p77
        %p184 = pneg %p74
        %p185 = pneg %p105
        %p186 = pneg %p102
        %s187 = sand.u32 %s92, 1
        %s188 = scalar_lea.sflag [#allocation3], %s187
        %s189 = sand.u32 %s92, 1
        %s190 = smul.addr %s189, 288
        %s191 = scalar_lea.vmem [#allocation2], %s190
        %p192 = pneg %p131
        %p193 = pneg %p128
        %s194 = sand.u32 %s118, 1
        %s195 = scalar_lea.sflag [#allocation5], %s194
        %s196 = sand.u32 %s118, 1
        %s197 = smul.addr %s196, 2
        %s198 = scalar_lea.vmem [#allocation4], %s197
        %p199 = scmp.lt.s32.totalorder %s25, 1
        %s200 = scalar_select %p199, %s25, 1
        %p201 = scmp.lt.s32.totalorder %s26, 0
        %s202 = scalar_select %p201, %s26, 0
        %s203 = smul.addr %s202, 41
        %s204 = smul.addr %s200, 41
        %s205 = sadd.s32 %s203, %s204
        %s206 = smul.addr %s205, 8
        %s207 = scalar_lea.vmem %s0, %s206
        %s208 = smul.u32 36, %s26
        %v209 = vld [vmem:[%s207] sm:$0xff]
        %v210 = vld [vmem:[%s207 + $0x8] sm:$0xff]
        %v211 = vld [vmem:[%s207 + $0x10] sm:$0xff]
        %v212 = vld [vmem:[%s207 + $0x18] sm:$0xff]
        %v213 = vld [vmem:[%s207 + $0x20] sm:$0xff]
        %v214 = vld [vmem:[%s207 + $0x28] sm:$0xff]
        %v215 = vld [vmem:[%s207 + $0x30] sm:$0xff]
        %v216 = vld [vmem:[%s207 + $0x38] sm:$0xff]
        %v217 = vld [vmem:[%s207 + $0x40] sm:$0xff]
        %v218 = vld [vmem:[%s207 + $0x48] sm:$0xff]
        %v219 = vld [vmem:[%s207 + $0x50] sm:$0xff]
        %v220 = vld [vmem:[%s207 + $0x58] sm:$0xff]
        %v221 = vld [vmem:[%s207 + $0x60] sm:$0xff]
        %v222 = vld [vmem:[%s207 + $0x68] sm:$0xff]
        %v223 = vld [vmem:[%s207 + $0x70] sm:$0xff]
        %v224 = vld [vmem:[%s207 + $0x78] sm:$0xff]
        %v225 = vld [vmem:[%s207 + $0x80] sm:$0xff]
        %v226 = vld [vmem:[%s207 + $0x88] sm:$0xff]
        %v227 = vld [vmem:[%s207 + $0x90] sm:$0xff]
        %v228 = vld [vmem:[%s207 + $0x98] sm:$0xff]
        %v229 = vld [vmem:[%s207 + $0xa0] sm:$0xff]
        %v230 = vld [vmem:[%s207 + $0xa8] sm:$0xff]
        %v231 = vld [vmem:[%s207 + $0xb0] sm:$0xff]
        %v232 = vld [vmem:[%s207 + $0xb8] sm:$0xff]
        %v233 = vld [vmem:[%s207 + $0xc0] sm:$0xff]
        %v234 = vld [vmem:[%s207 + $0xc8] sm:$0xff]
        %v235 = vld [vmem:[%s207 + $0xd0] sm:$0xff]
        %v236 = vld [vmem:[%s207 + $0xd8] sm:$0xff]
        %v237 = vld [vmem:[%s207 + $0xe0] sm:$0xff]
        %v238 = vld [vmem:[%s207 + $0xe8] sm:$0xff]
        %v239 = vld [vmem:[%s207 + $0xf0] sm:$0xff]
        %v240 = vld [vmem:[%s207 + $0xf8] sm:$0xff]
        %v241 = vld [vmem:[%s207 + $0x100] sm:$0xff]
        %v242 = vld [vmem:[%s207 + $0x108] sm:$0xff]
        %v243 = vld [vmem:[%s207 + $0x110] sm:$0xff]
        %v244 = vld [vmem:[%s207 + $0x118] sm:$0xff]
        %v245 = vld [vmem:[%s1] sm:$0xff]
        %v246 = vld [vmem:[%s1 + $0x8] sm:$0xff]
        %v247 = vld [vmem:[%s1 + $0x10] sm:$0xff]
        %v248 = vld [vmem:[%s1 + $0x18] sm:$0xff]
        %v249 = vld [vmem:[%s1 + $0x20] sm:$0xff]
        %v250 = vld [vmem:[%s1 + $0x28] sm:$0xff]
        %v251 = vld [vmem:[%s1 + $0x30] sm:$0xff]
        %v252 = vld [vmem:[%s1 + $0x38] sm:$0xff]
        %vm253 = vcmask 523264
        %v255 = vsel %vm253, %v209, 0
        %v258 = vsel %vm253, %v210, 0
        %v261 = vsel %vm253, %v211, 0
        %v264 = vsel %vm253, %v212, 0
        %v267 = vsel %vm253, %v213, 0
        %v270 = vsel %vm253, %v214, 0
        %v273 = vsel %vm253, %v215, 0
        %v276 = vsel %vm253, %v216, 0
        %v279 = vsel %vm253, %v217, 0
        %v282 = vsel %vm253, %v218, 0
        %v285 = vsel %vm253, %v219, 0
        %v288 = vsel %vm253, %v220, 0
        %v291 = vsel %vm253, %v221, 0
        %v294 = vsel %vm253, %v222, 0
        %v297 = vsel %vm253, %v223, 0
        %v300 = vsel %vm253, %v224, 0
        %v303 = vsel %vm253, %v225, 0
        %v306 = vsel %vm253, %v226, 0
        %v309 = vsel %vm253, %v227, 0
        %v312 = vsel %vm253, %v228, 0
        %v315 = vsel %vm253, %v229, 0
        %v318 = vsel %vm253, %v230, 0
        %v321 = vsel %vm253, %v231, 0
        %v324 = vsel %vm253, %v232, 0
        %v327 = vsel %vm253, %v233, 0
        %v330 = vsel %vm253, %v234, 0
        %v333 = vsel %vm253, %v235, 0
        %v336 = vsel %vm253, %v236, 0
        %v339 = vsel %vm253, %v237, 0
        %v342 = vsel %vm253, %v238, 0
        %v345 = vsel %vm253, %v239, 0
        %v348 = vsel %vm253, %v240, 0
        %v351 = vsel %vm253, %v241, 0
        %v354 = vsel %vm253, %v242, 0
        %v357 = vsel %vm253, %v243, 0
        %v360 = vsel %vm253, %v244, 0
        %362 = vmatprep.subr.mxu0 0.0
        %363 = vmatpush1.msra.mxu0 %v245
        %364 = vmatprep.subr.mxu0 0.0
        %365 = vmatpush1.msra.mxu0 %v246
        %366 = vmatprep.subr.mxu0 0.0
        %367 = vmatpush1.msra.mxu0 %v247
        %368 = vmatprep.subr.mxu0 0.0
        %369 = vmatpush1.msra.mxu0 %v248
        %370 = vmatprep.subr.mxu0 0.0
        %371 = vmatpush1.msra.mxu0 %v249
        %372 = vmatprep.subr.mxu0 0.0
        %373 = vmatpush1.msra.mxu0 %v250
        %374 = vmatprep.subr.mxu0 0.0
        %375 = vmatpush1.msra.mxu0 %v251
        %376 = vmatprep.subr.mxu0 0.0
        %377 = vmatpush1.msra.mxu0 %v252
        %378 = vmatprep.subr.mxu0 0.0
        %379 = vmatpush1.msra.mxu0 0.0
        %380 = vmatprep.subr.mxu0 0.0
        %381 = vmatpush1.msra.mxu0 0.0
        %382 = vmatprep.subr.mxu0 0.0
        %383 = vmatpush1.msra.mxu0 0.0
        %384 = vmatprep.subr.mxu0 0.0
        %385 = vmatpush1.msra.mxu0 0.0
        %386 = vmatprep.subr.mxu0 0.0
        %387 = vmatpush1.msra.mxu0 0.0
        %388 = vmatprep.subr.mxu0 0.0
        %389 = vmatpush1.msra.mxu0 0.0
        %390 = vmatprep.subr.mxu0 0.0
        %391 = vmatpush1.msra.mxu0 0.0
        %392 = vmatprep.subr.mxu0 0.0
        %393 = vmatpush1.msra.mxu0 0.0
        %394 = vmatprep.subr.mxu0 0.0
        %395 = vmatpush1.msra.mxu0 0.0
        %396 = vmatprep.subr.mxu0 0.0
        %397 = vmatpush1.msra.mxu0 0.0
        %398 = vmatprep.subr.mxu0 0.0
        %399 = vmatpush1.msra.mxu0 0.0
        %400 = vmatprep.subr.mxu0 0.0
        %401 = vmatpush1.msra.mxu0 0.0
        %402 = vmatprep.subr.mxu0 0.0
        %403 = vmatpush1.msra.mxu0 0.0
        %404 = vmatprep.subr.mxu0 0.0
        %405 = vmatpush1.msra.mxu0 0.0
        %406 = vmatprep.subr.mxu0 0.0
        %407 = vmatpush1.msra.mxu0 0.0
        %408 = vmatprep.subr.mxu0 0.0
        %409 = vmatpush1.msra.mxu0 0.0
        %410 = vmatprep.subr.mxu0 0.0
        %411 = vmatpush1.msra.mxu0 0.0
        %412 = vmatprep.subr.mxu0 0.0
        %413 = vmatpush1.msra.mxu0 0.0
        %414 = vmatprep.subr.mxu0 0.0
        %415 = vmatpush1.msra.mxu0 0.0
        %416 = vmatprep.subr.mxu0 0.0
        %417 = vmatpush1.msra.mxu0 0.0
        %418 = vmatprep.subr.mxu0 0.0
        %419 = vmatpush1.msra.mxu0 0.0
        %420 = vmatprep.subr.mxu0 0.0
        %421 = vmatpush1.msra.mxu0 0.0
        %422 = vmatprep.subr.mxu0 0.0
        %423 = vmatpush1.msra.mxu0 0.0
        %424 = vmatprep.subr.mxu0 0.0
        %425 = vmatpush1.msra.mxu0 0.0
        %426 = vmatprep.mubr.f32.mxu0 0.0
        %427 = vmatmul.mubr.f32.gmra.mrb[0].mxu0 %v255
        %v428 = vpop.f32.mrb[0].mxu0
        %v429 = vadd.f32 0.0, %v428
        %v430 = vpop.f32.mrb[0].mxu0
        %431 = vmatprep.mubr.f32.mxu0 0.0
        %432 = vmatmul.mubr.f32.gmra.mrb[0].mxu0 %v258
        %v433 = vpop.f32.mrb[0].mxu0
        %v434 = vadd.f32 0.0, %v433
        %v435 = vpop.f32.mrb[0].mxu0
        %436 = vmatprep.mubr.f32.mxu0 0.0
        %437 = vmatmul.mubr.f32.gmra.mrb[0].mxu0 %v261
        %v438 = vpop.f32.mrb[0].mxu0
        %v439 = vadd.f32 0.0, %v438
        %v440 = vpop.f32.mrb[0].mxu0
        %441 = vmatprep.mubr.f32.mxu0 0.0
        %442 = vmatmul.mubr.f32.gmra.mrb[0].mxu0 %v264
        %v443 = vpop.f32.mrb[0].mxu0
        %v444 = vadd.f32 0.0, %v443
        %v445 = vpop.f32.mrb[0].mxu0
        %446 = vmatprep.mubr.f32.mxu0 0.0
        %447 = vmatmul.mubr.f32.gmra.mrb[0].mxu0 %v267
        %v448 = vpop.f32.mrb[0].mxu0
        %v449 = vadd.f32 0.0, %v448
        %v450 = vpop.f32.mrb[0].mxu0
        %451 = vmatprep.mubr.f32.mxu0 0.0
        %452 = vmatmul.mubr.f32.gmra.mrb[0].mxu0 %v270
        %v453 = vpop.f32.mrb[0].mxu0
        %v454 = vadd.f32 0.0, %v453
        %v455 = vpop.f32.mrb[0].mxu0
        %456 = vmatprep.mubr.f32.mxu0 0.0
        %457 = vmatmul.mubr.f32.gmra.mrb[0].mxu0 %v273
        %v458 = vpop.f32.mrb[0].mxu0
        %v459 = vadd.f32 0.0, %v458
        %v460 = vpop.f32.mrb[0].mxu0
        %461 = vmatprep.mubr.f32.mxu0 0.0
        %462 = vmatmul.mubr.f32.gmra.mrb[0].mxu0 %v276
        %v463 = vpop.f32.mrb[0].mxu0
        %v464 = vadd.f32 0.0, %v463
        %v465 = vpop.f32.mrb[0].mxu0
        %466 = vmatprep.mubr.f32.mxu0 0.0
        %467 = vmatmul.mubr.f32.gmra.mrb[0].mxu0 %v279
        %v468 = vpop.f32.mrb[0].mxu0
        %v469 = vadd.f32 0.0, %v468
        %v470 = vpop.f32.mrb[0].mxu0
        %471 = vmatprep.mubr.f32.mxu0 0.0
        %472 = vmatmul.mubr.f32.gmra.mrb[0].mxu0 %v282
        %v473 = vpop.f32.mrb[0].mxu0
        %v474 = vadd.f32 0.0, %v473
        %v475 = vpop.f32.mrb[0].mxu0
        %476 = vmatprep.mubr.f32.mxu0 0.0
        %477 = vmatmul.mubr.f32.gmra.mrb[0].mxu0 %v285
        %v478 = vpop.f32.mrb[0].mxu0
        %v479 = vadd.f32 0.0, %v478
        %v480 = vpop.f32.mrb[0].mxu0
        %481 = vmatprep.mubr.f32.mxu0 0.0
        %482 = vmatmul.mubr.f32.gmra.mrb[0].mxu0 %v288
        %v483 = vpop.f32.mrb[0].mxu0
        %v484 = vadd.f32 0.0, %v483
        %v485 = vpop.f32.mrb[0].mxu0
        %486 = vmatprep.mubr.f32.mxu0 0.0
        %487 = vmatmul.mubr.f32.gmra.mrb[0].mxu0 %v291
        %v488 = vpop.f32.mrb[0].mxu0
        %v489 = vadd.f32 0.0, %v488
        %v490 = vpop.f32.mrb[0].mxu0
        %491 = vmatprep.mubr.f32.mxu0 0.0
        %492 = vmatmul.mubr.f32.gmra.mrb[0].mxu0 %v294
        %v493 = vpop.f32.mrb[0].mxu0
        %v494 = vadd.f32 0.0, %v493
        %v495 = vpop.f32.mrb[0].mxu0
        %496 = vmatprep.mubr.f32.mxu0 0.0
        %497 = vmatmul.mubr.f32.gmra.mrb[0].mxu0 %v297
        %v498 = vpop.f32.mrb[0].mxu0
        %v499 = vadd.f32 0.0, %v498
        %v500 = vpop.f32.mrb[0].mxu0
        %501 = vmatprep.mubr.f32.mxu0 0.0
        %502 = vmatmul.mubr.f32.gmra.mrb[0].mxu0 %v300
        %v503 = vpop.f32.mrb[0].mxu0
        %v504 = vadd.f32 0.0, %v503
        %v505 = vpop.f32.mrb[0].mxu0
        %506 = vmatprep.mubr.f32.mxu0 0.0
        %507 = vmatmul.mubr.f32.gmra.mrb[0].mxu0 %v303
        %v508 = vpop.f32.mrb[0].mxu0
        %v509 = vadd.f32 0.0, %v508
        %v510 = vpop.f32.mrb[0].mxu0
        %511 = vmatprep.mubr.f32.mxu0 0.0
        %512 = vmatmul.mubr.f32.gmra.mrb[0].mxu0 %v306
        %v513 = vpop.f32.mrb[0].mxu0
        %v514 = vadd.f32 0.0, %v513
        %v515 = vpop.f32.mrb[0].mxu0
        %516 = vmatprep.mubr.f32.mxu0 0.0
        %517 = vmatmul.mubr.f32.gmra.mrb[0].mxu0 %v309
        %v518 = vpop.f32.mrb[0].mxu0
        %v519 = vadd.f32 0.0, %v518
        %v520 = vpop.f32.mrb[0].mxu0
        %521 = vmatprep.mubr.f32.mxu0 0.0
        %522 = vmatmul.mubr.f32.gmra.mrb[0].mxu0 %v312
        %v523 = vpop.f32.mrb[0].mxu0
        %v524 = vadd.f32 0.0, %v523
        %v525 = vpop.f32.mrb[0].mxu0
        %526 = vmatprep.mubr.f32.mxu0 0.0
        %527 = vmatmul.mubr.f32.gmra.mrb[0].mxu0 %v315
        %v528 = vpop.f32.mrb[0].mxu0
        %v529 = vadd.f32 0.0, %v528
        %v530 = vpop.f32.mrb[0].mxu0
        %531 = vmatprep.mubr.f32.mxu0 0.0
        %532 = vmatmul.mubr.f32.gmra.mrb[0].mxu0 %v318
        %v533 = vpop.f32.mrb[0].mxu0
        %v534 = vadd.f32 0.0, %v533
        %v535 = vpop.f32.mrb[0].mxu0
        %536 = vmatprep.mubr.f32.mxu0 0.0
        %537 = vmatmul.mubr.f32.gmra.mrb[0].mxu0 %v321
        %v538 = vpop.f32.mrb[0].mxu0
        %v539 = vadd.f32 0.0, %v538
        %v540 = vpop.f32.mrb[0].mxu0
        %541 = vmatprep.mubr.f32.mxu0 0.0
        %542 = vmatmul.mubr.f32.gmra.mrb[0].mxu0 %v324
        %v543 = vpop.f32.mrb[0].mxu0
        %v544 = vadd.f32 0.0, %v543
        %v545 = vpop.f32.mrb[0].mxu0
        %546 = vmatprep.mubr.f32.mxu0 0.0
        %547 = vmatmul.mubr.f32.gmra.mrb[0].mxu0 %v327
        %v548 = vpop.f32.mrb[0].mxu0
        %v549 = vadd.f32 0.0, %v548
        %v550 = vpop.f32.mrb[0].mxu0
        %551 = vmatprep.mubr.f32.mxu0 0.0
        %552 = vmatmul.mubr.f32.gmra.mrb[0].mxu0 %v330
        %v553 = vpop.f32.mrb[0].mxu0
        %v554 = vadd.f32 0.0, %v553
        %v555 = vpop.f32.mrb[0].mxu0
        %556 = vmatprep.mubr.f32.mxu0 0.0
        %557 = vmatmul.mubr.f32.gmra.mrb[0].mxu0 %v333
        %v558 = vpop.f32.mrb[0].mxu0
        %v559 = vadd.f32 0.0, %v558
        %v560 = vpop.f32.mrb[0].mxu0
        %561 = vmatprep.mubr.f32.mxu0 0.0
        %562 = vmatmul.mubr.f32.gmra.mrb[0].mxu0 %v336
        %v563 = vpop.f32.mrb[0].mxu0
        %v564 = vadd.f32 0.0, %v563
        %v565 = vpop.f32.mrb[0].mxu0
        %566 = vmatprep.mubr.f32.mxu0 0.0
        %567 = vmatmul.mubr.f32.gmra.mrb[0].mxu0 %v339
        %v568 = vpop.f32.mrb[0].mxu0
        %v569 = vadd.f32 0.0, %v568
        %v570 = vpop.f32.mrb[0].mxu0
        %571 = vmatprep.mubr.f32.mxu0 0.0
        %572 = vmatmul.mubr.f32.gmra.mrb[0].mxu0 %v342
        %v573 = vpop.f32.mrb[0].mxu0
        %v574 = vadd.f32 0.0, %v573
        %v575 = vpop.f32.mrb[0].mxu0
        %576 = vmatprep.mubr.f32.mxu0 0.0
        %577 = vmatmul.mubr.f32.gmra.mrb[0].mxu0 %v345
        %v578 = vpop.f32.mrb[0].mxu0
        %v579 = vadd.f32 0.0, %v578
        %v580 = vpop.f32.mrb[0].mxu0
        %581 = vmatprep.mubr.f32.mxu0 0.0
        %582 = vmatmul.mubr.f32.gmra.mrb[0].mxu0 %v348
        %v583 = vpop.f32.mrb[0].mxu0
        %v584 = vadd.f32 0.0, %v583
        %v585 = vpop.f32.mrb[0].mxu0
        %586 = vmatprep.mubr.f32.mxu0 0.0
        %587 = vmatmul.mubr.f32.gmra.mrb[0].mxu0 %v351
        %v588 = vpop.f32.mrb[0].mxu0
        %v589 = vadd.f32 0.0, %v588
        %v590 = vpop.f32.mrb[0].mxu0
        %591 = vmatprep.mubr.f32.mxu0 0.0
        %592 = vmatmul.mubr.f32.gmra.mrb[0].mxu0 %v354
        %v593 = vpop.f32.mrb[0].mxu0
        %v594 = vadd.f32 0.0, %v593
        %v595 = vpop.f32.mrb[0].mxu0
        %596 = vmatprep.mubr.f32.mxu0 0.0
        %597 = vmatmul.mubr.f32.gmra.mrb[0].mxu0 %v357
        %v598 = vpop.f32.mrb[0].mxu0
        %v599 = vadd.f32 0.0, %v598
        %v600 = vpop.f32.mrb[0].mxu0
        %601 = vmatprep.mubr.f32.mxu0 0.0
        %602 = vmatmul.mubr.f32.gmra.mrb[0].mxu0 %v360
        %v603 = vpop.f32.mrb[0].mxu0
        %v604 = vadd.f32 0.0, %v603
        %v605 = vpop.f32.mrb[0].mxu0
        %606 = vdwg.mxu0
        %607 = vst [vmem:[%s191] sm:$0xff] %v429
        %608 = vst [vmem:[%s191 + $0x8] sm:$0xff] %v434
        %609 = vst [vmem:[%s191 + $0x10] sm:$0xff] %v439
        %610 = vst [vmem:[%s191 + $0x18] sm:$0xff] %v444
        %611 = vst [vmem:[%s191 + $0x20] sm:$0xff] %v449
        %612 = vst [vmem:[%s191 + $0x28] sm:$0xff] %v454
        %613 = vst [vmem:[%s191 + $0x30] sm:$0xff] %v459
        %614 = vst [vmem:[%s191 + $0x38] sm:$0xff] %v464
        %615 = vst [vmem:[%s191 + $0x40] sm:$0xff] %v469
        %616 = vst [vmem:[%s191 + $0x48] sm:$0xff] %v474
        %617 = vst [vmem:[%s191 + $0x50] sm:$0xff] %v479
        %618 = vst [vmem:[%s191 + $0x58] sm:$0xff] %v484
        %619 = vst [vmem:[%s191 + $0x60] sm:$0xff] %v489
        %620 = vst [vmem:[%s191 + $0x68] sm:$0xff] %v494
        %621 = vst [vmem:[%s191 + $0x70] sm:$0xff] %v499
        %622 = vst [vmem:[%s191 + $0x78] sm:$0xff] %v504
        %623 = vst [vmem:[%s191 + $0x80] sm:$0xff] %v509
        %624 = vst [vmem:[%s191 + $0x88] sm:$0xff] %v514
        %625 = vst [vmem:[%s191 + $0x90] sm:$0xff] %v519
        %626 = vst [vmem:[%s191 + $0x98] sm:$0xff] %v524
        %627 = vst [vmem:[%s191 + $0xa0] sm:$0xff] %v529
        %628 = vst [vmem:[%s191 + $0xa8] sm:$0xff] %v534
        %629 = vst [vmem:[%s191 + $0xb0] sm:$0xff] %v539
        %630 = vst [vmem:[%s191 + $0xb8] sm:$0xff] %v544
        %631 = vst [vmem:[%s191 + $0xc0] sm:$0xff] %v549
        %632 = vst [vmem:[%s191 + $0xc8] sm:$0xff] %v554
        %633 = vst [vmem:[%s191 + $0xd0] sm:$0xff] %v559
        %634 = vst [vmem:[%s191 + $0xd8] sm:$0xff] %v564
        %635 = vst [vmem:[%s191 + $0xe0] sm:$0xff] %v569
        %636 = vst [vmem:[%s191 + $0xe8] sm:$0xff] %v574
        %637 = vst [vmem:[%s191 + $0xf0] sm:$0xff] %v579
        %638 = vst [vmem:[%s191 + $0xf8] sm:$0xff] %v584
        %639 = vst [vmem:[%s191 + $0x100] sm:$0xff] %v589
        %640 = vst [vmem:[%s191 + $0x108] sm:$0xff] %v594
        %641 = vst [vmem:[%s191 + $0x110] sm:$0xff] %v599
        %642 = vst [vmem:[%s191 + $0x118] sm:$0xff] %v604
        %v643 = vld [vmem:[%s207 + $0x1] sm:$0xff]
        %v644 = vld [vmem:[%s207 + $0x9] sm:$0xff]
        %v645 = vld [vmem:[%s207 + $0x11] sm:$0xff]
        %v646 = vld [vmem:[%s207 + $0x19] sm:$0xff]
        %v647 = vld [vmem:[%s207 + $0x21] sm:$0xff]
        %v648 = vld [vmem:[%s207 + $0x29] sm:$0xff]
        %v649 = vld [vmem:[%s207 + $0x31] sm:$0xff]
        %v650 = vld [vmem:[%s207 + $0x39] sm:$0xff]
        %v651 = vld [vmem:[%s207 + $0x41] sm:$0xff]
        %v652 = vld [vmem:[%s207 + $0x49] sm:$0xff]
        %v653 = vld [vmem:[%s207 + $0x51] sm:$0xff]
        %v654 = vld [vmem:[%s207 + $0x59] sm:$0xff]
        %v655 = vld [vmem:[%s207 + $0x61] sm:$0xff]
        %v656 = vld [vmem:[%s207 + $0x69] sm:$0xff]
        %v657 = vld [vmem:[%s207 + $0x71] sm:$0xff]
        %v658 = vld [vmem:[%s207 + $0x79] sm:$0xff]
        %v659 = vld [vmem:[%s207 + $0x81] sm:$0xff]
        %v660 = vld [vmem:[%s207 + $0x89] sm:$0xff]
        %v661 = vld [vmem:[%s207 + $0x91] sm:$0xff]
        %v662 = vld [vmem:[%s207 + $0x99] sm:$0xff]
        %v663 = vld [vmem:[%s207 + $0xa1] sm:$0xff]
        %v664 = vld [vmem:[%s207 + $0xa9] sm:$0xff]
        %v665 = vld [vmem:[%s207 + $0xb1] sm:$0xff]
        %v666 = vld [vmem:[%s207 + $0xb9] sm:$0xff]
        %v667 = vld [vmem:[%s207 + $0xc1] sm:$0xff]
        %v668 = vld [vmem:[%s207 + $0xc9] sm:$0xff]
        %v669 = vld [vmem:[%s207 + $0xd1] sm:$0xff]
        %v670 = vld [vmem:[%s207 + $0xd9] sm:$0xff]
        %v671 = vld [vmem:[%s207 + $0xe1] sm:$0xff]
        %v672 = vld [vmem:[%s207 + $0xe9] sm:$0xff]
        %v673 = vld [vmem:[%s207 + $0xf1] sm:$0xff]
        %v674 = vld [vmem:[%s207 + $0xf9] sm:$0xff]
        %v675 = vld [vmem:[%s207 + $0x101] sm:$0xff]
        %v676 = vld [vmem:[%s207 + $0x109] sm:$0xff]
        %v677 = vld [vmem:[%s207 + $0x111] sm:$0xff]
        %v678 = vld [vmem:[%s207 + $0x119] sm:$0xff]
        %s679 = scalar_lea.vmem %s1, 64
        %v680 = vld [vmem:[%s679] sm:$0xff]
        %v681 = vld [vmem:[%s679 + $0x8] sm:$0xff]
        %v682 = vld [vmem:[%s679 + $0x10] sm:$0xff]
        %v683 = vld [vmem:[%s679 + $0x18] sm:$0xff]
        %v684 = vld [vmem:[%s679 + $0x20] sm:$0xff]
        %v685 = vld [vmem:[%s679 + $0x28] sm:$0xff]
        %v686 = vld [vmem:[%s679 + $0x30] sm:$0xff]
        %v687 = vld [vmem:[%s679 + $0x38] sm:$0xff]
        %v689 = vsel %vm253, %v643, 0
        %v692 = vsel %vm253, %v644, 0
        %v695 = vsel %vm253, %v645, 0
        %v698 = vsel %vm253, %v646, 0
        %v701 = vsel %vm253, %v647, 0
        %v704 = vsel %vm253, %v648, 0
        %v707 = vsel %vm253, %v649, 0
        %v710 = vsel %vm253, %v650, 0
        %v713 = vsel %vm253, %v651, 0
        %v716 = vsel %vm253, %v652, 0
        %v719 = vsel %vm253, %v653, 0
        %v722 = vsel %vm253, %v654, 0
        %v725 = vsel %vm253, %v655, 0
        %v728 = vsel %vm253, %v656, 0
        %v731 = vsel %vm253, %v657, 0
        %v734 = vsel %vm253, %v658, 0
        %v737 = vsel %vm253, %v659, 0
        %v740 = vsel %vm253, %v660, 0
        %v743 = vsel %vm253, %v661, 0
        %v746 = vsel %vm253, %v662, 0
        %v749 = vsel %vm253, %v663, 0
        %v752 = vsel %vm253, %v664, 0
        %v755 = vsel %vm253, %v665, 0
        %v758 = vsel %vm253, %v666, 0
        %v761 = vsel %vm253, %v667, 0
        %v764 = vsel %vm253, %v668, 0
        %v767 = vsel %vm253, %v669, 0
        %v770 = vsel %vm253, %v670, 0
        %v773 = vsel %vm253, %v671, 0
        %v776 = vsel %vm253, %v672, 0
        %v779 = vsel %vm253, %v673, 0
        %v782 = vsel %vm253, %v674, 0
        %v785 = vsel %vm253, %v675, 0
        %v788 = vsel %vm253, %v676, 0
        %v791 = vsel %vm253, %v677, 0
        %v794 = vsel %vm253, %v678, 0
        %796 = vmatprep.subr.mxu0 0.0
        %797 = vmatpush1.msra.mxu0 %v680
        %798 = vmatprep.subr.mxu0 0.0
        %799 = vmatpush1.msra.mxu0 %v681
        %800 = vmatprep.subr.mxu0 0.0
        %801 = vmatpush1.msra.mxu0 %v682
        %802 = vmatprep.subr.mxu0 0.0
        %803 = vmatpush1.msra.mxu0 %v683
        %804 = vmatprep.subr.mxu0 0.0
        %805 = vmatpush1.msra.mxu0 %v684
        %806 = vmatprep.subr.mxu0 0.0
        %807 = vmatpush1.msra.mxu0 %v685
        %808 = vmatprep.subr.mxu0 0.0
        %809 = vmatpush1.msra.mxu0 %v686
        %810 = vmatprep.subr.mxu0 0.0
        %811 = vmatpush1.msra.mxu0 %v687
        %812 = vmatprep.subr.mxu0 0.0
        %813 = vmatpush1.msra.mxu0 0.0
        %814 = vmatprep.subr.mxu0 0.0
        %815 = vmatpush1.msra.mxu0 0.0
        %816 = vmatprep.subr.mxu0 0.0
        %817 = vmatpush1.msra.mxu0 0.0
        %818 = vmatprep.subr.mxu0 0.0
        %819 = vmatpush1.msra.mxu0 0.0
        %820 = vmatprep.subr.mxu0 0.0
        %821 = vmatpush1.msra.mxu0 0.0
        %822 = vmatprep.subr.mxu0 0.0
        %823 = vmatpush1.msra.mxu0 0.0
        %824 = vmatprep.subr.mxu0 0.0
        %825 = vmatpush1.msra.mxu0 0.0
        %826 = vmatprep.subr.mxu0 0.0
        %827 = vmatpush1.msra.mxu0 0.0
        %828 = vmatprep.subr.mxu0 0.0
        %829 = vmatpush1.msra.mxu0 0.0
        %830 = vmatprep.subr.mxu0 0.0
        %831 = vmatpush1.msra.mxu0 0.0
        %832 = vmatprep.subr.mxu0 0.0
        %833 = vmatpush1.msra.mxu0 0.0
        %834 = vmatprep.subr.mxu0 0.0
        %835 = vmatpush1.msra.mxu0 0.0
        %836 = vmatprep.subr.mxu0 0.0
        %837 = vmatpush1.msra.mxu0 0.0
        %838 = vmatprep.subr.mxu0 0.0
        %839 = vmatpush1.msra.mxu0 0.0
        %840 = vmatprep.subr.mxu0 0.0
        %841 = vmatpush1.msra.mxu0 0.0
        %842 = vmatprep.subr.mxu0 0.0
        %843 = vmatpush1.msra.mxu0 0.0
        %844 = vmatprep.subr.mxu0 0.0
        %845 = vmatpush1.msra.mxu0 0.0
        %846 = vmatprep.subr.mxu0 0.0
        %847 = vmatpush1.msra.mxu0 0.0
        %848 = vmatprep.subr.mxu0 0.0
        %849 = vmatpush1.msra.mxu0 0.0
        %850 = vmatprep.subr.mxu0 0.0
        %851 = vmatpush1.msra.mxu0 0.0
        %852 = vmatprep.subr.mxu0 0.0
        %853 = vmatpush1.msra.mxu0 0.0
        %854 = vmatprep.subr.mxu0 0.0
        %855 = vmatpush1.msra.mxu0 0.0
        %856 = vmatprep.subr.mxu0 0.0
        %857 = vmatpush1.msra.mxu0 0.0
        %858 = vmatprep.subr.mxu0 0.0
        %859 = vmatpush1.msra.mxu0 0.0
        %860 = vmatprep.mubr.f32.mxu0 0.0
        %861 = vmatmul.mubr.f32.gmra.mrb[0].mxu0 %v689
        %v862 = vpop.f32.mrb[0].mxu0
        %v863 = vadd.f32 0.0, %v862
        %v864 = vpop.f32.mrb[0].mxu0
        %865 = vmatprep.mubr.f32.mxu0 0.0
        %866 = vmatmul.mubr.f32.gmra.mrb[0].mxu0 %v692
        %v867 = vpop.f32.mrb[0].mxu0
        %v868 = vadd.f32 0.0, %v867
        %v869 = vpop.f32.mrb[0].mxu0
        %870 = vmatprep.mubr.f32.mxu0 0.0
        %871 = vmatmul.mubr.f32.gmra.mrb[0].mxu0 %v695
        %v872 = vpop.f32.mrb[0].mxu0
        %v873 = vadd.f32 0.0, %v872
        %v874 = vpop.f32.mrb[0].mxu0
        %875 = vmatprep.mubr.f32.mxu0 0.0
        %876 = vmatmul.mubr.f32.gmra.mrb[0].mxu0 %v698
        %v877 = vpop.f32.mrb[0].mxu0
        %v878 = vadd.f32 0.0, %v877
        %v879 = vpop.f32.mrb[0].mxu0
        %880 = vmatprep.mubr.f32.mxu0 0.0
        %881 = vmatmul.mubr.f32.gmra.mrb[0].mxu0 %v701
        %v882 = vpop.f32.mrb[0].mxu0
        %v883 = vadd.f32 0.0, %v882
        %v884 = vpop.f32.mrb[0].mxu0
        %885 = vmatprep.mubr.f32.mxu0 0.0
        %886 = vmatmul.mubr.f32.gmra.mrb[0].mxu0 %v704
        %v887 = vpop.f32.mrb[0].mxu0
        %v888 = vadd.f32 0.0, %v887
        %v889 = vpop.f32.mrb[0].mxu0
        %890 = vmatprep.mubr.f32.mxu0 0.0
        %891 = vmatmul.mubr.f32.gmra.mrb[0].mxu0 %v707
        %v892 = vpop.f32.mrb[0].mxu0
        %v893 = vadd.f32 0.0, %v892
        %v894 = vpop.f32.mrb[0].mxu0
        %895 = vmatprep.mubr.f32.mxu0 0.0
        %896 = vmatmul.mubr.f32.gmra.mrb[0].mxu0 %v710
        %v897 = vpop.f32.mrb[0].mxu0
        %v898 = vadd.f32 0.0, %v897
        %v899 = vpop.f32.mrb[0].mxu0
        %900 = vmatprep.mubr.f32.mxu0 0.0
        %901 = vmatmul.mubr.f32.gmra.mrb[0].mxu0 %v713
        %v902 = vpop.f32.mrb[0].mxu0
        %v903 = vadd.f32 0.0, %v902
        %v904 = vpop.f32.mrb[0].mxu0
        %905 = vmatprep.mubr.f32.mxu0 0.0
        %906 = vmatmul.mubr.f32.gmra.mrb[0].mxu0 %v716
        %v907 = vpop.f32.mrb[0].mxu0
        %v908 = vadd.f32 0.0, %v907
        %v909 = vpop.f32.mrb[0].mxu0
        %910 = vmatprep.mubr.f32.mxu0 0.0
        %911 = vmatmul.mubr.f32.gmra.mrb[0].mxu0 %v719
        %v912 = vpop.f32.mrb[0].mxu0
        %v913 = vadd.f32 0.0, %v912
        %v914 = vpop.f32.mrb[0].mxu0
        %915 = vmatprep.mubr.f32.mxu0 0.0
        %916 = vmatmul.mubr.f32.gmra.mrb[0].mxu0 %v722
        %v917 = vpop.f32.mrb[0].mxu0
        %v918 = vadd.f32 0.0, %v917
        %v919 = vpop.f32.mrb[0].mxu0
        %920 = vmatprep.mubr.f32.mxu0 0.0
        %921 = vmatmul.mubr.f32.gmra.mrb[0].mxu0 %v725
        %v922 = vpop.f32.mrb[0].mxu0
        %v923 = vadd.f32 0.0, %v922
        %v924 = vpop.f32.mrb[0].mxu0
        %925 = vmatprep.mubr.f32.mxu0 0.0
        %926 = vmatmul.mubr.f32.gmra.mrb[0].mxu0 %v728
        %v927 = vpop.f32.mrb[0].mxu0
        %v928 = vadd.f32 0.0, %v927
        %v929 = vpop.f32.mrb[0].mxu0
        %930 = vmatprep.mubr.f32.mxu0 0.0
        %931 = vmatmul.mubr.f32.gmra.mrb[0].mxu0 %v731
        %v932 = vpop.f32.mrb[0].mxu0
        %v933 = vadd.f32 0.0, %v932
        %v934 = vpop.f32.mrb[0].mxu0
        %935 = vmatprep.mubr.f32.mxu0 0.0
        %936 = vmatmul.mubr.f32.gmra.mrb[0].mxu0 %v734
        %v937 = vpop.f32.mrb[0].mxu0
        %v938 = vadd.f32 0.0, %v937
        %v939 = vpop.f32.mrb[0].mxu0
        %940 = vmatprep.mubr.f32.mxu0 0.0
        %941 = vmatmul.mubr.f32.gmra.mrb[0].mxu0 %v737
        %v942 = vpop.f32.mrb[0].mxu0
        %v943 = vadd.f32 0.0, %v942
        %v944 = vpop.f32.mrb[0].mxu0
        %945 = vmatprep.mubr.f32.mxu0 0.0
        %946 = vmatmul.mubr.f32.gmra.mrb[0].mxu0 %v740
        %v947 = vpop.f32.mrb[0].mxu0
        %v948 = vadd.f32 0.0, %v947
        %v949 = vpop.f32.mrb[0].mxu0
        %950 = vmatprep.mubr.f32.mxu0 0.0
        %951 = vmatmul.mubr.f32.gmra.mrb[0].mxu0 %v743
        %v952 = vpop.f32.mrb[0].mxu0
        %v953 = vadd.f32 0.0, %v952
        %v954 = vpop.f32.mrb[0].mxu0
        %955 = vmatprep.mubr.f32.mxu0 0.0
        %956 = vmatmul.mubr.f32.gmra.mrb[0].mxu0 %v746
        %v957 = vpop.f32.mrb[0].mxu0
        %v958 = vadd.f32 0.0, %v957
        %v959 = vpop.f32.mrb[0].mxu0
        %960 = vmatprep.mubr.f32.mxu0 0.0
        %961 = vmatmul.mubr.f32.gmra.mrb[0].mxu0 %v749
        %v962 = vpop.f32.mrb[0].mxu0
        %v963 = vadd.f32 0.0, %v962
        %v964 = vpop.f32.mrb[0].mxu0
        %965 = vmatprep.mubr.f32.mxu0 0.0
        %966 = vmatmul.mubr.f32.gmra.mrb[0].mxu0 %v752
        %v967 = vpop.f32.mrb[0].mxu0
        %v968 = vadd.f32 0.0, %v967
        %v969 = vpop.f32.mrb[0].mxu0
        %970 = vmatprep.mubr.f32.mxu0 0.0
        %971 = vmatmul.mubr.f32.gmra.mrb[0].mxu0 %v755
        %v972 = vpop.f32.mrb[0].mxu0
        %v973 = vadd.f32 0.0, %v972
        %v974 = vpop.f32.mrb[0].mxu0
        %975 = vmatprep.mubr.f32.mxu0 0.0
        %976 = vmatmul.mubr.f32.gmra.mrb[0].mxu0 %v758
        %v977 = vpop.f32.mrb[0].mxu0
        %v978 = vadd.f32 0.0, %v977
        %v979 = vpop.f32.mrb[0].mxu0
        %980 = vmatprep.mubr.f32.mxu0 0.0
        %981 = vmatmul.mubr.f32.gmra.mrb[0].mxu0 %v761
        %v982 = vpop.f32.mrb[0].mxu0
        %v983 = vadd.f32 0.0, %v982
        %v984 = vpop.f32.mrb[0].mxu0
        %985 = vmatprep.mubr.f32.mxu0 0.0
        %986 = vmatmul.mubr.f32.gmra.mrb[0].mxu0 %v764
        %v987 = vpop.f32.mrb[0].mxu0
        %v988 = vadd.f32 0.0, %v987
        %v989 = vpop.f32.mrb[0].mxu0
        %990 = vmatprep.mubr.f32.mxu0 0.0
        %991 = vmatmul.mubr.f32.gmra.mrb[0].mxu0 %v767
        %v992 = vpop.f32.mrb[0].mxu0
        %v993 = vadd.f32 0.0, %v992
        %v994 = vpop.f32.mrb[0].mxu0
        %995 = vmatprep.mubr.f32.mxu0 0.0
        %996 = vmatmul.mubr.f32.gmra.mrb[0].mxu0 %v770
        %v997 = vpop.f32.mrb[0].mxu0
        %v998 = vadd.f32 0.0, %v997
        %v999 = vpop.f32.mrb[0].mxu0
        %1000 = vmatprep.mubr.f32.mxu0 0.0
        %1001 = vmatmul.mubr.f32.gmra.mrb[0].mxu0 %v773
        %v1002 = vpop.f32.mrb[0].mxu0
        %v1003 = vadd.f32 0.0, %v1002
        %v1004 = vpop.f32.mrb[0].mxu0
        %1005 = vmatprep.mubr.f32.mxu0 0.0
        %1006 = vmatmul.mubr.f32.gmra.mrb[0].mxu0 %v776
        %v1007 = vpop.f32.mrb[0].mxu0
        %v1008 = vadd.f32 0.0, %v1007
        %v1009 = vpop.f32.mrb[0].mxu0
        %1010 = vmatprep.mubr.f32.mxu0 0.0
        %1011 = vmatmul.mubr.f32.gmra.mrb[0].mxu0 %v779
        %v1012 = vpop.f32.mrb[0].mxu0
        %v1013 = vadd.f32 0.0, %v1012
        %v1014 = vpop.f32.mrb[0].mxu0
        %1015 = vmatprep.mubr.f32.mxu0 0.0
        %1016 = vmatmul.mubr.f32.gmra.mrb[0].mxu0 %v782
        %v1017 = vpop.f32.mrb[0].mxu0
        %v1018 = vadd.f32 0.0, %v1017
        %v1019 = vpop.f32.mrb[0].mxu0
        %1020 = vmatprep.mubr.f32.mxu0 0.0
        %1021 = vmatmul.mubr.f32.gmra.mrb[0].mxu0 %v785
        %v1022 = vpop.f32.mrb[0].mxu0
        %v1023 = vadd.f32 0.0, %v1022
        %v1024 = vpop.f32.mrb[0].mxu0
        %1025 = vmatprep.mubr.f32.mxu0 0.0
        %1026 = vmatmul.mubr.f32.gmra.mrb[0].mxu0 %v788
        %v1027 = vpop.f32.mrb[0].mxu0
        %v1028 = vadd.f32 0.0, %v1027
        %v1029 = vpop.f32.mrb[0].mxu0
        %1030 = vmatprep.mubr.f32.mxu0 0.0
        %1031 = vmatmul.mubr.f32.gmra.mrb[0].mxu0 %v791
        %v1032 = vpop.f32.mrb[0].mxu0
        %v1033 = vadd.f32 0.0, %v1032
        %v1034 = vpop.f32.mrb[0].mxu0
        %1035 = vmatprep.mubr.f32.mxu0 0.0
        %1036 = vmatmul.mubr.f32.gmra.mrb[0].mxu0 %v794
        %v1037 = vpop.f32.mrb[0].mxu0
        %v1038 = vadd.f32 0.0, %v1037
        %v1039 = vpop.f32.mrb[0].mxu0
        %1040 = vdwg.mxu0
        %v1041 = vld [vmem:[%s191] sm:$0xff]
        %v1042 = vld [vmem:[%s191 + $0x8] sm:$0xff]
        %v1043 = vld [vmem:[%s191 + $0x10] sm:$0xff]
        %v1044 = vld [vmem:[%s191 + $0x18] sm:$0xff]
        %v1045 = vld [vmem:[%s191 + $0x20] sm:$0xff]
        %v1046 = vld [vmem:[%s191 + $0x28] sm:$0xff]
        %v1047 = vld [vmem:[%s191 + $0x30] sm:$0xff]
        %v1048 = vld [vmem:[%s191 + $0x38] sm:$0xff]
        %v1049 = vld [vmem:[%s191 + $0x40] sm:$0xff]
        %v1050 = vld [vmem:[%s191 + $0x48] sm:$0xff]
        %v1051 = vld [vmem:[%s191 + $0x50] sm:$0xff]
        %v1052 = vld [vmem:[%s191 + $0x58] sm:$0xff]
        %v1053 = vld [vmem:[%s191 + $0x60] sm:$0xff]
        %v1054 = vld [vmem:[%s191 + $0x68] sm:$0xff]
        %v1055 = vld [vmem:[%s191 + $0x70] sm:$0xff]
        %v1056 = vld [vmem:[%s191 + $0x78] sm:$0xff]
        %v1057 = vld [vmem:[%s191 + $0x80] sm:$0xff]
        %v1058 = vld [vmem:[%s191 + $0x88] sm:$0xff]
        %v1059 = vld [vmem:[%s191 + $0x90] sm:$0xff]
        %v1060 = vld [vmem:[%s191 + $0x98] sm:$0xff]
        %v1061 = vld [vmem:[%s191 + $0xa0] sm:$0xff]
        %v1062 = vld [vmem:[%s191 + $0xa8] sm:$0xff]
        %v1063 = vld [vmem:[%s191 + $0xb0] sm:$0xff]
        %v1064 = vld [vmem:[%s191 + $0xb8] sm:$0xff]
        %v1065 = vld [vmem:[%s191 + $0xc0] sm:$0xff]
        %v1066 = vld [vmem:[%s191 + $0xc8] sm:$0xff]
        %v1067 = vld [vmem:[%s191 + $0xd0] sm:$0xff]
        %v1068 = vld [vmem:[%s191 + $0xd8] sm:$0xff]
        %v1069 = vld [vmem:[%s191 + $0xe0] sm:$0xff]
        %v1070 = vld [vmem:[%s191 + $0xe8] sm:$0xff]
        %v1071 = vld [vmem:[%s191 + $0xf0] sm:$0xff]
        %v1072 = vld [vmem:[%s191 + $0xf8] sm:$0xff]
        %v1073 = vld [vmem:[%s191 + $0x100] sm:$0xff]
        %v1074 = vld [vmem:[%s191 + $0x108] sm:$0xff]
        %v1075 = vld [vmem:[%s191 + $0x110] sm:$0xff]
        %v1076 = vld [vmem:[%s191 + $0x118] sm:$0xff]
        %v1077 = vadd.f32 %v1041, %v863
        %v1078 = vadd.f32 %v1042, %v868
        %v1079 = vadd.f32 %v1043, %v873
        %v1080 = vadd.f32 %v1044, %v878
        %v1081 = vadd.f32 %v1045, %v883
        %v1082 = vadd.f32 %v1046, %v888
        %v1083 = vadd.f32 %v1047, %v893
        %v1084 = vadd.f32 %v1048, %v898
        %v1085 = vadd.f32 %v1049, %v903
        %v1086 = vadd.f32 %v1050, %v908
        %v1087 = vadd.f32 %v1051, %v913
        %v1088 = vadd.f32 %v1052, %v918
        %v1089 = vadd.f32 %v1053, %v923
        %v1090 = vadd.f32 %v1054, %v928
        %v1091 = vadd.f32 %v1055, %v933
        %v1092 = vadd.f32 %v1056, %v938
        %v1093 = vadd.f32 %v1057, %v943
        %v1094 = vadd.f32 %v1058, %v948
        %v1095 = vadd.f32 %v1059, %v953
        %v1096 = vadd.f32 %v1060, %v958
        %v1097 = vadd.f32 %v1061, %v963
        %v1098 = vadd.f32 %v1062, %v968
        %v1099 = vadd.f32 %v1063, %v973
        %v1100 = vadd.f32 %v1064, %v978
        %v1101 = vadd.f32 %v1065, %v983
        %v1102 = vadd.f32 %v1066, %v988
        %v1103 = vadd.f32 %v1067, %v993
        %v1104 = vadd.f32 %v1068, %v998
        %v1105 = vadd.f32 %v1069, %v1003
        %v1106 = vadd.f32 %v1070, %v1008
        %v1107 = vadd.f32 %v1071, %v1013
        %v1108 = vadd.f32 %v1072, %v1018
        %v1109 = vadd.f32 %v1073, %v1023
        %v1110 = vadd.f32 %v1074, %v1028
        %v1111 = vadd.f32 %v1075, %v1033
        %v1112 = vadd.f32 %v1076, %v1038
        %1113 = vst [vmem:[%s191] sm:$0xff] %v1077
        %1114 = vst [vmem:[%s191 + $0x8] sm:$0xff] %v1078
        %1115 = vst [vmem:[%s191 + $0x10] sm:$0xff] %v1079
        %1116 = vst [vmem:[%s191 + $0x18] sm:$0xff] %v1080
        %1117 = vst [vmem:[%s191 + $0x20] sm:$0xff] %v1081
        %1118 = vst [vmem:[%s191 + $0x28] sm:$0xff] %v1082
        %1119 = vst [vmem:[%s191 + $0x30] sm:$0xff] %v1083
        %1120 = vst [vmem:[%s191 + $0x38] sm:$0xff] %v1084
        %1121 = vst [vmem:[%s191 + $0x40] sm:$0xff] %v1085
        %1122 = vst [vmem:[%s191 + $0x48] sm:$0xff] %v1086
        %1123 = vst [vmem:[%s191 + $0x50] sm:$0xff] %v1087
        %1124 = vst [vmem:[%s191 + $0x58] sm:$0xff] %v1088
        %1125 = vst [vmem:[%s191 + $0x60] sm:$0xff] %v1089
        %1126 = vst [vmem:[%s191 + $0x68] sm:$0xff] %v1090
        %1127 = vst [vmem:[%s191 + $0x70] sm:$0xff] %v1091
        %1128 = vst [vmem:[%s191 + $0x78] sm:$0xff] %v1092
        %1129 = vst [vmem:[%s191 + $0x80] sm:$0xff] %v1093
        %1130 = vst [vmem:[%s191 + $0x88] sm:$0xff] %v1094
        %1131 = vst [vmem:[%s191 + $0x90] sm:$0xff] %v1095
        %1132 = vst [vmem:[%s191 + $0x98] sm:$0xff] %v1096
        %1133 = vst [vmem:[%s191 + $0xa0] sm:$0xff] %v1097
        %1134 = vst [vmem:[%s191 + $0xa8] sm:$0xff] %v1098
        %1135 = vst [vmem:[%s191 + $0xb0] sm:$0xff] %v1099
        %1136 = vst [vmem:[%s191 + $0xb8] sm:$0xff] %v1100
        %1137 = vst [vmem:[%s191 + $0xc0] sm:$0xff] %v1101
        %1138 = vst [vmem:[%s191 + $0xc8] sm:$0xff] %v1102
        %1139 = vst [vmem:[%s191 + $0xd0] sm:$0xff] %v1103
        %1140 = vst [vmem:[%s191 + $0xd8] sm:$0xff] %v1104
        %1141 = vst [vmem:[%s191 + $0xe0] sm:$0xff] %v1105
        %1142 = vst [vmem:[%s191 + $0xe8] sm:$0xff] %v1106
        %1143 = vst [vmem:[%s191 + $0xf0] sm:$0xff] %v1107
        %1144 = vst [vmem:[%s191 + $0xf8] sm:$0xff] %v1108
        %1145 = vst [vmem:[%s191 + $0x100] sm:$0xff] %v1109
        %1146 = vst [vmem:[%s191 + $0x108] sm:$0xff] %v1110
        %1147 = vst [vmem:[%s191 + $0x110] sm:$0xff] %v1111
        %1148 = vst [vmem:[%s191 + $0x118] sm:$0xff] %v1112
        %v1149 = vld [vmem:[%s207 + $0x2] sm:$0xff]
        %v1150 = vld [vmem:[%s207 + $0xa] sm:$0xff]
        %v1151 = vld [vmem:[%s207 + $0x12] sm:$0xff]
        %v1152 = vld [vmem:[%s207 + $0x1a] sm:$0xff]
        %v1153 = vld [vmem:[%s207 + $0x22] sm:$0xff]
        %v1154 = vld [vmem:[%s207 + $0x2a] sm:$0xff]
        %v1155 = vld [vmem:[%s207 + $0x32] sm:$0xff]
        %v1156 = vld [vmem:[%s207 + $0x3a] sm:$0xff]
        %v1157 = vld [vmem:[%s207 + $0x42] sm:$0xff]
        %v1158 = vld [vmem:[%s207 + $0x4a] sm:$0xff]
        %v1159 = vld [vmem:[%s207 + $0x52] sm:$0xff]
        %v1160 = vld [vmem:[%s207 + $0x5a] sm:$0xff]
        %v1161 = vld [vmem:[%s207 + $0x62] sm:$0xff]
        %v1162 = vld [vmem:[%s207 + $0x6a] sm:$0xff]
        %v1163 = vld [vmem:[%s207 + $0x72] sm:$0xff]
        %v1164 = vld [vmem:[%s207 + $0x7a] sm:$0xff]
        %v1165 = vld [vmem:[%s207 + $0x82] sm:$0xff]
        %v1166 = vld [vmem:[%s207 + $0x8a] sm:$0xff]
        %v1167 = vld [vmem:[%s207 + $0x92] sm:$0xff]
        %v1168 = vld [vmem:[%s207 + $0x9a] sm:$0xff]
        %v1169 = vld [vmem:[%s207 + $0xa2] sm:$0xff]
        %v1170 = vld [vmem:[%s207 + $0xaa] sm:$0xff]
        %v1171 = vld [vmem:[%s207 + $0xb2] sm:$0xff]
        %v1172 = vld [vmem:[%s207 + $0xba] sm:$0xff]
        %v1173 = vld [vmem:[%s207 + $0xc2] sm:$0xff]
        %v1174 = vld [vmem:[%s207 + $0xca] sm:$0xff]
        %v1175 = vld [vmem:[%s207 + $0xd2] sm:$0xff]
        %v1176 = vld [vmem:[%s207 + $0xda] sm:$0xff]
        %v1177 = vld [vmem:[%s207 + $0xe2] sm:$0xff]
        %v1178 = vld [vmem:[%s207 + $0xea] sm:$0xff]
        %v1179 = vld [vmem:[%s207 + $0xf2] sm:$0xff]
        %v1180 = vld [vmem:[%s207 + $0xfa] sm:$0xff]
        %v1181 = vld [vmem:[%s207 + $0x102] sm:$0xff]
        %v1182 = vld [vmem:[%s207 + $0x10a] sm:$0xff]
        %v1183 = vld [vmem:[%s207 + $0x112] sm:$0xff]
        %v1184 = vld [vmem:[%s207 + $0x11a] sm:$0xff]
        %s1185 = scalar_lea.vmem %s1, 128
        %v1186 = vld [vmem:[%s1185] sm:$0xff]
        %v1187 = vld [vmem:[%s1185 + $0x8] sm:$0xff]
        %v1188 = vld [vmem:[%s1185 + $0x10] sm:$0xff]
        %v1189 = vld [vmem:[%s1185 + $0x18] sm:$0xff]
        %v1190 = vld [vmem:[%s1185 + $0x20] sm:$0xff]
        %v1191 = vld [vmem:[%s1185 + $0x28] sm:$0xff]
        %v1192 = vld [vmem:[%s1185 + $0x30] sm:$0xff]
        %v1193 = vld [vmem:[%s1185 + $0x38] sm:$0xff]
        %v1195 = vsel %vm253, %v1149, 0
        %v1198 = vsel %vm253, %v1150, 0
        %v1201 = vsel %vm253, %v1151, 0
        %v1204 = vsel %vm253, %v1152, 0
        %v1207 = vsel %vm253, %v1153, 0
        %v1210 = vsel %vm253, %v1154, 0
        %v1213 = vsel %vm253, %v1155, 0
        %v1216 = vsel %vm253, %v1156, 0
        %v1219 = vsel %vm253, %v1157, 0
        %v1222 = vsel %vm253, %v1158, 0
        %v1225 = vsel %vm253, %v1159, 0
        %v1228 = vsel %vm253, %v1160, 0
        %v1231 = vsel %vm253, %v1161, 0
        %v1234 = vsel %vm253, %v1162, 0
        %v1237 = vsel %vm253, %v1163, 0
        %v1240 = vsel %vm253, %v1164, 0
        %v1243 = vsel %vm253, %v1165, 0
        %v1246 = vsel %vm253, %v1166, 0
        %v1249 = vsel %vm253, %v1167, 0
        %v1252 = vsel %vm253, %v1168, 0
        %v1255 = vsel %vm253, %v1169, 0
        %v1258 = vsel %vm253, %v1170, 0
        %v1261 = vsel %vm253, %v1171, 0
        %v1264 = vsel %vm253, %v1172, 0
        %v1267 = vsel %vm253, %v1173, 0
        %v1270 = vsel %vm253, %v1174, 0
        %v1273 = vsel %vm253, %v1175, 0
        %v1276 = vsel %vm253, %v1176, 0
        %v1279 = vsel %vm253, %v1177, 0
        %v1282 = vsel %vm253, %v1178, 0
        %v1285 = vsel %vm253, %v1179, 0
        %v1288 = vsel %vm253, %v1180, 0
        %v1291 = vsel %vm253, %v1181, 0
        %v1294 = vsel %vm253, %v1182, 0
        %v1297 = vsel %vm253, %v1183, 0
        %v1300 = vsel %vm253, %v1184, 0
        %1302 = vmatprep.subr.mxu0 0.0
        %1303 = vmatpush1.msra.mxu0 %v1186
        %1304 = vmatprep.subr.mxu0 0.0
        %1305 = vmatpush1.msra.mxu0 %v1187
        %1306 = vmatprep.subr.mxu0 0.0
        %1307 = vmatpush1.msra.mxu0 %v1188
        %1308 = vmatprep.subr.mxu0 0.0
        %1309 = vmatpush1.msra.mxu0 %v1189
        %1310 = vmatprep.subr.mxu0 0.0
        %1311 = vmatpush1.msra.mxu0 %v1190
        %1312 = vmatprep.subr.mxu0 0.0
        %1313 = vmatpush1.msra.mxu0 %v1191
        %1314 = vmatprep.subr.mxu0 0.0
        %1315 = vmatpush1.msra.mxu0 %v1192
        %1316 = vmatprep.subr.mxu0 0.0
        %1317 = vmatpush1.msra.mxu0 %v1193
        %1318 = vmatprep.subr.mxu0 0.0
        %1319 = vmatpush1.msra.mxu0 0.0
        %1320 = vmatprep.subr.mxu0 0.0
        %1321 = vmatpush1.msra.mxu0 0.0
        %1322 = vmatprep.subr.mxu0 0.0
        %1323 = vmatpush1.msra.mxu0 0.0
        %1324 = vmatprep.subr.mxu0 0.0
        %1325 = vmatpush1.msra.mxu0 0.0
        %1326 = vmatprep.subr.mxu0 0.0
        %1327 = vmatpush1.msra.mxu0 0.0
        %1328 = vmatprep.subr.mxu0 0.0
        %1329 = vmatpush1.msra.mxu0 0.0
        %1330 = vmatprep.subr.mxu0 0.0
        %1331 = vmatpush1.msra.mxu0 0.0
        %1332 = vmatprep.subr.mxu0 0.0
        %1333 = vmatpush1.msra.mxu0 0.0
        %1334 = vmatprep.subr.mxu0 0.0
        %1335 = vmatpush1.msra.mxu0 0.0
        %1336 = vmatprep.subr.mxu0 0.0
        %1337 = vmatpush1.msra.mxu0 0.0
        %1338 = vmatprep.subr.mxu0 0.0
        %1339 = vmatpush1.msra.mxu0 0.0
        %1340 = vmatprep.subr.mxu0 0.0
        %1341 = vmatpush1.msra.mxu0 0.0
        %1342 = vmatprep.subr.mxu0 0.0
        %1343 = vmatpush1.msra.mxu0 0.0
        %1344 = vmatprep.subr.mxu0 0.0
        %1345 = vmatpush1.msra.mxu0 0.0
        %1346 = vmatprep.subr.mxu0 0.0
        %1347 = vmatpush1.msra.mxu0 0.0
        %1348 = vmatprep.subr.mxu0 0.0
        %1349 = vmatpush1.msra.mxu0 0.0
        %1350 = vmatprep.subr.mxu0 0.0
        %1351 = vmatpush1.msra.mxu0 0.0
        %1352 = vmatprep.subr.mxu0 0.0
        %1353 = vmatpush1.msra.mxu0 0.0
        %1354 = vmatprep.subr.mxu0 0.0
        %1355 = vmatpush1.msra.mxu0 0.0
        %1356 = vmatprep.subr.mxu0 0.0
        %1357 = vmatpush1.msra.mxu0 0.0
        %1358 = vmatprep.subr.mxu0 0.0
        %1359 = vmatpush1.msra.mxu0 0.0
        %1360 = vmatprep.subr.mxu0 0.0
        %1361 = vmatpush1.msra.mxu0 0.0
        %1362 = vmatprep.subr.mxu0 0.0
        %1363 = vmatpush1.msra.mxu0 0.0
        %1364 = vmatprep.subr.mxu0 0.0
        %1365 = vmatpush1.msra.mxu0 0.0
        %1366 = vmatprep.mubr.f32.mxu0 0.0
        %1367 = vmatmul.mubr.f32.gmra.mrb[0].mxu0 %v1195
        %v1368 = vpop.f32.mrb[0].mxu0
        %v1369 = vadd.f32 0.0, %v1368
        %v1370 = vpop.f32.mrb[0].mxu0
        %1371 = vmatprep.mubr.f32.mxu0 0.0
        %1372 = vmatmul.mubr.f32.gmra.mrb[0].mxu0 %v1198
        %v1373 = vpop.f32.mrb[0].mxu0
        %v1374 = vadd.f32 0.0, %v1373
        %v1375 = vpop.f32.mrb[0].mxu0
        %1376 = vmatprep.mubr.f32.mxu0 0.0
        %1377 = vmatmul.mubr.f32.gmra.mrb[0].mxu0 %v1201
        %v1378 = vpop.f32.mrb[0].mxu0
        %v1379 = vadd.f32 0.0, %v1378
        %v1380 = vpop.f32.mrb[0].mxu0
        %1381 = vmatprep.mubr.f32.mxu0 0.0
        %1382 = vmatmul.mubr.f32.gmra.mrb[0].mxu0 %v1204
        %v1383 = vpop.f32.mrb[0].mxu0
        %v1384 = vadd.f32 0.0, %v1383
        %v1385 = vpop.f32.mrb[0].mxu0
        %1386 = vmatprep.mubr.f32.mxu0 0.0
        %1387 = vmatmul.mubr.f32.gmra.mrb[0].mxu0 %v1207
        %v1388 = vpop.f32.mrb[0].mxu0
        %v1389 = vadd.f32 0.0, %v1388
        %v1390 = vpop.f32.mrb[0].mxu0
        %1391 = vmatprep.mubr.f32.mxu0 0.0
        %1392 = vmatmul.mubr.f32.gmra.mrb[0].mxu0 %v1210
        %v1393 = vpop.f32.mrb[0].mxu0
        %v1394 = vadd.f32 0.0, %v1393
        %v1395 = vpop.f32.mrb[0].mxu0
        %1396 = vmatprep.mubr.f32.mxu0 0.0
        %1397 = vmatmul.mubr.f32.gmra.mrb[0].mxu0 %v1213
        %v1398 = vpop.f32.mrb[0].mxu0
        %v1399 = vadd.f32 0.0, %v1398
        %v1400 = vpop.f32.mrb[0].mxu0
        %1401 = vmatprep.mubr.f32.mxu0 0.0
        %1402 = vmatmul.mubr.f32.gmra.mrb[0].mxu0 %v1216
        %v1403 = vpop.f32.mrb[0].mxu0
        %v1404 = vadd.f32 0.0, %v1403
        %v1405 = vpop.f32.mrb[0].mxu0
        %1406 = vmatprep.mubr.f32.mxu0 0.0
        %1407 = vmatmul.mubr.f32.gmra.mrb[0].mxu0 %v1219
        %v1408 = vpop.f32.mrb[0].mxu0
        %v1409 = vadd.f32 0.0, %v1408
        %v1410 = vpop.f32.mrb[0].mxu0
        %1411 = vmatprep.mubr.f32.mxu0 0.0
        %1412 = vmatmul.mubr.f32.gmra.mrb[0].mxu0 %v1222
        %v1413 = vpop.f32.mrb[0].mxu0
        %v1414 = vadd.f32 0.0, %v1413
        %v1415 = vpop.f32.mrb[0].mxu0
        %1416 = vmatprep.mubr.f32.mxu0 0.0
        %1417 = vmatmul.mubr.f32.gmra.mrb[0].mxu0 %v1225
        %v1418 = vpop.f32.mrb[0].mxu0
        %v1419 = vadd.f32 0.0, %v1418
        %v1420 = vpop.f32.mrb[0].mxu0
        %1421 = vmatprep.mubr.f32.mxu0 0.0
        %1422 = vmatmul.mubr.f32.gmra.mrb[0].mxu0 %v1228
        %v1423 = vpop.f32.mrb[0].mxu0
        %v1424 = vadd.f32 0.0, %v1423
        %v1425 = vpop.f32.mrb[0].mxu0
        %1426 = vmatprep.mubr.f32.mxu0 0.0
        %1427 = vmatmul.mubr.f32.gmra.mrb[0].mxu0 %v1231
        %v1428 = vpop.f32.mrb[0].mxu0
        %v1429 = vadd.f32 0.0, %v1428
        %v1430 = vpop.f32.mrb[0].mxu0
        %1431 = vmatprep.mubr.f32.mxu0 0.0
        %1432 = vmatmul.mubr.f32.gmra.mrb[0].mxu0 %v1234
        %v1433 = vpop.f32.mrb[0].mxu0
        %v1434 = vadd.f32 0.0, %v1433
        %v1435 = vpop.f32.mrb[0].mxu0
        %1436 = vmatprep.mubr.f32.mxu0 0.0
        %1437 = vmatmul.mubr.f32.gmra.mrb[0].mxu0 %v1237
        %v1438 = vpop.f32.mrb[0].mxu0
        %v1439 = vadd.f32 0.0, %v1438
        %v1440 = vpop.f32.mrb[0].mxu0
        %1441 = vmatprep.mubr.f32.mxu0 0.0
        %1442 = vmatmul.mubr.f32.gmra.mrb[0].mxu0 %v1240
        %v1443 = vpop.f32.mrb[0].mxu0
        %v1444 = vadd.f32 0.0, %v1443
        %v1445 = vpop.f32.mrb[0].mxu0
        %1446 = vmatprep.mubr.f32.mxu0 0.0
        %1447 = vmatmul.mubr.f32.gmra.mrb[0].mxu0 %v1243
        %v1448 = vpop.f32.mrb[0].mxu0
        %v1449 = vadd.f32 0.0, %v1448
        %v1450 = vpop.f32.mrb[0].mxu0
        %1451 = vmatprep.mubr.f32.mxu0 0.0
        %1452 = vmatmul.mubr.f32.gmra.mrb[0].mxu0 %v1246
        %v1453 = vpop.f32.mrb[0].mxu0
        %v1454 = vadd.f32 0.0, %v1453
        %v1455 = vpop.f32.mrb[0].mxu0
        %1456 = vmatprep.mubr.f32.mxu0 0.0
        %1457 = vmatmul.mubr.f32.gmra.mrb[0].mxu0 %v1249
        %v1458 = vpop.f32.mrb[0].mxu0
        %v1459 = vadd.f32 0.0, %v1458
        %v1460 = vpop.f32.mrb[0].mxu0
        %1461 = vmatprep.mubr.f32.mxu0 0.0
        %1462 = vmatmul.mubr.f32.gmra.mrb[0].mxu0 %v1252
        %v1463 = vpop.f32.mrb[0].mxu0
        %v1464 = vadd.f32 0.0, %v1463
        %v1465 = vpop.f32.mrb[0].mxu0
        %1466 = vmatprep.mubr.f32.mxu0 0.0
        %1467 = vmatmul.mubr.f32.gmra.mrb[0].mxu0 %v1255
        %v1468 = vpop.f32.mrb[0].mxu0
        %v1469 = vadd.f32 0.0, %v1468
        %v1470 = vpop.f32.mrb[0].mxu0
        %1471 = vmatprep.mubr.f32.mxu0 0.0
        %1472 = vmatmul.mubr.f32.gmra.mrb[0].mxu0 %v1258
        %v1473 = vpop.f32.mrb[0].mxu0
        %v1474 = vadd.f32 0.0, %v1473
        %v1475 = vpop.f32.mrb[0].mxu0
        %1476 = vmatprep.mubr.f32.mxu0 0.0
        %1477 = vmatmul.mubr.f32.gmra.mrb[0].mxu0 %v1261
        %v1478 = vpop.f32.mrb[0].mxu0
        %v1479 = vadd.f32 0.0, %v1478
        %v1480 = vpop.f32.mrb[0].mxu0
        %1481 = vmatprep.mubr.f32.mxu0 0.0
        %1482 = vmatmul.mubr.f32.gmra.mrb[0].mxu0 %v1264
        %v1483 = vpop.f32.mrb[0].mxu0
        %v1484 = vadd.f32 0.0, %v1483
        %v1485 = vpop.f32.mrb[0].mxu0
        %1486 = vmatprep.mubr.f32.mxu0 0.0
        %1487 = vmatmul.mubr.f32.gmra.mrb[0].mxu0 %v1267
        %v1488 = vpop.f32.mrb[0].mxu0
        %v1489 = vadd.f32 0.0, %v1488
        %v1490 = vpop.f32.mrb[0].mxu0
        %1491 = vmatprep.mubr.f32.mxu0 0.0
        %1492 = vmatmul.mubr.f32.gmra.mrb[0].mxu0 %v1270
        %v1493 = vpop.f32.mrb[0].mxu0
        %v1494 = vadd.f32 0.0, %v1493
        %v1495 = vpop.f32.mrb[0].mxu0
        %1496 = vmatprep.mubr.f32.mxu0 0.0
        %1497 = vmatmul.mubr.f32.gmra.mrb[0].mxu0 %v1273
        %v1498 = vpop.f32.mrb[0].mxu0
        %v1499 = vadd.f32 0.0, %v1498
        %v1500 = vpop.f32.mrb[0].mxu0
        %1501 = vmatprep.mubr.f32.mxu0 0.0
        %1502 = vmatmul.mubr.f32.gmra.mrb[0].mxu0 %v1276
        %v1503 = vpop.f32.mrb[0].mxu0
        %v1504 = vadd.f32 0.0, %v1503
        %v1505 = vpop.f32.mrb[0].mxu0
        %1506 = vmatprep.mubr.f32.mxu0 0.0
        %1507 = vmatmul.mubr.f32.gmra.mrb[0].mxu0 %v1279
        %v1508 = vpop.f32.mrb[0].mxu0
        %v1509 = vadd.f32 0.0, %v1508
        %v1510 = vpop.f32.mrb[0].mxu0
        %1511 = vmatprep.mubr.f32.mxu0 0.0
        %1512 = vmatmul.mubr.f32.gmra.mrb[0].mxu0 %v1282
        %v1513 = vpop.f32.mrb[0].mxu0
        %v1514 = vadd.f32 0.0, %v1513
        %v1515 = vpop.f32.mrb[0].mxu0
        %1516 = vmatprep.mubr.f32.mxu0 0.0
        %1517 = vmatmul.mubr.f32.gmra.mrb[0].mxu0 %v1285
        %v1518 = vpop.f32.mrb[0].mxu0
        %v1519 = vadd.f32 0.0, %v1518
        %v1520 = vpop.f32.mrb[0].mxu0
        %1521 = vmatprep.mubr.f32.mxu0 0.0
        %1522 = vmatmul.mubr.f32.gmra.mrb[0].mxu0 %v1288
        %v1523 = vpop.f32.mrb[0].mxu0
        %v1524 = vadd.f32 0.0, %v1523
        %v1525 = vpop.f32.mrb[0].mxu0
        %1526 = vmatprep.mubr.f32.mxu0 0.0
        %1527 = vmatmul.mubr.f32.gmra.mrb[0].mxu0 %v1291
        %v1528 = vpop.f32.mrb[0].mxu0
        %v1529 = vadd.f32 0.0, %v1528
        %v1530 = vpop.f32.mrb[0].mxu0
        %1531 = vmatprep.mubr.f32.mxu0 0.0
        %1532 = vmatmul.mubr.f32.gmra.mrb[0].mxu0 %v1294
        %v1533 = vpop.f32.mrb[0].mxu0
        %v1534 = vadd.f32 0.0, %v1533
        %v1535 = vpop.f32.mrb[0].mxu0
        %1536 = vmatprep.mubr.f32.mxu0 0.0
        %1537 = vmatmul.mubr.f32.gmra.mrb[0].mxu0 %v1297
        %v1538 = vpop.f32.mrb[0].mxu0
        %v1539 = vadd.f32 0.0, %v1538
        %v1540 = vpop.f32.mrb[0].mxu0
        %1541 = vmatprep.mubr.f32.mxu0 0.0
        %1542 = vmatmul.mubr.f32.gmra.mrb[0].mxu0 %v1300
        %v1543 = vpop.f32.mrb[0].mxu0
        %v1544 = vadd.f32 0.0, %v1543
        %v1545 = vpop.f32.mrb[0].mxu0
        %1546 = vdwg.mxu0
        %v1547 = vld [vmem:[%s191] sm:$0xff]
        %v1548 = vld [vmem:[%s191 + $0x8] sm:$0xff]
        %v1549 = vld [vmem:[%s191 + $0x10] sm:$0xff]
        %v1550 = vld [vmem:[%s191 + $0x18] sm:$0xff]
        %v1551 = vld [vmem:[%s191 + $0x20] sm:$0xff]
        %v1552 = vld [vmem:[%s191 + $0x28] sm:$0xff]
        %v1553 = vld [vmem:[%s191 + $0x30] sm:$0xff]
        %v1554 = vld [vmem:[%s191 + $0x38] sm:$0xff]
        %v1555 = vld [vmem:[%s191 + $0x40] sm:$0xff]
        %v1556 = vld [vmem:[%s191 + $0x48] sm:$0xff]
        %v1557 = vld [vmem:[%s191 + $0x50] sm:$0xff]
        %v1558 = vld [vmem:[%s191 + $0x58] sm:$0xff]
        %v1559 = vld [vmem:[%s191 + $0x60] sm:$0xff]
        %v1560 = vld [vmem:[%s191 + $0x68] sm:$0xff]
        %v1561 = vld [vmem:[%s191 + $0x70] sm:$0xff]
        %v1562 = vld [vmem:[%s191 + $0x78] sm:$0xff]
        %v1563 = vld [vmem:[%s191 + $0x80] sm:$0xff]
        %v1564 = vld [vmem:[%s191 + $0x88] sm:$0xff]
        %v1565 = vld [vmem:[%s191 + $0x90] sm:$0xff]
        %v1566 = vld [vmem:[%s191 + $0x98] sm:$0xff]
        %v1567 = vld [vmem:[%s191 + $0xa0] sm:$0xff]
        %v1568 = vld [vmem:[%s191 + $0xa8] sm:$0xff]
        %v1569 = vld [vmem:[%s191 + $0xb0] sm:$0xff]
        %v1570 = vld [vmem:[%s191 + $0xb8] sm:$0xff]
        %v1571 = vld [vmem:[%s191 + $0xc0] sm:$0xff]
        %v1572 = vld [vmem:[%s191 + $0xc8] sm:$0xff]
        %v1573 = vld [vmem:[%s191 + $0xd0] sm:$0xff]
        %v1574 = vld [vmem:[%s191 + $0xd8] sm:$0xff]
        %v1575 = vld [vmem:[%s191 + $0xe0] sm:$0xff]
        %v1576 = vld [vmem:[%s191 + $0xe8] sm:$0xff]
        %v1577 = vld [vmem:[%s191 + $0xf0] sm:$0xff]
        %v1578 = vld [vmem:[%s191 + $0xf8] sm:$0xff]
        %v1579 = vld [vmem:[%s191 + $0x100] sm:$0xff]
        %v1580 = vld [vmem:[%s191 + $0x108] sm:$0xff]
        %v1581 = vld [vmem:[%s191 + $0x110] sm:$0xff]
        %v1582 = vld [vmem:[%s191 + $0x118] sm:$0xff]
        %v1583 = vadd.f32 %v1547, %v1369
        %v1584 = vadd.f32 %v1548, %v1374
        %v1585 = vadd.f32 %v1549, %v1379
        %v1586 = vadd.f32 %v1550, %v1384
        %v1587 = vadd.f32 %v1551, %v1389
        %v1588 = vadd.f32 %v1552, %v1394
        %v1589 = vadd.f32 %v1553, %v1399
        %v1590 = vadd.f32 %v1554, %v1404
        %v1591 = vadd.f32 %v1555, %v1409
        %v1592 = vadd.f32 %v1556, %v1414
        %v1593 = vadd.f32 %v1557, %v1419
        %v1594 = vadd.f32 %v1558, %v1424
        %v1595 = vadd.f32 %v1559, %v1429
        %v1596 = vadd.f32 %v1560, %v1434
        %v1597 = vadd.f32 %v1561, %v1439
        %v1598 = vadd.f32 %v1562, %v1444
        %v1599 = vadd.f32 %v1563, %v1449
        %v1600 = vadd.f32 %v1564, %v1454
        %v1601 = vadd.f32 %v1565, %v1459
        %v1602 = vadd.f32 %v1566, %v1464
        %v1603 = vadd.f32 %v1567, %v1469
        %v1604 = vadd.f32 %v1568, %v1474
        %v1605 = vadd.f32 %v1569, %v1479
        %v1606 = vadd.f32 %v1570, %v1484
        %v1607 = vadd.f32 %v1571, %v1489
        %v1608 = vadd.f32 %v1572, %v1494
        %v1609 = vadd.f32 %v1573, %v1499
        %v1610 = vadd.f32 %v1574, %v1504
        %v1611 = vadd.f32 %v1575, %v1509
        %v1612 = vadd.f32 %v1576, %v1514
        %v1613 = vadd.f32 %v1577, %v1519
        %v1614 = vadd.f32 %v1578, %v1524
        %v1615 = vadd.f32 %v1579, %v1529
        %v1616 = vadd.f32 %v1580, %v1534
        %v1617 = vadd.f32 %v1581, %v1539
        %v1618 = vadd.f32 %v1582, %v1544
        %1619 = vst [vmem:[%s191] sm:$0xff] %v1583
        %1620 = vst [vmem:[%s191 + $0x8] sm:$0xff] %v1584
        %1621 = vst [vmem:[%s191 + $0x10] sm:$0xff] %v1585
        %1622 = vst [vmem:[%s191 + $0x18] sm:$0xff] %v1586
        %1623 = vst [vmem:[%s191 + $0x20] sm:$0xff] %v1587
        %1624 = vst [vmem:[%s191 + $0x28] sm:$0xff] %v1588
        %1625 = vst [vmem:[%s191 + $0x30] sm:$0xff] %v1589
        %1626 = vst [vmem:[%s191 + $0x38] sm:$0xff] %v1590
        %1627 = vst [vmem:[%s191 + $0x40] sm:$0xff] %v1591
        %1628 = vst [vmem:[%s191 + $0x48] sm:$0xff] %v1592
        %1629 = vst [vmem:[%s191 + $0x50] sm:$0xff] %v1593
        %1630 = vst [vmem:[%s191 + $0x58] sm:$0xff] %v1594
        %1631 = vst [vmem:[%s191 + $0x60] sm:$0xff] %v1595
        %1632 = vst [vmem:[%s191 + $0x68] sm:$0xff] %v1596
        %1633 = vst [vmem:[%s191 + $0x70] sm:$0xff] %v1597
        %1634 = vst [vmem:[%s191 + $0x78] sm:$0xff] %v1598
        %1635 = vst [vmem:[%s191 + $0x80] sm:$0xff] %v1599
        %1636 = vst [vmem:[%s191 + $0x88] sm:$0xff] %v1600
        %1637 = vst [vmem:[%s191 + $0x90] sm:$0xff] %v1601
        %1638 = vst [vmem:[%s191 + $0x98] sm:$0xff] %v1602
        %1639 = vst [vmem:[%s191 + $0xa0] sm:$0xff] %v1603
        %1640 = vst [vmem:[%s191 + $0xa8] sm:$0xff] %v1604
        %1641 = vst [vmem:[%s191 + $0xb0] sm:$0xff] %v1605
        %1642 = vst [vmem:[%s191 + $0xb8] sm:$0xff] %v1606
        %1643 = vst [vmem:[%s191 + $0xc0] sm:$0xff] %v1607
        %1644 = vst [vmem:[%s191 + $0xc8] sm:$0xff] %v1608
        %1645 = vst [vmem:[%s191 + $0xd0] sm:$0xff] %v1609
        %1646 = vst [vmem:[%s191 + $0xd8] sm:$0xff] %v1610
        %1647 = vst [vmem:[%s191 + $0xe0] sm:$0xff] %v1611
        %1648 = vst [vmem:[%s191 + $0xe8] sm:$0xff] %v1612
        %1649 = vst [vmem:[%s191 + $0xf0] sm:$0xff] %v1613
        %1650 = vst [vmem:[%s191 + $0xf8] sm:$0xff] %v1614
        %1651 = vst [vmem:[%s191 + $0x100] sm:$0xff] %v1615
        %1652 = vst [vmem:[%s191 + $0x108] sm:$0xff] %v1616
        %1653 = vst [vmem:[%s191 + $0x110] sm:$0xff] %v1617
        %1654 = vst [vmem:[%s191 + $0x118] sm:$0xff] %v1618
        %v1655 = vld [vmem:[%s207 + $0x12] sm:$0xff]
        %v1656 = vld [vmem:[%s207 + $0x1a] sm:$0xff]
        %v1657 = vld [vmem:[%s207 + $0x22] sm:$0xff]
        %v1658 = vld [vmem:[%s207 + $0x2a] sm:$0xff]
        %v1659 = vld [vmem:[%s207 + $0x32] sm:$0xff]
        %v1660 = vld [vmem:[%s207 + $0x3a] sm:$0xff]
        %v1661 = vld [vmem:[%s207 + $0x42] sm:$0xff]
        %v1662 = vld [vmem:[%s207 + $0x4a] sm:$0xff]
        %v1663 = vld [vmem:[%s207 + $0x52] sm:$0xff]
        %v1664 = vld [vmem:[%s207 + $0x5a] sm:$0xff]
        %v1665 = vld [vmem:[%s207 + $0x62] sm:$0xff]
        %v1666 = vld [vmem:[%s207 + $0x6a] sm:$0xff]
        %v1667 = vld [vmem:[%s207 + $0x72] sm:$0xff]
        %v1668 = vld [vmem:[%s207 + $0x7a] sm:$0xff]
        %v1669 = vld [vmem:[%s207 + $0x82] sm:$0xff]
        %v1670 = vld [vmem:[%s207 + $0x8a] sm:$0xff]
        %v1671 = vld [vmem:[%s207 + $0x92] sm:$0xff]
        %v1672 = vld [vmem:[%s207 + $0x9a] sm:$0xff]
        %v1673 = vld [vmem:[%s207 + $0xa2] sm:$0xff]
        %v1674 = vld [vmem:[%s207 + $0xaa] sm:$0xff]
        %v1675 = vld [vmem:[%s207 + $0xb2] sm:$0xff]
        %v1676 = vld [vmem:[%s207 + $0xba] sm:$0xff]
        %v1677 = vld [vmem:[%s207 + $0xc2] sm:$0xff]
        %v1678 = vld [vmem:[%s207 + $0xca] sm:$0xff]
        %v1679 = vld [vmem:[%s207 + $0xd2] sm:$0xff]
        %v1680 = vld [vmem:[%s207 + $0xda] sm:$0xff]
        %v1681 = vld [vmem:[%s207 + $0xe2] sm:$0xff]
        %v1682 = vld [vmem:[%s207 + $0xea] sm:$0xff]
        %v1683 = vld [vmem:[%s207 + $0xf2] sm:$0xff]
        %v1684 = vld [vmem:[%s207 + $0xfa] sm:$0xff]
        %v1685 = vld [vmem:[%s207 + $0x102] sm:$0xff]
        %v1686 = vld [vmem:[%s207 + $0x10a] sm:$0xff]
        %v1687 = vld [vmem:[%s207 + $0x112] sm:$0xff]
        %v1688 = vld [vmem:[%s207 + $0x11a] sm:$0xff]
        %v1689 = vld [vmem:[%s207 + $0x122] sm:$0xff]
        %v1690 = vld [vmem:[%s207 + $0x12a] sm:$0xff]
        %s1691 = scalar_lea.vmem %s1, 192
        %v1692 = vld [vmem:[%s1691] sm:$0xff]
        %v1693 = vld [vmem:[%s1691 + $0x8] sm:$0xff]
        %v1694 = vld [vmem:[%s1691 + $0x10] sm:$0xff]
        %v1695 = vld [vmem:[%s1691 + $0x18] sm:$0xff]
        %v1696 = vld [vmem:[%s1691 + $0x20] sm:$0xff]
        %v1697 = vld [vmem:[%s1691 + $0x28] sm:$0xff]
        %v1698 = vld [vmem:[%s1691 + $0x30] sm:$0xff]
        %v1699 = vld [vmem:[%s1691 + $0x38] sm:$0xff]
        %v1701 = vsel %vm253, %v1655, 0
        %v1704 = vsel %vm253, %v1656, 0
        %v1707 = vsel %vm253, %v1657, 0
        %v1710 = vsel %vm253, %v1658, 0
        %v1713 = vsel %vm253, %v1659, 0
        %v1716 = vsel %vm253, %v1660, 0
        %v1719 = vsel %vm253, %v1661, 0
        %v1722 = vsel %vm253, %v1662, 0
        %v1725 = vsel %vm253, %v1663, 0
        %v1728 = vsel %vm253, %v1664, 0
        %v1731 = vsel %vm253, %v1665, 0
        %v1734 = vsel %vm253, %v1666, 0
        %v1737 = vsel %vm253, %v1667, 0
        %v1740 = vsel %vm253, %v1668, 0
        %v1743 = vsel %vm253, %v1669, 0
        %v1746 = vsel %vm253, %v1670, 0
        %v1749 = vsel %vm253, %v1671, 0
        %v1752 = vsel %vm253, %v1672, 0
        %v1755 = vsel %vm253, %v1673, 0
        %v1758 = vsel %vm253, %v1674, 0
        %v1761 = vsel %vm253, %v1675, 0
        %v1764 = vsel %vm253, %v1676, 0
        %v1767 = vsel %vm253, %v1677, 0
        %v1770 = vsel %vm253, %v1678, 0
        %v1773 = vsel %vm253, %v1679, 0
        %v1776 = vsel %vm253, %v1680, 0
        %v1779 = vsel %vm253, %v1681, 0
        %v1782 = vsel %vm253, %v1682, 0
        %v1785 = vsel %vm253, %v1683, 0
        %v1788 = vsel %vm253, %v1684, 0
        %v1791 = vsel %vm253, %v1685, 0
        %v1794 = vsel %vm253, %v1686, 0
        %v1797 = vsel %vm253, %v1687, 0
        %v1800 = vsel %vm253, %v1688, 0
        %v1803 = vsel %vm253, %v1689, 0
        %v1806 = vsel %vm253, %v1690, 0
        %1808 = vmatprep.subr.mxu0 0.0
        %1809 = vmatpush1.msra.mxu0 %v1692
        %1810 = vmatprep.subr.mxu0 0.0
        %1811 = vmatpush1.msra.mxu0 %v1693
        %1812 = vmatprep.subr.mxu0 0.0
        %1813 = vmatpush1.msra.mxu0 %v1694
        %1814 = vmatprep.subr.mxu0 0.0
        %1815 = vmatpush1.msra.mxu0 %v1695
        %1816 = vmatprep.subr.mxu0 0.0
        %1817 = vmatpush1.msra.mxu0 %v1696
        %1818 = vmatprep.subr.mxu0 0.0
        %1819 = vmatpush1.msra.mxu0 %v1697
        %1820 = vmatprep.subr.mxu0 0.0
        %1821 = vmatpush1.msra.mxu0 %v1698
        %1822 = vmatprep.subr.mxu0 0.0
        %1823 = vmatpush1.msra.mxu0 %v1699
        %1824 = vmatprep.subr.mxu0 0.0
        %1825 = vmatpush1.msra.mxu0 0.0
        %1826 = vmatprep.subr.mxu0 0.0
        %1827 = vmatpush1.msra.mxu0 0.0
        %1828 = vmatprep.subr.mxu0 0.0
        %1829 = vmatpush1.msra.mxu0 0.0
        %1830 = vmatprep.subr.mxu0 0.0
        %1831 = vmatpush1.msra.mxu0 0.0
        %1832 = vmatprep.subr.mxu0 0.0
        %1833 = vmatpush1.msra.mxu0 0.0
        %1834 = vmatprep.subr.mxu0 0.0
        %1835 = vmatpush1.msra.mxu0 0.0
        %1836 = vmatprep.subr.mxu0 0.0
        %1837 = vmatpush1.msra.mxu0 0.0
        %1838 = vmatprep.subr.mxu0 0.0
        %1839 = vmatpush1.msra.mxu0 0.0
        %1840 = vmatprep.subr.mxu0 0.0
        %1841 = vmatpush1.msra.mxu0 0.0
        %1842 = vmatprep.subr.mxu0 0.0
        %1843 = vmatpush1.msra.mxu0 0.0
        %1844 = vmatprep.subr.mxu0 0.0
        %1845 = vmatpush1.msra.mxu0 0.0
        %1846 = vmatprep.subr.mxu0 0.0
        %1847 = vmatpush1.msra.mxu0 0.0
        %1848 = vmatprep.subr.mxu0 0.0
        %1849 = vmatpush1.msra.mxu0 0.0
        %1850 = vmatprep.subr.mxu0 0.0
        %1851 = vmatpush1.msra.mxu0 0.0
        %1852 = vmatprep.subr.mxu0 0.0
        %1853 = vmatpush1.msra.mxu0 0.0
        %1854 = vmatprep.subr.mxu0 0.0
        %1855 = vmatpush1.msra.mxu0 0.0
        %1856 = vmatprep.subr.mxu0 0.0
        %1857 = vmatpush1.msra.mxu0 0.0
        %1858 = vmatprep.subr.mxu0 0.0
        %1859 = vmatpush1.msra.mxu0 0.0
        %1860 = vmatprep.subr.mxu0 0.0
        %1861 = vmatpush1.msra.mxu0 0.0
        %1862 = vmatprep.subr.mxu0 0.0
        %1863 = vmatpush1.msra.mxu0 0.0
        %1864 = vmatprep.subr.mxu0 0.0
        %1865 = vmatpush1.msra.mxu0 0.0
        %1866 = vmatprep.subr.mxu0 0.0
        %1867 = vmatpush1.msra.mxu0 0.0
        %1868 = vmatprep.subr.mxu0 0.0
        %1869 = vmatpush1.msra.mxu0 0.0
        %1870 = vmatprep.subr.mxu0 0.0
        %1871 = vmatpush1.msra.mxu0 0.0
        %1872 = vmatprep.mubr.f32.mxu0 0.0
        %1873 = vmatmul.mubr.f32.gmra.mrb[0].mxu0 %v1701
        %v1874 = vpop.f32.mrb[0].mxu0
        %v1875 = vadd.f32 0.0, %v1874
        %v1876 = vpop.f32.mrb[0].mxu0
        %1877 = vmatprep.mubr.f32.mxu0 0.0
        %1878 = vmatmul.mubr.f32.gmra.mrb[0].mxu0 %v1704
        %v1879 = vpop.f32.mrb[0].mxu0
        %v1880 = vadd.f32 0.0, %v1879
        %v1881 = vpop.f32.mrb[0].mxu0
        %1882 = vmatprep.mubr.f32.mxu0 0.0
        %1883 = vmatmul.mubr.f32.gmra.mrb[0].mxu0 %v1707
        %v1884 = vpop.f32.mrb[0].mxu0
        %v1885 = vadd.f32 0.0, %v1884
        %v1886 = vpop.f32.mrb[0].mxu0
        %1887 = vmatprep.mubr.f32.mxu0 0.0
        %1888 = vmatmul.mubr.f32.gmra.mrb[0].mxu0 %v1710
        %v1889 = vpop.f32.mrb[0].mxu0
        %v1890 = vadd.f32 0.0, %v1889
        %v1891 = vpop.f32.mrb[0].mxu0
        %1892 = vmatprep.mubr.f32.mxu0 0.0
        %1893 = vmatmul.mubr.f32.gmra.mrb[0].mxu0 %v1713
        %v1894 = vpop.f32.mrb[0].mxu0
        %v1895 = vadd.f32 0.0, %v1894
        %v1896 = vpop.f32.mrb[0].mxu0
        %1897 = vmatprep.mubr.f32.mxu0 0.0
        %1898 = vmatmul.mubr.f32.gmra.mrb[0].mxu0 %v1716
        %v1899 = vpop.f32.mrb[0].mxu0
        %v1900 = vadd.f32 0.0, %v1899
        %v1901 = vpop.f32.mrb[0].mxu0
        %1902 = vmatprep.mubr.f32.mxu0 0.0
        %1903 = vmatmul.mubr.f32.gmra.mrb[0].mxu0 %v1719
        %v1904 = vpop.f32.mrb[0].mxu0
        %v1905 = vadd.f32 0.0, %v1904
        %v1906 = vpop.f32.mrb[0].mxu0
        %1907 = vmatprep.mubr.f32.mxu0 0.0
        %1908 = vmatmul.mubr.f32.gmra.mrb[0].mxu0 %v1722
        %v1909 = vpop.f32.mrb[0].mxu0
        %v1910 = vadd.f32 0.0, %v1909
        %v1911 = vpop.f32.mrb[0].mxu0
        %1912 = vmatprep.mubr.f32.mxu0 0.0
        %1913 = vmatmul.mubr.f32.gmra.mrb[0].mxu0 %v1725
        %v1914 = vpop.f32.mrb[0].mxu0
        %v1915 = vadd.f32 0.0, %v1914
        %v1916 = vpop.f32.mrb[0].mxu0
        %1917 = vmatprep.mubr.f32.mxu0 0.0
        %1918 = vmatmul.mubr.f32.gmra.mrb[0].mxu0 %v1728
        %v1919 = vpop.f32.mrb[0].mxu0
        %v1920 = vadd.f32 0.0, %v1919
        %v1921 = vpop.f32.mrb[0].mxu0
        %1922 = vmatprep.mubr.f32.mxu0 0.0
        %1923 = vmatmul.mubr.f32.gmra.mrb[0].mxu0 %v1731
        %v1924 = vpop.f32.mrb[0].mxu0
        %v1925 = vadd.f32 0.0, %v1924
        %v1926 = vpop.f32.mrb[0].mxu0
        %1927 = vmatprep.mubr.f32.mxu0 0.0
        %1928 = vmatmul.mubr.f32.gmra.mrb[0].mxu0 %v1734
        %v1929 = vpop.f32.mrb[0].mxu0
        %v1930 = vadd.f32 0.0, %v1929
        %v1931 = vpop.f32.mrb[0].mxu0
        %1932 = vmatprep.mubr.f32.mxu0 0.0
        %1933 = vmatmul.mubr.f32.gmra.mrb[0].mxu0 %v1737
        %v1934 = vpop.f32.mrb[0].mxu0
        %v1935 = vadd.f32 0.0, %v1934
        %v1936 = vpop.f32.mrb[0].mxu0
        %1937 = vmatprep.mubr.f32.mxu0 0.0
        %1938 = vmatmul.mubr.f32.gmra.mrb[0].mxu0 %v1740
        %v1939 = vpop.f32.mrb[0].mxu0
        %v1940 = vadd.f32 0.0, %v1939
        %v1941 = vpop.f32.mrb[0].mxu0
        %1942 = vmatprep.mubr.f32.mxu0 0.0
        %1943 = vmatmul.mubr.f32.gmra.mrb[0].mxu0 %v1743
        %v1944 = vpop.f32.mrb[0].mxu0
        %v1945 = vadd.f32 0.0, %v1944
        %v1946 = vpop.f32.mrb[0].mxu0
        %1947 = vmatprep.mubr.f32.mxu0 0.0
        %1948 = vmatmul.mubr.f32.gmra.mrb[0].mxu0 %v1746
        %v1949 = vpop.f32.mrb[0].mxu0
        %v1950 = vadd.f32 0.0, %v1949
        %v1951 = vpop.f32.mrb[0].mxu0
        %1952 = vmatprep.mubr.f32.mxu0 0.0
        %1953 = vmatmul.mubr.f32.gmra.mrb[0].mxu0 %v1749
        %v1954 = vpop.f32.mrb[0].mxu0
        %v1955 = vadd.f32 0.0, %v1954
        %v1956 = vpop.f32.mrb[0].mxu0
        %1957 = vmatprep.mubr.f32.mxu0 0.0
        %1958 = vmatmul.mubr.f32.gmra.mrb[0].mxu0 %v1752
        %v1959 = vpop.f32.mrb[0].mxu0
        %v1960 = vadd.f32 0.0, %v1959
        %v1961 = vpop.f32.mrb[0].mxu0
        %1962 = vmatprep.mubr.f32.mxu0 0.0
        %1963 = vmatmul.mubr.f32.gmra.mrb[0].mxu0 %v1755
        %v1964 = vpop.f32.mrb[0].mxu0
        %v1965 = vadd.f32 0.0, %v1964
        %v1966 = vpop.f32.mrb[0].mxu0
        %1967 = vmatprep.mubr.f32.mxu0 0.0
        %1968 = vmatmul.mubr.f32.gmra.mrb[0].mxu0 %v1758
        %v1969 = vpop.f32.mrb[0].mxu0
        %v1970 = vadd.f32 0.0, %v1969
        %v1971 = vpop.f32.mrb[0].mxu0
        %1972 = vmatprep.mubr.f32.mxu0 0.0
        %1973 = vmatmul.mubr.f32.gmra.mrb[0].mxu0 %v1761
        %v1974 = vpop.f32.mrb[0].mxu0
        %v1975 = vadd.f32 0.0, %v1974
        %v1976 = vpop.f32.mrb[0].mxu0
        %1977 = vmatprep.mubr.f32.mxu0 0.0
        %1978 = vmatmul.mubr.f32.gmra.mrb[0].mxu0 %v1764
        %v1979 = vpop.f32.mrb[0].mxu0
        %v1980 = vadd.f32 0.0, %v1979
        %v1981 = vpop.f32.mrb[0].mxu0
        %1982 = vmatprep.mubr.f32.mxu0 0.0
        %1983 = vmatmul.mubr.f32.gmra.mrb[0].mxu0 %v1767
        %v1984 = vpop.f32.mrb[0].mxu0
        %v1985 = vadd.f32 0.0, %v1984
        %v1986 = vpop.f32.mrb[0].mxu0
        %1987 = vmatprep.mubr.f32.mxu0 0.0
        %1988 = vmatmul.mubr.f32.gmra.mrb[0].mxu0 %v1770
        %v1989 = vpop.f32.mrb[0].mxu0
        %v1990 = vadd.f32 0.0, %v1989
        %v1991 = vpop.f32.mrb[0].mxu0
        %1992 = vmatprep.mubr.f32.mxu0 0.0
        %1993 = vmatmul.mubr.f32.gmra.mrb[0].mxu0 %v1773
        %v1994 = vpop.f32.mrb[0].mxu0
        %v1995 = vadd.f32 0.0, %v1994
        %v1996 = vpop.f32.mrb[0].mxu0
        %1997 = vmatprep.mubr.f32.mxu0 0.0
        %1998 = vmatmul.mubr.f32.gmra.mrb[0].mxu0 %v1776
        %v1999 = vpop.f32.mrb[0].mxu0
        %v2000 = vadd.f32 0.0, %v1999
        %v2001 = vpop.f32.mrb[0].mxu0
        %2002 = vmatprep.mubr.f32.mxu0 0.0
        %2003 = vmatmul.mubr.f32.gmra.mrb[0].mxu0 %v1779
        %v2004 = vpop.f32.mrb[0].mxu0
        %v2005 = vadd.f32 0.0, %v2004
        %v2006 = vpop.f32.mrb[0].mxu0
        %2007 = vmatprep.mubr.f32.mxu0 0.0
        %2008 = vmatmul.mubr.f32.gmra.mrb[0].mxu0 %v1782
        %v2009 = vpop.f32.mrb[0].mxu0
        %v2010 = vadd.f32 0.0, %v2009
        %v2011 = vpop.f32.mrb[0].mxu0
        %2012 = vmatprep.mubr.f32.mxu0 0.0
        %2013 = vmatmul.mubr.f32.gmra.mrb[0].mxu0 %v1785
        %v2014 = vpop.f32.mrb[0].mxu0
        %v2015 = vadd.f32 0.0, %v2014
        %v2016 = vpop.f32.mrb[0].mxu0
        %2017 = vmatprep.mubr.f32.mxu0 0.0
        %2018 = vmatmul.mubr.f32.gmra.mrb[0].mxu0 %v1788
        %v2019 = vpop.f32.mrb[0].mxu0
        %v2020 = vadd.f32 0.0, %v2019
        %v2021 = vpop.f32.mrb[0].mxu0
        %2022 = vmatprep.mubr.f32.mxu0 0.0
        %2023 = vmatmul.mubr.f32.gmra.mrb[0].mxu0 %v1791
        %v2024 = vpop.f32.mrb[0].mxu0
        %v2025 = vadd.f32 0.0, %v2024
        %v2026 = vpop.f32.mrb[0].mxu0
        %2027 = vmatprep.mubr.f32.mxu0 0.0
        %2028 = vmatmul.mubr.f32.gmra.mrb[0].mxu0 %v1794
        %v2029 = vpop.f32.mrb[0].mxu0
        %v2030 = vadd.f32 0.0, %v2029
        %v2031 = vpop.f32.mrb[0].mxu0
        %2032 = vmatprep.mubr.f32.mxu0 0.0
        %2033 = vmatmul.mubr.f32.gmra.mrb[0].mxu0 %v1797
        %v2034 = vpop.f32.mrb[0].mxu0
        %v2035 = vadd.f32 0.0, %v2034
        %v2036 = vpop.f32.mrb[0].mxu0
        %2037 = vmatprep.mubr.f32.mxu0 0.0
        %2038 = vmatmul.mubr.f32.gmra.mrb[0].mxu0 %v1800
        %v2039 = vpop.f32.mrb[0].mxu0
        %v2040 = vadd.f32 0.0, %v2039
        %v2041 = vpop.f32.mrb[0].mxu0
        %2042 = vmatprep.mubr.f32.mxu0 0.0
        %2043 = vmatmul.mubr.f32.gmra.mrb[0].mxu0 %v1803
        %v2044 = vpop.f32.mrb[0].mxu0
        %v2045 = vadd.f32 0.0, %v2044
        %v2046 = vpop.f32.mrb[0].mxu0
        %2047 = vmatprep.mubr.f32.mxu0 0.0
        %2048 = vmatmul.mubr.f32.gmra.mrb[0].mxu0 %v1806
        %v2049 = vpop.f32.mrb[0].mxu0
        %v2050 = vadd.f32 0.0, %v2049
        %v2051 = vpop.f32.mrb[0].mxu0
        %2052 = vdwg.mxu0
        %v2053 = vld [vmem:[%s191] sm:$0xff]
        %v2054 = vld [vmem:[%s191 + $0x8] sm:$0xff]
        %v2055 = vld [vmem:[%s191 + $0x10] sm:$0xff]
        %v2056 = vld [vmem:[%s191 + $0x18] sm:$0xff]
        %v2057 = vld [vmem:[%s191 + $0x20] sm:$0xff]
        %v2058 = vld [vmem:[%s191 + $0x28] sm:$0xff]
        %v2059 = vld [vmem:[%s191 + $0x30] sm:$0xff]
        %v2060 = vld [vmem:[%s191 + $0x38] sm:$0xff]
        %v2061 = vld [vmem:[%s191 + $0x40] sm:$0xff]
        %v2062 = vld [vmem:[%s191 + $0x48] sm:$0xff]
        %v2063 = vld [vmem:[%s191 + $0x50] sm:$0xff]
        %v2064 = vld [vmem:[%s191 + $0x58] sm:$0xff]
        %v2065 = vld [vmem:[%s191 + $0x60] sm:$0xff]
        %v2066 = vld [vmem:[%s191 + $0x68] sm:$0xff]
        %v2067 = vld [vmem:[%s191 + $0x70] sm:$0xff]
        %v2068 = vld [vmem:[%s191 + $0x78] sm:$0xff]
        %v2069 = vld [vmem:[%s191 + $0x80] sm:$0xff]
        %v2070 = vld [vmem:[%s191 + $0x88] sm:$0xff]
        %v2071 = vld [vmem:[%s191 + $0x90] sm:$0xff]
        %v2072 = vld [vmem:[%s191 + $0x98] sm:$0xff]
        %v2073 = vld [vmem:[%s191 + $0xa0] sm:$0xff]
        %v2074 = vld [vmem:[%s191 + $0xa8] sm:$0xff]
        %v2075 = vld [vmem:[%s191 + $0xb0] sm:$0xff]
        %v2076 = vld [vmem:[%s191 + $0xb8] sm:$0xff]
        %v2077 = vld [vmem:[%s191 + $0xc0] sm:$0xff]
        %v2078 = vld [vmem:[%s191 + $0xc8] sm:$0xff]
        %v2079 = vld [vmem:[%s191 + $0xd0] sm:$0xff]
        %v2080 = vld [vmem:[%s191 + $0xd8] sm:$0xff]
        %v2081 = vld [vmem:[%s191 + $0xe0] sm:$0xff]
        %v2082 = vld [vmem:[%s191 + $0xe8] sm:$0xff]
        %v2083 = vld [vmem:[%s191 + $0xf0] sm:$0xff]
        %v2084 = vld [vmem:[%s191 + $0xf8] sm:$0xff]
        %v2085 = vld [vmem:[%s191 + $0x100] sm:$0xff]
        %v2086 = vld [vmem:[%s191 + $0x108] sm:$0xff]
        %v2087 = vld [vmem:[%s191 + $0x110] sm:$0xff]
        %v2088 = vld [vmem:[%s191 + $0x118] sm:$0xff]
        %v2089 = vadd.f32 %v2053, %v1875
        %v2090 = vadd.f32 %v2054, %v1880
        %v2091 = vadd.f32 %v2055, %v1885
        %v2092 = vadd.f32 %v2056, %v1890
        %v2093 = vadd.f32 %v2057, %v1895
        %v2094 = vadd.f32 %v2058, %v1900
        %v2095 = vadd.f32 %v2059, %v1905
        %v2096 = vadd.f32 %v2060, %v1910
        %v2097 = vadd.f32 %v2061, %v1915
        %v2098 = vadd.f32 %v2062, %v1920
        %v2099 = vadd.f32 %v2063, %v1925
        %v2100 = vadd.f32 %v2064, %v1930
        %v2101 = vadd.f32 %v2065, %v1935
        %v2102 = vadd.f32 %v2066, %v1940
        %v2103 = vadd.f32 %v2067, %v1945
        %v2104 = vadd.f32 %v2068, %v1950
        %v2105 = vadd.f32 %v2069, %v1955
        %v2106 = vadd.f32 %v2070, %v1960
        %v2107 = vadd.f32 %v2071, %v1965
        %v2108 = vadd.f32 %v2072, %v1970
        %v2109 = vadd.f32 %v2073, %v1975
        %v2110 = vadd.f32 %v2074, %v1980
        %v2111 = vadd.f32 %v2075, %v1985
        %v2112 = vadd.f32 %v2076, %v1990
        %v2113 = vadd.f32 %v2077, %v1995
        %v2114 = vadd.f32 %v2078, %v2000
        %v2115 = vadd.f32 %v2079, %v2005
        %v2116 = vadd.f32 %v2080, %v2010
        %v2117 = vadd.f32 %v2081, %v2015
        %v2118 = vadd.f32 %v2082, %v2020
        %v2119 = vadd.f32 %v2083, %v2025
        %v2120 = vadd.f32 %v2084, %v2030
        %v2121 = vadd.f32 %v2085, %v2035
        %v2122 = vadd.f32 %v2086, %v2040
        %v2123 = vadd.f32 %v2087, %v2045
        %v2124 = vadd.f32 %v2088, %v2050
        %2125 = vst [vmem:[%s191] sm:$0xff] %v2089
        %2126 = vst [vmem:[%s191 + $0x8] sm:$0xff] %v2090
        %2127 = vst [vmem:[%s191 + $0x10] sm:$0xff] %v2091
        %2128 = vst [vmem:[%s191 + $0x18] sm:$0xff] %v2092
        %2129 = vst [vmem:[%s191 + $0x20] sm:$0xff] %v2093
        %2130 = vst [vmem:[%s191 + $0x28] sm:$0xff] %v2094
        %2131 = vst [vmem:[%s191 + $0x30] sm:$0xff] %v2095
        %2132 = vst [vmem:[%s191 + $0x38] sm:$0xff] %v2096
        %2133 = vst [vmem:[%s191 + $0x40] sm:$0xff] %v2097
        %2134 = vst [vmem:[%s191 + $0x48] sm:$0xff] %v2098
        %2135 = vst [vmem:[%s191 + $0x50] sm:$0xff] %v2099
        %2136 = vst [vmem:[%s191 + $0x58] sm:$0xff] %v2100
        %2137 = vst [vmem:[%s191 + $0x60] sm:$0xff] %v2101
        %2138 = vst [vmem:[%s191 + $0x68] sm:$0xff] %v2102
        %2139 = vst [vmem:[%s191 + $0x70] sm:$0xff] %v2103
        %2140 = vst [vmem:[%s191 + $0x78] sm:$0xff] %v2104
        %2141 = vst [vmem:[%s191 + $0x80] sm:$0xff] %v2105
        %2142 = vst [vmem:[%s191 + $0x88] sm:$0xff] %v2106
        %2143 = vst [vmem:[%s191 + $0x90] sm:$0xff] %v2107
        %2144 = vst [vmem:[%s191 + $0x98] sm:$0xff] %v2108
        %2145 = vst [vmem:[%s191 + $0xa0] sm:$0xff] %v2109
        %2146 = vst [vmem:[%s191 + $0xa8] sm:$0xff] %v2110
        %2147 = vst [vmem:[%s191 + $0xb0] sm:$0xff] %v2111
        %2148 = vst [vmem:[%s191 + $0xb8] sm:$0xff] %v2112
        %2149 = vst [vmem:[%s191 + $0xc0] sm:$0xff] %v2113
        %2150 = vst [vmem:[%s191 + $0xc8] sm:$0xff] %v2114
        %2151 = vst [vmem:[%s191 + $0xd0] sm:$0xff] %v2115
        %2152 = vst [vmem:[%s191 + $0xd8] sm:$0xff] %v2116
        %2153 = vst [vmem:[%s191 + $0xe0] sm:$0xff] %v2117
        %2154 = vst [vmem:[%s191 + $0xe8] sm:$0xff] %v2118
        %2155 = vst [vmem:[%s191 + $0xf0] sm:$0xff] %v2119
        %2156 = vst [vmem:[%s191 + $0xf8] sm:$0xff] %v2120
        %2157 = vst [vmem:[%s191 + $0x100] sm:$0xff] %v2121
        %2158 = vst [vmem:[%s191 + $0x108] sm:$0xff] %v2122
        %2159 = vst [vmem:[%s191 + $0x110] sm:$0xff] %v2123
        %2160 = vst [vmem:[%s191 + $0x118] sm:$0xff] %v2124
        %v2161 = vld [vmem:[%s207 + $0x13] sm:$0xff]
        %v2162 = vld [vmem:[%s207 + $0x1b] sm:$0xff]
        %v2163 = vld [vmem:[%s207 + $0x23] sm:$0xff]
        %v2164 = vld [vmem:[%s207 + $0x2b] sm:$0xff]
        %v2165 = vld [vmem:[%s207 + $0x33] sm:$0xff]
        %v2166 = vld [vmem:[%s207 + $0x3b] sm:$0xff]
        %v2167 = vld [vmem:[%s207 + $0x43] sm:$0xff]
        %v2168 = vld [vmem:[%s207 + $0x4b] sm:$0xff]
        %v2169 = vld [vmem:[%s207 + $0x53] sm:$0xff]
        %v2170 = vld [vmem:[%s207 + $0x5b] sm:$0xff]
        %v2171 = vld [vmem:[%s207 + $0x63] sm:$0xff]
        %v2172 = vld [vmem:[%s207 + $0x6b] sm:$0xff]
        %v2173 = vld [vmem:[%s207 + $0x73] sm:$0xff]
        %v2174 = vld [vmem:[%s207 + $0x7b] sm:$0xff]
        %v2175 = vld [vmem:[%s207 + $0x83] sm:$0xff]
        %v2176 = vld [vmem:[%s207 + $0x8b] sm:$0xff]
        %v2177 = vld [vmem:[%s207 + $0x93] sm:$0xff]
        %v2178 = vld [vmem:[%s207 + $0x9b] sm:$0xff]
        %v2179 = vld [vmem:[%s207 + $0xa3] sm:$0xff]
        %v2180 = vld [vmem:[%s207 + $0xab] sm:$0xff]
        %v2181 = vld [vmem:[%s207 + $0xb3] sm:$0xff]
        %v2182 = vld [vmem:[%s207 + $0xbb] sm:$0xff]
        %v2183 = vld [vmem:[%s207 + $0xc3] sm:$0xff]
        %v2184 = vld [vmem:[%s207 + $0xcb] sm:$0xff]
        %v2185 = vld [vmem:[%s207 + $0xd3] sm:$0xff]
        %v2186 = vld [vmem:[%s207 + $0xdb] sm:$0xff]
        %v2187 = vld [vmem:[%s207 + $0xe3] sm:$0xff]
        %v2188 = vld [vmem:[%s207 + $0xeb] sm:$0xff]
        %v2189 = vld [vmem:[%s207 + $0xf3] sm:$0xff]
        %v2190 = vld [vmem:[%s207 + $0xfb] sm:$0xff]
        %v2191 = vld [vmem:[%s207 + $0x103] sm:$0xff]
        %v2192 = vld [vmem:[%s207 + $0x10b] sm:$0xff]
        %v2193 = vld [vmem:[%s207 + $0x113] sm:$0xff]
        %v2194 = vld [vmem:[%s207 + $0x11b] sm:$0xff]
        %v2195 = vld [vmem:[%s207 + $0x123] sm:$0xff]
        %v2196 = vld [vmem:[%s207 + $0x12b] sm:$0xff]
        %s2197 = scalar_lea.vmem %s1, 256
        %v2198 = vld [vmem:[%s2197] sm:$0xff]
        %v2199 = vld [vmem:[%s2197 + $0x8] sm:$0xff]
        %v2200 = vld [vmem:[%s2197 + $0x10] sm:$0xff]
        %v2201 = vld [vmem:[%s2197 + $0x18] sm:$0xff]
        %v2202 = vld [vmem:[%s2197 + $0x20] sm:$0xff]
        %v2203 = vld [vmem:[%s2197 + $0x28] sm:$0xff]
        %v2204 = vld [vmem:[%s2197 + $0x30] sm:$0xff]
        %v2205 = vld [vmem:[%s2197 + $0x38] sm:$0xff]
        %v2207 = vsel %vm253, %v2161, 0
        %v2210 = vsel %vm253, %v2162, 0
        %v2213 = vsel %vm253, %v2163, 0
        %v2216 = vsel %vm253, %v2164, 0
        %v2219 = vsel %vm253, %v2165, 0
        %v2222 = vsel %vm253, %v2166, 0
        %v2225 = vsel %vm253, %v2167, 0
        %v2228 = vsel %vm253, %v2168, 0
        %v2231 = vsel %vm253, %v2169, 0
        %v2234 = vsel %vm253, %v2170, 0
        %v2237 = vsel %vm253, %v2171, 0
        %v2240 = vsel %vm253, %v2172, 0
        %v2243 = vsel %vm253, %v2173, 0
        %v2246 = vsel %vm253, %v2174, 0
        %v2249 = vsel %vm253, %v2175, 0
        %v2252 = vsel %vm253, %v2176, 0
        %v2255 = vsel %vm253, %v2177, 0
        %v2258 = vsel %vm253, %v2178, 0
        %v2261 = vsel %vm253, %v2179, 0
        %v2264 = vsel %vm253, %v2180, 0
        %v2267 = vsel %vm253, %v2181, 0
        %v2270 = vsel %vm253, %v2182, 0
        %v2273 = vsel %vm253, %v2183, 0
        %v2276 = vsel %vm253, %v2184, 0
        %v2279 = vsel %vm253, %v2185, 0
        %v2282 = vsel %vm253, %v2186, 0
        %v2285 = vsel %vm253, %v2187, 0
        %v2288 = vsel %vm253, %v2188, 0
        %v2291 = vsel %vm253, %v2189, 0
        %v2294 = vsel %vm253, %v2190, 0
        %v2297 = vsel %vm253, %v2191, 0
        %v2300 = vsel %vm253, %v2192, 0
        %v2303 = vsel %vm253, %v2193, 0
        %v2306 = vsel %vm253, %v2194, 0
        %v2309 = vsel %vm253, %v2195, 0
        %v2312 = vsel %vm253, %v2196, 0
        %2314 = vmatprep.subr.mxu0 0.0
        %2315 = vmatpush1.msra.mxu0 %v2198
        %2316 = vmatprep.subr.mxu0 0.0
        %2317 = vmatpush1.msra.mxu0 %v2199
        %2318 = vmatprep.subr.mxu0 0.0
        %2319 = vmatpush1.msra.mxu0 %v2200
        %2320 = vmatprep.subr.mxu0 0.0
        %2321 = vmatpush1.msra.mxu0 %v2201
        %2322 = vmatprep.subr.mxu0 0.0
        %2323 = vmatpush1.msra.mxu0 %v2202
        %2324 = vmatprep.subr.mxu0 0.0
        %2325 = vmatpush1.msra.mxu0 %v2203
        %2326 = vmatprep.subr.mxu0 0.0
        %2327 = vmatpush1.msra.mxu0 %v2204
        %2328 = vmatprep.subr.mxu0 0.0
        %2329 = vmatpush1.msra.mxu0 %v2205
        %2330 = vmatprep.subr.mxu0 0.0
        %2331 = vmatpush1.msra.mxu0 0.0
        %2332 = vmatprep.subr.mxu0 0.0
        %2333 = vmatpush1.msra.mxu0 0.0
        %2334 = vmatprep.subr.mxu0 0.0
        %2335 = vmatpush1.msra.mxu0 0.0
        %2336 = vmatprep.subr.mxu0 0.0
        %2337 = vmatpush1.msra.mxu0 0.0
        %2338 = vmatprep.subr.mxu0 0.0
        %2339 = vmatpush1.msra.mxu0 0.0
        %2340 = vmatprep.subr.mxu0 0.0
        %2341 = vmatpush1.msra.mxu0 0.0
        %2342 = vmatprep.subr.mxu0 0.0
        %2343 = vmatpush1.msra.mxu0 0.0
        %2344 = vmatprep.subr.mxu0 0.0
        %2345 = vmatpush1.msra.mxu0 0.0
        %2346 = vmatprep.subr.mxu0 0.0
        %2347 = vmatpush1.msra.mxu0 0.0
        %2348 = vmatprep.subr.mxu0 0.0
        %2349 = vmatpush1.msra.mxu0 0.0
        %2350 = vmatprep.subr.mxu0 0.0
        %2351 = vmatpush1.msra.mxu0 0.0
        %2352 = vmatprep.subr.mxu0 0.0
        %2353 = vmatpush1.msra.mxu0 0.0
        %2354 = vmatprep.subr.mxu0 0.0
        %2355 = vmatpush1.msra.mxu0 0.0
        %2356 = vmatprep.subr.mxu0 0.0
        %2357 = vmatpush1.msra.mxu0 0.0
        %2358 = vmatprep.subr.mxu0 0.0
        %2359 = vmatpush1.msra.mxu0 0.0
        %2360 = vmatprep.subr.mxu0 0.0
        %2361 = vmatpush1.msra.mxu0 0.0
        %2362 = vmatprep.subr.mxu0 0.0
        %2363 = vmatpush1.msra.mxu0 0.0
        %2364 = vmatprep.subr.mxu0 0.0
        %2365 = vmatpush1.msra.mxu0 0.0
        %2366 = vmatprep.subr.mxu0 0.0
        %2367 = vmatpush1.msra.mxu0 0.0
        %2368 = vmatprep.subr.mxu0 0.0
        %2369 = vmatpush1.msra.mxu0 0.0
        %2370 = vmatprep.subr.mxu0 0.0
        %2371 = vmatpush1.msra.mxu0 0.0
        %2372 = vmatprep.subr.mxu0 0.0
        %2373 = vmatpush1.msra.mxu0 0.0
        %2374 = vmatprep.subr.mxu0 0.0
        %2375 = vmatpush1.msra.mxu0 0.0
        %2376 = vmatprep.subr.mxu0 0.0
        %2377 = vmatpush1.msra.mxu0 0.0
        %2378 = vmatprep.mubr.f32.mxu0 0.0
        %2379 = vmatmul.mubr.f32.gmra.mrb[0].mxu0 %v2207
        %v2380 = vpop.f32.mrb[0].mxu0
        %v2381 = vadd.f32 0.0, %v2380
        %v2382 = vpop.f32.mrb[0].mxu0
        %2383 = vmatprep.mubr.f32.mxu0 0.0
        %2384 = vmatmul.mubr.f32.gmra.mrb[0].mxu0 %v2210
        %v2385 = vpop.f32.mrb[0].mxu0
        %v2386 = vadd.f32 0.0, %v2385
        %v2387 = vpop.f32.mrb[0].mxu0
        %2388 = vmatprep.mubr.f32.mxu0 0.0
        %2389 = vmatmul.mubr.f32.gmra.mrb[0].mxu0 %v2213
        %v2390 = vpop.f32.mrb[0].mxu0
        %v2391 = vadd.f32 0.0, %v2390
        %v2392 = vpop.f32.mrb[0].mxu0
        %2393 = vmatprep.mubr.f32.mxu0 0.0
        %2394 = vmatmul.mubr.f32.gmra.mrb[0].mxu0 %v2216
        %v2395 = vpop.f32.mrb[0].mxu0
        %v2396 = vadd.f32 0.0, %v2395
        %v2397 = vpop.f32.mrb[0].mxu0
        %2398 = vmatprep.mubr.f32.mxu0 0.0
        %2399 = vmatmul.mubr.f32.gmra.mrb[0].mxu0 %v2219
        %v2400 = vpop.f32.mrb[0].mxu0
        %v2401 = vadd.f32 0.0, %v2400
        %v2402 = vpop.f32.mrb[0].mxu0
        %2403 = vmatprep.mubr.f32.mxu0 0.0
        %2404 = vmatmul.mubr.f32.gmra.mrb[0].mxu0 %v2222
        %v2405 = vpop.f32.mrb[0].mxu0
        %v2406 = vadd.f32 0.0, %v2405
        %v2407 = vpop.f32.mrb[0].mxu0
        %2408 = vmatprep.mubr.f32.mxu0 0.0
        %2409 = vmatmul.mubr.f32.gmra.mrb[0].mxu0 %v2225
        %v2410 = vpop.f32.mrb[0].mxu0
        %v2411 = vadd.f32 0.0, %v2410
        %v2412 = vpop.f32.mrb[0].mxu0
        %2413 = vmatprep.mubr.f32.mxu0 0.0
        %2414 = vmatmul.mubr.f32.gmra.mrb[0].mxu0 %v2228
        %v2415 = vpop.f32.mrb[0].mxu0
        %v2416 = vadd.f32 0.0, %v2415
        %v2417 = vpop.f32.mrb[0].mxu0
        %2418 = vmatprep.mubr.f32.mxu0 0.0
        %2419 = vmatmul.mubr.f32.gmra.mrb[0].mxu0 %v2231
        %v2420 = vpop.f32.mrb[0].mxu0
        %v2421 = vadd.f32 0.0, %v2420
        %v2422 = vpop.f32.mrb[0].mxu0
        %2423 = vmatprep.mubr.f32.mxu0 0.0
        %2424 = vmatmul.mubr.f32.gmra.mrb[0].mxu0 %v2234
        %v2425 = vpop.f32.mrb[0].mxu0
        %v2426 = vadd.f32 0.0, %v2425
        %v2427 = vpop.f32.mrb[0].mxu0
        %2428 = vmatprep.mubr.f32.mxu0 0.0
        %2429 = vmatmul.mubr.f32.gmra.mrb[0].mxu0 %v2237
        %v2430 = vpop.f32.mrb[0].mxu0
        %v2431 = vadd.f32 0.0, %v2430
        %v2432 = vpop.f32.mrb[0].mxu0
        %2433 = vmatprep.mubr.f32.mxu0 0.0
        %2434 = vmatmul.mubr.f32.gmra.mrb[0].mxu0 %v2240
        %v2435 = vpop.f32.mrb[0].mxu0
        %v2436 = vadd.f32 0.0, %v2435
        %v2437 = vpop.f32.mrb[0].mxu0
        %2438 = vmatprep.mubr.f32.mxu0 0.0
        %2439 = vmatmul.mubr.f32.gmra.mrb[0].mxu0 %v2243
        %v2440 = vpop.f32.mrb[0].mxu0
        %v2441 = vadd.f32 0.0, %v2440
        %v2442 = vpop.f32.mrb[0].mxu0
        %2443 = vmatprep.mubr.f32.mxu0 0.0
        %2444 = vmatmul.mubr.f32.gmra.mrb[0].mxu0 %v2246
        %v2445 = vpop.f32.mrb[0].mxu0
        %v2446 = vadd.f32 0.0, %v2445
        %v2447 = vpop.f32.mrb[0].mxu0
        %2448 = vmatprep.mubr.f32.mxu0 0.0
        %2449 = vmatmul.mubr.f32.gmra.mrb[0].mxu0 %v2249
        %v2450 = vpop.f32.mrb[0].mxu0
        %v2451 = vadd.f32 0.0, %v2450
        %v2452 = vpop.f32.mrb[0].mxu0
        %2453 = vmatprep.mubr.f32.mxu0 0.0
        %2454 = vmatmul.mubr.f32.gmra.mrb[0].mxu0 %v2252
        %v2455 = vpop.f32.mrb[0].mxu0
        %v2456 = vadd.f32 0.0, %v2455
        %v2457 = vpop.f32.mrb[0].mxu0
        %2458 = vmatprep.mubr.f32.mxu0 0.0
        %2459 = vmatmul.mubr.f32.gmra.mrb[0].mxu0 %v2255
        %v2460 = vpop.f32.mrb[0].mxu0
        %v2461 = vadd.f32 0.0, %v2460
        %v2462 = vpop.f32.mrb[0].mxu0
        %2463 = vmatprep.mubr.f32.mxu0 0.0
        %2464 = vmatmul.mubr.f32.gmra.mrb[0].mxu0 %v2258
        %v2465 = vpop.f32.mrb[0].mxu0
        %v2466 = vadd.f32 0.0, %v2465
        %v2467 = vpop.f32.mrb[0].mxu0
        %2468 = vmatprep.mubr.f32.mxu0 0.0
        %2469 = vmatmul.mubr.f32.gmra.mrb[0].mxu0 %v2261
        %v2470 = vpop.f32.mrb[0].mxu0
        %v2471 = vadd.f32 0.0, %v2470
        %v2472 = vpop.f32.mrb[0].mxu0
        %2473 = vmatprep.mubr.f32.mxu0 0.0
        %2474 = vmatmul.mubr.f32.gmra.mrb[0].mxu0 %v2264
        %v2475 = vpop.f32.mrb[0].mxu0
        %v2476 = vadd.f32 0.0, %v2475
        %v2477 = vpop.f32.mrb[0].mxu0
        %2478 = vmatprep.mubr.f32.mxu0 0.0
        %2479 = vmatmul.mubr.f32.gmra.mrb[0].mxu0 %v2267
        %v2480 = vpop.f32.mrb[0].mxu0
        %v2481 = vadd.f32 0.0, %v2480
        %v2482 = vpop.f32.mrb[0].mxu0
        %2483 = vmatprep.mubr.f32.mxu0 0.0
        %2484 = vmatmul.mubr.f32.gmra.mrb[0].mxu0 %v2270
        %v2485 = vpop.f32.mrb[0].mxu0
        %v2486 = vadd.f32 0.0, %v2485
        %v2487 = vpop.f32.mrb[0].mxu0
        %2488 = vmatprep.mubr.f32.mxu0 0.0
        %2489 = vmatmul.mubr.f32.gmra.mrb[0].mxu0 %v2273
        %v2490 = vpop.f32.mrb[0].mxu0
        %v2491 = vadd.f32 0.0, %v2490
        %v2492 = vpop.f32.mrb[0].mxu0
        %2493 = vmatprep.mubr.f32.mxu0 0.0
        %2494 = vmatmul.mubr.f32.gmra.mrb[0].mxu0 %v2276
        %v2495 = vpop.f32.mrb[0].mxu0
        %v2496 = vadd.f32 0.0, %v2495
        %v2497 = vpop.f32.mrb[0].mxu0
        %2498 = vmatprep.mubr.f32.mxu0 0.0
        %2499 = vmatmul.mubr.f32.gmra.mrb[0].mxu0 %v2279
        %v2500 = vpop.f32.mrb[0].mxu0
        %v2501 = vadd.f32 0.0, %v2500
        %v2502 = vpop.f32.mrb[0].mxu0
        %2503 = vmatprep.mubr.f32.mxu0 0.0
        %2504 = vmatmul.mubr.f32.gmra.mrb[0].mxu0 %v2282
        %v2505 = vpop.f32.mrb[0].mxu0
        %v2506 = vadd.f32 0.0, %v2505
        %v2507 = vpop.f32.mrb[0].mxu0
        %2508 = vmatprep.mubr.f32.mxu0 0.0
        %2509 = vmatmul.mubr.f32.gmra.mrb[0].mxu0 %v2285
        %v2510 = vpop.f32.mrb[0].mxu0
        %v2511 = vadd.f32 0.0, %v2510
        %v2512 = vpop.f32.mrb[0].mxu0
        %2513 = vmatprep.mubr.f32.mxu0 0.0
        %2514 = vmatmul.mubr.f32.gmra.mrb[0].mxu0 %v2288
        %v2515 = vpop.f32.mrb[0].mxu0
        %v2516 = vadd.f32 0.0, %v2515
        %v2517 = vpop.f32.mrb[0].mxu0
        %2518 = vmatprep.mubr.f32.mxu0 0.0
        %2519 = vmatmul.mubr.f32.gmra.mrb[0].mxu0 %v2291
        %v2520 = vpop.f32.mrb[0].mxu0
        %v2521 = vadd.f32 0.0, %v2520
        %v2522 = vpop.f32.mrb[0].mxu0
        %2523 = vmatprep.mubr.f32.mxu0 0.0
        %2524 = vmatmul.mubr.f32.gmra.mrb[0].mxu0 %v2294
        %v2525 = vpop.f32.mrb[0].mxu0
        %v2526 = vadd.f32 0.0, %v2525
        %v2527 = vpop.f32.mrb[0].mxu0
        %2528 = vmatprep.mubr.f32.mxu0 0.0
        %2529 = vmatmul.mubr.f32.gmra.mrb[0].mxu0 %v2297
        %v2530 = vpop.f32.mrb[0].mxu0
        %v2531 = vadd.f32 0.0, %v2530
        %v2532 = vpop.f32.mrb[0].mxu0
        %2533 = vmatprep.mubr.f32.mxu0 0.0
        %2534 = vmatmul.mubr.f32.gmra.mrb[0].mxu0 %v2300
        %v2535 = vpop.f32.mrb[0].mxu0
        %v2536 = vadd.f32 0.0, %v2535
        %v2537 = vpop.f32.mrb[0].mxu0
        %2538 = vmatprep.mubr.f32.mxu0 0.0
        %2539 = vmatmul.mubr.f32.gmra.mrb[0].mxu0 %v2303
        %v2540 = vpop.f32.mrb[0].mxu0
        %v2541 = vadd.f32 0.0, %v2540
        %v2542 = vpop.f32.mrb[0].mxu0
        %2543 = vmatprep.mubr.f32.mxu0 0.0
        %2544 = vmatmul.mubr.f32.gmra.mrb[0].mxu0 %v2306
        %v2545 = vpop.f32.mrb[0].mxu0
        %v2546 = vadd.f32 0.0, %v2545
        %v2547 = vpop.f32.mrb[0].mxu0
        %2548 = vmatprep.mubr.f32.mxu0 0.0
        %2549 = vmatmul.mubr.f32.gmra.mrb[0].mxu0 %v2309
        %v2550 = vpop.f32.mrb[0].mxu0
        %v2551 = vadd.f32 0.0, %v2550
        %v2552 = vpop.f32.mrb[0].mxu0
        %2553 = vmatprep.mubr.f32.mxu0 0.0
        %2554 = vmatmul.mubr.f32.gmra.mrb[0].mxu0 %v2312
        %v2555 = vpop.f32.mrb[0].mxu0
        %v2556 = vadd.f32 0.0, %v2555
        %v2557 = vpop.f32.mrb[0].mxu0
        %2558 = vdwg.mxu0
        %v2559 = vld [vmem:[%s191] sm:$0xff]
        %v2560 = vld [vmem:[%s191 + $0x8] sm:$0xff]
        %v2561 = vld [vmem:[%s191 + $0x10] sm:$0xff]
        %v2562 = vld [vmem:[%s191 + $0x18] sm:$0xff]
        %v2563 = vld [vmem:[%s191 + $0x20] sm:$0xff]
        %v2564 = vld [vmem:[%s191 + $0x28] sm:$0xff]
        %v2565 = vld [vmem:[%s191 + $0x30] sm:$0xff]
        %v2566 = vld [vmem:[%s191 + $0x38] sm:$0xff]
        %v2567 = vld [vmem:[%s191 + $0x40] sm:$0xff]
        %v2568 = vld [vmem:[%s191 + $0x48] sm:$0xff]
        %v2569 = vld [vmem:[%s191 + $0x50] sm:$0xff]
        %v2570 = vld [vmem:[%s191 + $0x58] sm:$0xff]
        %v2571 = vld [vmem:[%s191 + $0x60] sm:$0xff]
        %v2572 = vld [vmem:[%s191 + $0x68] sm:$0xff]
        %v2573 = vld [vmem:[%s191 + $0x70] sm:$0xff]
        %v2574 = vld [vmem:[%s191 + $0x78] sm:$0xff]
        %v2575 = vld [vmem:[%s191 + $0x80] sm:$0xff]
        %v2576 = vld [vmem:[%s191 + $0x88] sm:$0xff]
        %v2577 = vld [vmem:[%s191 + $0x90] sm:$0xff]
        %v2578 = vld [vmem:[%s191 + $0x98] sm:$0xff]
        %v2579 = vld [vmem:[%s191 + $0xa0] sm:$0xff]
        %v2580 = vld [vmem:[%s191 + $0xa8] sm:$0xff]
        %v2581 = vld [vmem:[%s191 + $0xb0] sm:$0xff]
        %v2582 = vld [vmem:[%s191 + $0xb8] sm:$0xff]
        %v2583 = vld [vmem:[%s191 + $0xc0] sm:$0xff]
        %v2584 = vld [vmem:[%s191 + $0xc8] sm:$0xff]
        %v2585 = vld [vmem:[%s191 + $0xd0] sm:$0xff]
        %v2586 = vld [vmem:[%s191 + $0xd8] sm:$0xff]
        %v2587 = vld [vmem:[%s191 + $0xe0] sm:$0xff]
        %v2588 = vld [vmem:[%s191 + $0xe8] sm:$0xff]
        %v2589 = vld [vmem:[%s191 + $0xf0] sm:$0xff]
        %v2590 = vld [vmem:[%s191 + $0xf8] sm:$0xff]
        %v2591 = vld [vmem:[%s191 + $0x100] sm:$0xff]
        %v2592 = vld [vmem:[%s191 + $0x108] sm:$0xff]
        %v2593 = vld [vmem:[%s191 + $0x110] sm:$0xff]
        %v2594 = vld [vmem:[%s191 + $0x118] sm:$0xff]
        %v2595 = vadd.f32 %v2559, %v2381
        %v2596 = vadd.f32 %v2560, %v2386
        %v2597 = vadd.f32 %v2561, %v2391
        %v2598 = vadd.f32 %v2562, %v2396
        %v2599 = vadd.f32 %v2563, %v2401
        %v2600 = vadd.f32 %v2564, %v2406
        %v2601 = vadd.f32 %v2565, %v2411
        %v2602 = vadd.f32 %v2566, %v2416
        %v2603 = vadd.f32 %v2567, %v2421
        %v2604 = vadd.f32 %v2568, %v2426
        %v2605 = vadd.f32 %v2569, %v2431
        %v2606 = vadd.f32 %v2570, %v2436
        %v2607 = vadd.f32 %v2571, %v2441
        %v2608 = vadd.f32 %v2572, %v2446
        %v2609 = vadd.f32 %v2573, %v2451
        %v2610 = vadd.f32 %v2574, %v2456
        %v2611 = vadd.f32 %v2575, %v2461
        %v2612 = vadd.f32 %v2576, %v2466
        %v2613 = vadd.f32 %v2577, %v2471
        %v2614 = vadd.f32 %v2578, %v2476
        %v2615 = vadd.f32 %v2579, %v2481
        %v2616 = vadd.f32 %v2580, %v2486
        %v2617 = vadd.f32 %v2581, %v2491
        %v2618 = vadd.f32 %v2582, %v2496
        %v2619 = vadd.f32 %v2583, %v2501
        %v2620 = vadd.f32 %v2584, %v2506
        %v2621 = vadd.f32 %v2585, %v2511
        %v2622 = vadd.f32 %v2586, %v2516
        %v2623 = vadd.f32 %v2587, %v2521
        %v2624 = vadd.f32 %v2588, %v2526
        %v2625 = vadd.f32 %v2589, %v2531
        %v2626 = vadd.f32 %v2590, %v2536
        %v2627 = vadd.f32 %v2591, %v2541
        %v2628 = vadd.f32 %v2592, %v2546
        %v2629 = vadd.f32 %v2593, %v2551
        %v2630 = vadd.f32 %v2594, %v2556
        %2631 = vst [vmem:[%s191] sm:$0xff] %v2595
        %2632 = vst [vmem:[%s191 + $0x8] sm:$0xff] %v2596
        %2633 = vst [vmem:[%s191 + $0x10] sm:$0xff] %v2597
        %2634 = vst [vmem:[%s191 + $0x18] sm:$0xff] %v2598
        %2635 = vst [vmem:[%s191 + $0x20] sm:$0xff] %v2599
        %2636 = vst [vmem:[%s191 + $0x28] sm:$0xff] %v2600
        %2637 = vst [vmem:[%s191 + $0x30] sm:$0xff] %v2601
        %2638 = vst [vmem:[%s191 + $0x38] sm:$0xff] %v2602
        %2639 = vst [vmem:[%s191 + $0x40] sm:$0xff] %v2603
        %2640 = vst [vmem:[%s191 + $0x48] sm:$0xff] %v2604
        %2641 = vst [vmem:[%s191 + $0x50] sm:$0xff] %v2605
        %2642 = vst [vmem:[%s191 + $0x58] sm:$0xff] %v2606
        %2643 = vst [vmem:[%s191 + $0x60] sm:$0xff] %v2607
        %2644 = vst [vmem:[%s191 + $0x68] sm:$0xff] %v2608
        %2645 = vst [vmem:[%s191 + $0x70] sm:$0xff] %v2609
        %2646 = vst [vmem:[%s191 + $0x78] sm:$0xff] %v2610
        %2647 = vst [vmem:[%s191 + $0x80] sm:$0xff] %v2611
        %2648 = vst [vmem:[%s191 + $0x88] sm:$0xff] %v2612
        %2649 = vst [vmem:[%s191 + $0x90] sm:$0xff] %v2613
        %2650 = vst [vmem:[%s191 + $0x98] sm:$0xff] %v2614
        %2651 = vst [vmem:[%s191 + $0xa0] sm:$0xff] %v2615
        %2652 = vst [vmem:[%s191 + $0xa8] sm:$0xff] %v2616
        %2653 = vst [vmem:[%s191 + $0xb0] sm:$0xff] %v2617
        %2654 = vst [vmem:[%s191 + $0xb8] sm:$0xff] %v2618
        %2655 = vst [vmem:[%s191 + $0xc0] sm:$0xff] %v2619
        %2656 = vst [vmem:[%s191 + $0xc8] sm:$0xff] %v2620
        %2657 = vst [vmem:[%s191 + $0xd0] sm:$0xff] %v2621
        %2658 = vst [vmem:[%s191 + $0xd8] sm:$0xff] %v2622
        %2659 = vst [vmem:[%s191 + $0xe0] sm:$0xff] %v2623
        %2660 = vst [vmem:[%s191 + $0xe8] sm:$0xff] %v2624
        %2661 = vst [vmem:[%s191 + $0xf0] sm:$0xff] %v2625
        %2662 = vst [vmem:[%s191 + $0xf8] sm:$0xff] %v2626
        %2663 = vst [vmem:[%s191 + $0x100] sm:$0xff] %v2627
        %2664 = vst [vmem:[%s191 + $0x108] sm:$0xff] %v2628
        %2665 = vst [vmem:[%s191 + $0x110] sm:$0xff] %v2629
        %2666 = vst [vmem:[%s191 + $0x118] sm:$0xff] %v2630
        %v2667 = vld [vmem:[%s207 + $0x14] sm:$0xff]
        %v2668 = vld [vmem:[%s207 + $0x1c] sm:$0xff]
        %v2669 = vld [vmem:[%s207 + $0x24] sm:$0xff]
        %v2670 = vld [vmem:[%s207 + $0x2c] sm:$0xff]
        %v2671 = vld [vmem:[%s207 + $0x34] sm:$0xff]
        %v2672 = vld [vmem:[%s207 + $0x3c] sm:$0xff]
        %v2673 = vld [vmem:[%s207 + $0x44] sm:$0xff]
        %v2674 = vld [vmem:[%s207 + $0x4c] sm:$0xff]
        %v2675 = vld [vmem:[%s207 + $0x54] sm:$0xff]
        %v2676 = vld [vmem:[%s207 + $0x5c] sm:$0xff]
        %v2677 = vld [vmem:[%s207 + $0x64] sm:$0xff]
        %v2678 = vld [vmem:[%s207 + $0x6c] sm:$0xff]
        %v2679 = vld [vmem:[%s207 + $0x74] sm:$0xff]
        %v2680 = vld [vmem:[%s207 + $0x7c] sm:$0xff]
        %v2681 = vld [vmem:[%s207 + $0x84] sm:$0xff]
        %v2682 = vld [vmem:[%s207 + $0x8c] sm:$0xff]
        %v2683 = vld [vmem:[%s207 + $0x94] sm:$0xff]
        %v2684 = vld [vmem:[%s207 + $0x9c] sm:$0xff]
        %v2685 = vld [vmem:[%s207 + $0xa4] sm:$0xff]
        %v2686 = vld [vmem:[%s207 + $0xac] sm:$0xff]
        %v2687 = vld [vmem:[%s207 + $0xb4] sm:$0xff]
        %v2688 = vld [vmem:[%s207 + $0xbc] sm:$0xff]
        %v2689 = vld [vmem:[%s207 + $0xc4] sm:$0xff]
        %v2690 = vld [vmem:[%s207 + $0xcc] sm:$0xff]
        %v2691 = vld [vmem:[%s207 + $0xd4] sm:$0xff]
        %v2692 = vld [vmem:[%s207 + $0xdc] sm:$0xff]
        %v2693 = vld [vmem:[%s207 + $0xe4] sm:$0xff]
        %v2694 = vld [vmem:[%s207 + $0xec] sm:$0xff]
        %v2695 = vld [vmem:[%s207 + $0xf4] sm:$0xff]
        %v2696 = vld [vmem:[%s207 + $0xfc] sm:$0xff]
        %v2697 = vld [vmem:[%s207 + $0x104] sm:$0xff]
        %v2698 = vld [vmem:[%s207 + $0x10c] sm:$0xff]
        %v2699 = vld [vmem:[%s207 + $0x114] sm:$0xff]
        %v2700 = vld [vmem:[%s207 + $0x11c] sm:$0xff]
        %v2701 = vld [vmem:[%s207 + $0x124] sm:$0xff]
        %v2702 = vld [vmem:[%s207 + $0x12c] sm:$0xff]
        %s2703 = scalar_lea.vmem %s1, 320
        %v2704 = vld [vmem:[%s2703] sm:$0xff]
        %v2705 = vld [vmem:[%s2703 + $0x8] sm:$0xff]
        %v2706 = vld [vmem:[%s2703 + $0x10] sm:$0xff]
        %v2707 = vld [vmem:[%s2703 + $0x18] sm:$0xff]
        %v2708 = vld [vmem:[%s2703 + $0x20] sm:$0xff]
        %v2709 = vld [vmem:[%s2703 + $0x28] sm:$0xff]
        %v2710 = vld [vmem:[%s2703 + $0x30] sm:$0xff]
        %v2711 = vld [vmem:[%s2703 + $0x38] sm:$0xff]
        %v2713 = vsel %vm253, %v2667, 0
        %v2716 = vsel %vm253, %v2668, 0
        %v2719 = vsel %vm253, %v2669, 0
        %v2722 = vsel %vm253, %v2670, 0
        %v2725 = vsel %vm253, %v2671, 0
        %v2728 = vsel %vm253, %v2672, 0
        %v2731 = vsel %vm253, %v2673, 0
        %v2734 = vsel %vm253, %v2674, 0
        %v2737 = vsel %vm253, %v2675, 0
        %v2740 = vsel %vm253, %v2676, 0
        %v2743 = vsel %vm253, %v2677, 0
        %v2746 = vsel %vm253, %v2678, 0
        %v2749 = vsel %vm253, %v2679, 0
        %v2752 = vsel %vm253, %v2680, 0
        %v2755 = vsel %vm253, %v2681, 0
        %v2758 = vsel %vm253, %v2682, 0
        %v2761 = vsel %vm253, %v2683, 0
        %v2764 = vsel %vm253, %v2684, 0
        %v2767 = vsel %vm253, %v2685, 0
        %v2770 = vsel %vm253, %v2686, 0
        %v2773 = vsel %vm253, %v2687, 0
        %v2776 = vsel %vm253, %v2688, 0
        %v2779 = vsel %vm253, %v2689, 0
        %v2782 = vsel %vm253, %v2690, 0
        %v2785 = vsel %vm253, %v2691, 0
        %v2788 = vsel %vm253, %v2692, 0
        %v2791 = vsel %vm253, %v2693, 0
        %v2794 = vsel %vm253, %v2694, 0
        %v2797 = vsel %vm253, %v2695, 0
        %v2800 = vsel %vm253, %v2696, 0
        %v2803 = vsel %vm253, %v2697, 0
        %v2806 = vsel %vm253, %v2698, 0
        %v2809 = vsel %vm253, %v2699, 0
        %v2812 = vsel %vm253, %v2700, 0
        %v2815 = vsel %vm253, %v2701, 0
        %v2818 = vsel %vm253, %v2702, 0
        %2820 = vmatprep.subr.mxu0 0.0
        %2821 = vmatpush1.msra.mxu0 %v2704
        %2822 = vmatprep.subr.mxu0 0.0
        %2823 = vmatpush1.msra.mxu0 %v2705
        %2824 = vmatprep.subr.mxu0 0.0
        %2825 = vmatpush1.msra.mxu0 %v2706
        %2826 = vmatprep.subr.mxu0 0.0
        %2827 = vmatpush1.msra.mxu0 %v2707
        %2828 = vmatprep.subr.mxu0 0.0
        %2829 = vmatpush1.msra.mxu0 %v2708
        %2830 = vmatprep.subr.mxu0 0.0
        %2831 = vmatpush1.msra.mxu0 %v2709
        %2832 = vmatprep.subr.mxu0 0.0
        %2833 = vmatpush1.msra.mxu0 %v2710
        %2834 = vmatprep.subr.mxu0 0.0
        %2835 = vmatpush1.msra.mxu0 %v2711
        %2836 = vmatprep.subr.mxu0 0.0
        %2837 = vmatpush1.msra.mxu0 0.0
        %2838 = vmatprep.subr.mxu0 0.0
        %2839 = vmatpush1.msra.mxu0 0.0
        %2840 = vmatprep.subr.mxu0 0.0
        %2841 = vmatpush1.msra.mxu0 0.0
        %2842 = vmatprep.subr.mxu0 0.0
        %2843 = vmatpush1.msra.mxu0 0.0
        %2844 = vmatprep.subr.mxu0 0.0
        %2845 = vmatpush1.msra.mxu0 0.0
        %2846 = vmatprep.subr.mxu0 0.0
        %2847 = vmatpush1.msra.mxu0 0.0
        %2848 = vmatprep.subr.mxu0 0.0
        %2849 = vmatpush1.msra.mxu0 0.0
        %2850 = vmatprep.subr.mxu0 0.0
        %2851 = vmatpush1.msra.mxu0 0.0
        %2852 = vmatprep.subr.mxu0 0.0
        %2853 = vmatpush1.msra.mxu0 0.0
        %2854 = vmatprep.subr.mxu0 0.0
        %2855 = vmatpush1.msra.mxu0 0.0
        %2856 = vmatprep.subr.mxu0 0.0
        %2857 = vmatpush1.msra.mxu0 0.0
        %2858 = vmatprep.subr.mxu0 0.0
        %2859 = vmatpush1.msra.mxu0 0.0
        %2860 = vmatprep.subr.mxu0 0.0
        %2861 = vmatpush1.msra.mxu0 0.0
        %2862 = vmatprep.subr.mxu0 0.0
        %2863 = vmatpush1.msra.mxu0 0.0
        %2864 = vmatprep.subr.mxu0 0.0
        %2865 = vmatpush1.msra.mxu0 0.0
        %2866 = vmatprep.subr.mxu0 0.0
        %2867 = vmatpush1.msra.mxu0 0.0
        %2868 = vmatprep.subr.mxu0 0.0
        %2869 = vmatpush1.msra.mxu0 0.0
        %2870 = vmatprep.subr.mxu0 0.0
        %2871 = vmatpush1.msra.mxu0 0.0
        %2872 = vmatprep.subr.mxu0 0.0
        %2873 = vmatpush1.msra.mxu0 0.0
        %2874 = vmatprep.subr.mxu0 0.0
        %2875 = vmatpush1.msra.mxu0 0.0
        %2876 = vmatprep.subr.mxu0 0.0
        %2877 = vmatpush1.msra.mxu0 0.0
        %2878 = vmatprep.subr.mxu0 0.0
        %2879 = vmatpush1.msra.mxu0 0.0
        %2880 = vmatprep.subr.mxu0 0.0
        %2881 = vmatpush1.msra.mxu0 0.0
        %2882 = vmatprep.subr.mxu0 0.0
        %2883 = vmatpush1.msra.mxu0 0.0
        %2884 = vmatprep.mubr.f32.mxu0 0.0
        %2885 = vmatmul.mubr.f32.gmra.mrb[0].mxu0 %v2713
        %v2886 = vpop.f32.mrb[0].mxu0
        %v2887 = vadd.f32 0.0, %v2886
        %v2888 = vpop.f32.mrb[0].mxu0
        %2889 = vmatprep.mubr.f32.mxu0 0.0
        %2890 = vmatmul.mubr.f32.gmra.mrb[0].mxu0 %v2716
        %v2891 = vpop.f32.mrb[0].mxu0
        %v2892 = vadd.f32 0.0, %v2891
        %v2893 = vpop.f32.mrb[0].mxu0
        %2894 = vmatprep.mubr.f32.mxu0 0.0
        %2895 = vmatmul.mubr.f32.gmra.mrb[0].mxu0 %v2719
        %v2896 = vpop.f32.mrb[0].mxu0
        %v2897 = vadd.f32 0.0, %v2896
        %v2898 = vpop.f32.mrb[0].mxu0
        %2899 = vmatprep.mubr.f32.mxu0 0.0
        %2900 = vmatmul.mubr.f32.gmra.mrb[0].mxu0 %v2722
        %v2901 = vpop.f32.mrb[0].mxu0
        %v2902 = vadd.f32 0.0, %v2901
        %v2903 = vpop.f32.mrb[0].mxu0
        %2904 = vmatprep.mubr.f32.mxu0 0.0
        %2905 = vmatmul.mubr.f32.gmra.mrb[0].mxu0 %v2725
        %v2906 = vpop.f32.mrb[0].mxu0
        %v2907 = vadd.f32 0.0, %v2906
        %v2908 = vpop.f32.mrb[0].mxu0
        %2909 = vmatprep.mubr.f32.mxu0 0.0
        %2910 = vmatmul.mubr.f32.gmra.mrb[0].mxu0 %v2728
        %v2911 = vpop.f32.mrb[0].mxu0
        %v2912 = vadd.f32 0.0, %v2911
        %v2913 = vpop.f32.mrb[0].mxu0
        %2914 = vmatprep.mubr.f32.mxu0 0.0
        %2915 = vmatmul.mubr.f32.gmra.mrb[0].mxu0 %v2731
        %v2916 = vpop.f32.mrb[0].mxu0
        %v2917 = vadd.f32 0.0, %v2916
        %v2918 = vpop.f32.mrb[0].mxu0
        %2919 = vmatprep.mubr.f32.mxu0 0.0
        %2920 = vmatmul.mubr.f32.gmra.mrb[0].mxu0 %v2734
        %v2921 = vpop.f32.mrb[0].mxu0
        %v2922 = vadd.f32 0.0, %v2921
        %v2923 = vpop.f32.mrb[0].mxu0
        %2924 = vmatprep.mubr.f32.mxu0 0.0
        %2925 = vmatmul.mubr.f32.gmra.mrb[0].mxu0 %v2737
        %v2926 = vpop.f32.mrb[0].mxu0
        %v2927 = vadd.f32 0.0, %v2926
        %v2928 = vpop.f32.mrb[0].mxu0
        %2929 = vmatprep.mubr.f32.mxu0 0.0
        %2930 = vmatmul.mubr.f32.gmra.mrb[0].mxu0 %v2740
        %v2931 = vpop.f32.mrb[0].mxu0
        %v2932 = vadd.f32 0.0, %v2931
        %v2933 = vpop.f32.mrb[0].mxu0
        %2934 = vmatprep.mubr.f32.mxu0 0.0
        %2935 = vmatmul.mubr.f32.gmra.mrb[0].mxu0 %v2743
        %v2936 = vpop.f32.mrb[0].mxu0
        %v2937 = vadd.f32 0.0, %v2936
        %v2938 = vpop.f32.mrb[0].mxu0
        %2939 = vmatprep.mubr.f32.mxu0 0.0
        %2940 = vmatmul.mubr.f32.gmra.mrb[0].mxu0 %v2746
        %v2941 = vpop.f32.mrb[0].mxu0
        %v2942 = vadd.f32 0.0, %v2941
        %v2943 = vpop.f32.mrb[0].mxu0
        %2944 = vmatprep.mubr.f32.mxu0 0.0
        %2945 = vmatmul.mubr.f32.gmra.mrb[0].mxu0 %v2749
        %v2946 = vpop.f32.mrb[0].mxu0
        %v2947 = vadd.f32 0.0, %v2946
        %v2948 = vpop.f32.mrb[0].mxu0
        %2949 = vmatprep.mubr.f32.mxu0 0.0
        %2950 = vmatmul.mubr.f32.gmra.mrb[0].mxu0 %v2752
        %v2951 = vpop.f32.mrb[0].mxu0
        %v2952 = vadd.f32 0.0, %v2951
        %v2953 = vpop.f32.mrb[0].mxu0
        %2954 = vmatprep.mubr.f32.mxu0 0.0
        %2955 = vmatmul.mubr.f32.gmra.mrb[0].mxu0 %v2755
        %v2956 = vpop.f32.mrb[0].mxu0
        %v2957 = vadd.f32 0.0, %v2956
        %v2958 = vpop.f32.mrb[0].mxu0
        %2959 = vmatprep.mubr.f32.mxu0 0.0
        %2960 = vmatmul.mubr.f32.gmra.mrb[0].mxu0 %v2758
        %v2961 = vpop.f32.mrb[0].mxu0
        %v2962 = vadd.f32 0.0, %v2961
        %v2963 = vpop.f32.mrb[0].mxu0
        %2964 = vmatprep.mubr.f32.mxu0 0.0
        %2965 = vmatmul.mubr.f32.gmra.mrb[0].mxu0 %v2761
        %v2966 = vpop.f32.mrb[0].mxu0
        %v2967 = vadd.f32 0.0, %v2966
        %v2968 = vpop.f32.mrb[0].mxu0
        %2969 = vmatprep.mubr.f32.mxu0 0.0
        %2970 = vmatmul.mubr.f32.gmra.mrb[0].mxu0 %v2764
        %v2971 = vpop.f32.mrb[0].mxu0
        %v2972 = vadd.f32 0.0, %v2971
        %v2973 = vpop.f32.mrb[0].mxu0
        %2974 = vmatprep.mubr.f32.mxu0 0.0
        %2975 = vmatmul.mubr.f32.gmra.mrb[0].mxu0 %v2767
        %v2976 = vpop.f32.mrb[0].mxu0
        %v2977 = vadd.f32 0.0, %v2976
        %v2978 = vpop.f32.mrb[0].mxu0
        %2979 = vmatprep.mubr.f32.mxu0 0.0
        %2980 = vmatmul.mubr.f32.gmra.mrb[0].mxu0 %v2770
        %v2981 = vpop.f32.mrb[0].mxu0
        %v2982 = vadd.f32 0.0, %v2981
        %v2983 = vpop.f32.mrb[0].mxu0
        %2984 = vmatprep.mubr.f32.mxu0 0.0
        %2985 = vmatmul.mubr.f32.gmra.mrb[0].mxu0 %v2773
        %v2986 = vpop.f32.mrb[0].mxu0
        %v2987 = vadd.f32 0.0, %v2986
        %v2988 = vpop.f32.mrb[0].mxu0
        %2989 = vmatprep.mubr.f32.mxu0 0.0
        %2990 = vmatmul.mubr.f32.gmra.mrb[0].mxu0 %v2776
        %v2991 = vpop.f32.mrb[0].mxu0
        %v2992 = vadd.f32 0.0, %v2991
        %v2993 = vpop.f32.mrb[0].mxu0
        %2994 = vmatprep.mubr.f32.mxu0 0.0
        %2995 = vmatmul.mubr.f32.gmra.mrb[0].mxu0 %v2779
        %v2996 = vpop.f32.mrb[0].mxu0
        %v2997 = vadd.f32 0.0, %v2996
        %v2998 = vpop.f32.mrb[0].mxu0
        %2999 = vmatprep.mubr.f32.mxu0 0.0
        %3000 = vmatmul.mubr.f32.gmra.mrb[0].mxu0 %v2782
        %v3001 = vpop.f32.mrb[0].mxu0
        %v3002 = vadd.f32 0.0, %v3001
        %v3003 = vpop.f32.mrb[0].mxu0
        %3004 = vmatprep.mubr.f32.mxu0 0.0
        %3005 = vmatmul.mubr.f32.gmra.mrb[0].mxu0 %v2785
        %v3006 = vpop.f32.mrb[0].mxu0
        %v3007 = vadd.f32 0.0, %v3006
        %v3008 = vpop.f32.mrb[0].mxu0
        %3009 = vmatprep.mubr.f32.mxu0 0.0
        %3010 = vmatmul.mubr.f32.gmra.mrb[0].mxu0 %v2788
        %v3011 = vpop.f32.mrb[0].mxu0
        %v3012 = vadd.f32 0.0, %v3011
        %v3013 = vpop.f32.mrb[0].mxu0
        %3014 = vmatprep.mubr.f32.mxu0 0.0
        %3015 = vmatmul.mubr.f32.gmra.mrb[0].mxu0 %v2791
        %v3016 = vpop.f32.mrb[0].mxu0
        %v3017 = vadd.f32 0.0, %v3016
        %v3018 = vpop.f32.mrb[0].mxu0
        %3019 = vmatprep.mubr.f32.mxu0 0.0
        %3020 = vmatmul.mubr.f32.gmra.mrb[0].mxu0 %v2794
        %v3021 = vpop.f32.mrb[0].mxu0
        %v3022 = vadd.f32 0.0, %v3021
        %v3023 = vpop.f32.mrb[0].mxu0
        %3024 = vmatprep.mubr.f32.mxu0 0.0
        %3025 = vmatmul.mubr.f32.gmra.mrb[0].mxu0 %v2797
        %v3026 = vpop.f32.mrb[0].mxu0
        %v3027 = vadd.f32 0.0, %v3026
        %v3028 = vpop.f32.mrb[0].mxu0
        %3029 = vmatprep.mubr.f32.mxu0 0.0
        %3030 = vmatmul.mubr.f32.gmra.mrb[0].mxu0 %v2800
        %v3031 = vpop.f32.mrb[0].mxu0
        %v3032 = vadd.f32 0.0, %v3031
        %v3033 = vpop.f32.mrb[0].mxu0
        %3034 = vmatprep.mubr.f32.mxu0 0.0
        %3035 = vmatmul.mubr.f32.gmra.mrb[0].mxu0 %v2803
        %v3036 = vpop.f32.mrb[0].mxu0
        %v3037 = vadd.f32 0.0, %v3036
        %v3038 = vpop.f32.mrb[0].mxu0
        %3039 = vmatprep.mubr.f32.mxu0 0.0
        %3040 = vmatmul.mubr.f32.gmra.mrb[0].mxu0 %v2806
        %v3041 = vpop.f32.mrb[0].mxu0
        %v3042 = vadd.f32 0.0, %v3041
        %v3043 = vpop.f32.mrb[0].mxu0
        %3044 = vmatprep.mubr.f32.mxu0 0.0
        %3045 = vmatmul.mubr.f32.gmra.mrb[0].mxu0 %v2809
        %v3046 = vpop.f32.mrb[0].mxu0
        %v3047 = vadd.f32 0.0, %v3046
        %v3048 = vpop.f32.mrb[0].mxu0
        %3049 = vmatprep.mubr.f32.mxu0 0.0
        %3050 = vmatmul.mubr.f32.gmra.mrb[0].mxu0 %v2812
        %v3051 = vpop.f32.mrb[0].mxu0
        %v3052 = vadd.f32 0.0, %v3051
        %v3053 = vpop.f32.mrb[0].mxu0
        %3054 = vmatprep.mubr.f32.mxu0 0.0
        %3055 = vmatmul.mubr.f32.gmra.mrb[0].mxu0 %v2815
        %v3056 = vpop.f32.mrb[0].mxu0
        %v3057 = vadd.f32 0.0, %v3056
        %v3058 = vpop.f32.mrb[0].mxu0
        %3059 = vmatprep.mubr.f32.mxu0 0.0
        %3060 = vmatmul.mubr.f32.gmra.mrb[0].mxu0 %v2818
        %v3061 = vpop.f32.mrb[0].mxu0
        %v3062 = vadd.f32 0.0, %v3061
        %v3063 = vpop.f32.mrb[0].mxu0
        %3064 = vdwg.mxu0
        %v3065 = vld [vmem:[%s191] sm:$0xff]
        %v3066 = vld [vmem:[%s191 + $0x8] sm:$0xff]
        %v3067 = vld [vmem:[%s191 + $0x10] sm:$0xff]
        %v3068 = vld [vmem:[%s191 + $0x18] sm:$0xff]
        %v3069 = vld [vmem:[%s191 + $0x20] sm:$0xff]
        %v3070 = vld [vmem:[%s191 + $0x28] sm:$0xff]
        %v3071 = vld [vmem:[%s191 + $0x30] sm:$0xff]
        %v3072 = vld [vmem:[%s191 + $0x38] sm:$0xff]
        %v3073 = vld [vmem:[%s191 + $0x40] sm:$0xff]
        %v3074 = vld [vmem:[%s191 + $0x48] sm:$0xff]
        %v3075 = vld [vmem:[%s191 + $0x50] sm:$0xff]
        %v3076 = vld [vmem:[%s191 + $0x58] sm:$0xff]
        %v3077 = vld [vmem:[%s191 + $0x60] sm:$0xff]
        %v3078 = vld [vmem:[%s191 + $0x68] sm:$0xff]
        %v3079 = vld [vmem:[%s191 + $0x70] sm:$0xff]
        %v3080 = vld [vmem:[%s191 + $0x78] sm:$0xff]
        %v3081 = vld [vmem:[%s191 + $0x80] sm:$0xff]
        %v3082 = vld [vmem:[%s191 + $0x88] sm:$0xff]
        %v3083 = vld [vmem:[%s191 + $0x90] sm:$0xff]
        %v3084 = vld [vmem:[%s191 + $0x98] sm:$0xff]
        %v3085 = vld [vmem:[%s191 + $0xa0] sm:$0xff]
        %v3086 = vld [vmem:[%s191 + $0xa8] sm:$0xff]
        %v3087 = vld [vmem:[%s191 + $0xb0] sm:$0xff]
        %v3088 = vld [vmem:[%s191 + $0xb8] sm:$0xff]
        %v3089 = vld [vmem:[%s191 + $0xc0] sm:$0xff]
        %v3090 = vld [vmem:[%s191 + $0xc8] sm:$0xff]
        %v3091 = vld [vmem:[%s191 + $0xd0] sm:$0xff]
        %v3092 = vld [vmem:[%s191 + $0xd8] sm:$0xff]
        %v3093 = vld [vmem:[%s191 + $0xe0] sm:$0xff]
        %v3094 = vld [vmem:[%s191 + $0xe8] sm:$0xff]
        %v3095 = vld [vmem:[%s191 + $0xf0] sm:$0xff]
        %v3096 = vld [vmem:[%s191 + $0xf8] sm:$0xff]
        %v3097 = vld [vmem:[%s191 + $0x100] sm:$0xff]
        %v3098 = vld [vmem:[%s191 + $0x108] sm:$0xff]
        %v3099 = vld [vmem:[%s191 + $0x110] sm:$0xff]
        %v3100 = vld [vmem:[%s191 + $0x118] sm:$0xff]
        %v3101 = vadd.f32 %v3065, %v2887
        %v3102 = vadd.f32 %v3066, %v2892
        %v3103 = vadd.f32 %v3067, %v2897
        %v3104 = vadd.f32 %v3068, %v2902
        %v3105 = vadd.f32 %v3069, %v2907
        %v3106 = vadd.f32 %v3070, %v2912
        %v3107 = vadd.f32 %v3071, %v2917
        %v3108 = vadd.f32 %v3072, %v2922
        %v3109 = vadd.f32 %v3073, %v2927
        %v3110 = vadd.f32 %v3074, %v2932
        %v3111 = vadd.f32 %v3075, %v2937
        %v3112 = vadd.f32 %v3076, %v2942
        %v3113 = vadd.f32 %v3077, %v2947
        %v3114 = vadd.f32 %v3078, %v2952
        %v3115 = vadd.f32 %v3079, %v2957
        %v3116 = vadd.f32 %v3080, %v2962
        %v3117 = vadd.f32 %v3081, %v2967
        %v3118 = vadd.f32 %v3082, %v2972
        %v3119 = vadd.f32 %v3083, %v2977
        %v3120 = vadd.f32 %v3084, %v2982
        %v3121 = vadd.f32 %v3085, %v2987
        %v3122 = vadd.f32 %v3086, %v2992
        %v3123 = vadd.f32 %v3087, %v2997
        %v3124 = vadd.f32 %v3088, %v3002
        %v3125 = vadd.f32 %v3089, %v3007
        %v3126 = vadd.f32 %v3090, %v3012
        %v3127 = vadd.f32 %v3091, %v3017
        %v3128 = vadd.f32 %v3092, %v3022
        %v3129 = vadd.f32 %v3093, %v3027
        %v3130 = vadd.f32 %v3094, %v3032
        %v3131 = vadd.f32 %v3095, %v3037
        %v3132 = vadd.f32 %v3096, %v3042
        %v3133 = vadd.f32 %v3097, %v3047
        %v3134 = vadd.f32 %v3098, %v3052
        %v3135 = vadd.f32 %v3099, %v3057
        %v3136 = vadd.f32 %v3100, %v3062
        %3137 = vst [vmem:[%s191] sm:$0xff] %v3101
        %3138 = vst [vmem:[%s191 + $0x8] sm:$0xff] %v3102
        %3139 = vst [vmem:[%s191 + $0x10] sm:$0xff] %v3103
        %3140 = vst [vmem:[%s191 + $0x18] sm:$0xff] %v3104
        %3141 = vst [vmem:[%s191 + $0x20] sm:$0xff] %v3105
        %3142 = vst [vmem:[%s191 + $0x28] sm:$0xff] %v3106
        %3143 = vst [vmem:[%s191 + $0x30] sm:$0xff] %v3107
        %3144 = vst [vmem:[%s191 + $0x38] sm:$0xff] %v3108
        %3145 = vst [vmem:[%s191 + $0x40] sm:$0xff] %v3109
        %3146 = vst [vmem:[%s191 + $0x48] sm:$0xff] %v3110
        %3147 = vst [vmem:[%s191 + $0x50] sm:$0xff] %v3111
        %3148 = vst [vmem:[%s191 + $0x58] sm:$0xff] %v3112
        %3149 = vst [vmem:[%s191 + $0x60] sm:$0xff] %v3113
        %3150 = vst [vmem:[%s191 + $0x68] sm:$0xff] %v3114
        %3151 = vst [vmem:[%s191 + $0x70] sm:$0xff] %v3115
        %3152 = vst [vmem:[%s191 + $0x78] sm:$0xff] %v3116
        %3153 = vst [vmem:[%s191 + $0x80] sm:$0xff] %v3117
        %3154 = vst [vmem:[%s191 + $0x88] sm:$0xff] %v3118
        %3155 = vst [vmem:[%s191 + $0x90] sm:$0xff] %v3119
        %3156 = vst [vmem:[%s191 + $0x98] sm:$0xff] %v3120
        %3157 = vst [vmem:[%s191 + $0xa0] sm:$0xff] %v3121
        %3158 = vst [vmem:[%s191 + $0xa8] sm:$0xff] %v3122
        %3159 = vst [vmem:[%s191 + $0xb0] sm:$0xff] %v3123
        %3160 = vst [vmem:[%s191 + $0xb8] sm:$0xff] %v3124
        %3161 = vst [vmem:[%s191 + $0xc0] sm:$0xff] %v3125
        %3162 = vst [vmem:[%s191 + $0xc8] sm:$0xff] %v3126
        %3163 = vst [vmem:[%s191 + $0xd0] sm:$0xff] %v3127
        %3164 = vst [vmem:[%s191 + $0xd8] sm:$0xff] %v3128
        %3165 = vst [vmem:[%s191 + $0xe0] sm:$0xff] %v3129
        %3166 = vst [vmem:[%s191 + $0xe8] sm:$0xff] %v3130
        %3167 = vst [vmem:[%s191 + $0xf0] sm:$0xff] %v3131
        %3168 = vst [vmem:[%s191 + $0xf8] sm:$0xff] %v3132
        %3169 = vst [vmem:[%s191 + $0x100] sm:$0xff] %v3133
        %3170 = vst [vmem:[%s191 + $0x108] sm:$0xff] %v3134
        %3171 = vst [vmem:[%s191 + $0x110] sm:$0xff] %v3135
        %3172 = vst [vmem:[%s191 + $0x118] sm:$0xff] %v3136
        %v3173 = vld [vmem:[%s207 + $0x24] sm:$0xff]
        %v3174 = vld [vmem:[%s207 + $0x2c] sm:$0xff]
        %v3175 = vld [vmem:[%s207 + $0x34] sm:$0xff]
        %v3176 = vld [vmem:[%s207 + $0x3c] sm:$0xff]
        %v3177 = vld [vmem:[%s207 + $0x44] sm:$0xff]
        %v3178 = vld [vmem:[%s207 + $0x4c] sm:$0xff]
        %v3179 = vld [vmem:[%s207 + $0x54] sm:$0xff]
        %v3180 = vld [vmem:[%s207 + $0x5c] sm:$0xff]
        %v3181 = vld [vmem:[%s207 + $0x64] sm:$0xff]
        %v3182 = vld [vmem:[%s207 + $0x6c] sm:$0xff]
        %v3183 = vld [vmem:[%s207 + $0x74] sm:$0xff]
        %v3184 = vld [vmem:[%s207 + $0x7c] sm:$0xff]
        %v3185 = vld [vmem:[%s207 + $0x84] sm:$0xff]
        %v3186 = vld [vmem:[%s207 + $0x8c] sm:$0xff]
        %v3187 = vld [vmem:[%s207 + $0x94] sm:$0xff]
        %v3188 = vld [vmem:[%s207 + $0x9c] sm:$0xff]
        %v3189 = vld [vmem:[%s207 + $0xa4] sm:$0xff]
        %v3190 = vld [vmem:[%s207 + $0xac] sm:$0xff]
        %v3191 = vld [vmem:[%s207 + $0xb4] sm:$0xff]
        %v3192 = vld [vmem:[%s207 + $0xbc] sm:$0xff]
        %v3193 = vld [vmem:[%s207 + $0xc4] sm:$0xff]
        %v3194 = vld [vmem:[%s207 + $0xcc] sm:$0xff]
        %v3195 = vld [vmem:[%s207 + $0xd4] sm:$0xff]
        %v3196 = vld [vmem:[%s207 + $0xdc] sm:$0xff]
        %v3197 = vld [vmem:[%s207 + $0xe4] sm:$0xff]
        %v3198 = vld [vmem:[%s207 + $0xec] sm:$0xff]
        %v3199 = vld [vmem:[%s207 + $0xf4] sm:$0xff]
        %v3200 = vld [vmem:[%s207 + $0xfc] sm:$0xff]
        %v3201 = vld [vmem:[%s207 + $0x104] sm:$0xff]
        %v3202 = vld [vmem:[%s207 + $0x10c] sm:$0xff]
        %v3203 = vld [vmem:[%s207 + $0x114] sm:$0xff]
        %v3204 = vld [vmem:[%s207 + $0x11c] sm:$0xff]
        %v3205 = vld [vmem:[%s207 + $0x124] sm:$0xff]
        %v3206 = vld [vmem:[%s207 + $0x12c] sm:$0xff]
        %v3207 = vld [vmem:[%s207 + $0x134] sm:$0xff]
        %v3208 = vld [vmem:[%s207 + $0x13c] sm:$0xff]
        %s3209 = scalar_lea.vmem %s1, 384
        %v3210 = vld [vmem:[%s3209] sm:$0xff]
        %v3211 = vld [vmem:[%s3209 + $0x8] sm:$0xff]
        %v3212 = vld [vmem:[%s3209 + $0x10] sm:$0xff]
        %v3213 = vld [vmem:[%s3209 + $0x18] sm:$0xff]
        %v3214 = vld [vmem:[%s3209 + $0x20] sm:$0xff]
        %v3215 = vld [vmem:[%s3209 + $0x28] sm:$0xff]
        %v3216 = vld [vmem:[%s3209 + $0x30] sm:$0xff]
        %v3217 = vld [vmem:[%s3209 + $0x38] sm:$0xff]
        %v3219 = vsel %vm253, %v3173, 0
        %v3222 = vsel %vm253, %v3174, 0
        %v3225 = vsel %vm253, %v3175, 0
        %v3228 = vsel %vm253, %v3176, 0
        %v3231 = vsel %vm253, %v3177, 0
        %v3234 = vsel %vm253, %v3178, 0
        %v3237 = vsel %vm253, %v3179, 0
        %v3240 = vsel %vm253, %v3180, 0
        %v3243 = vsel %vm253, %v3181, 0
        %v3246 = vsel %vm253, %v3182, 0
        %v3249 = vsel %vm253, %v3183, 0
        %v3252 = vsel %vm253, %v3184, 0
        %v3255 = vsel %vm253, %v3185, 0
        %v3258 = vsel %vm253, %v3186, 0
        %v3261 = vsel %vm253, %v3187, 0
        %v3264 = vsel %vm253, %v3188, 0
        %v3267 = vsel %vm253, %v3189, 0
        %v3270 = vsel %vm253, %v3190, 0
        %v3273 = vsel %vm253, %v3191, 0
        %v3276 = vsel %vm253, %v3192, 0
        %v3279 = vsel %vm253, %v3193, 0
        %v3282 = vsel %vm253, %v3194, 0
        %v3285 = vsel %vm253, %v3195, 0
        %v3288 = vsel %vm253, %v3196, 0
        %v3291 = vsel %vm253, %v3197, 0
        %v3294 = vsel %vm253, %v3198, 0
        %v3297 = vsel %vm253, %v3199, 0
        %v3300 = vsel %vm253, %v3200, 0
        %v3303 = vsel %vm253, %v3201, 0
        %v3306 = vsel %vm253, %v3202, 0
        %v3309 = vsel %vm253, %v3203, 0
        %v3312 = vsel %vm253, %v3204, 0
        %v3315 = vsel %vm253, %v3205, 0
        %v3318 = vsel %vm253, %v3206, 0
        %v3321 = vsel %vm253, %v3207, 0
        %v3324 = vsel %vm253, %v3208, 0
        %3326 = vmatprep.subr.mxu0 0.0
        %3327 = vmatpush1.msra.mxu0 %v3210
        %3328 = vmatprep.subr.mxu0 0.0
        %3329 = vmatpush1.msra.mxu0 %v3211
        %3330 = vmatprep.subr.mxu0 0.0
        %3331 = vmatpush1.msra.mxu0 %v3212
        %3332 = vmatprep.subr.mxu0 0.0
        %3333 = vmatpush1.msra.mxu0 %v3213
        %3334 = vmatprep.subr.mxu0 0.0
        %3335 = vmatpush1.msra.mxu0 %v3214
        %3336 = vmatprep.subr.mxu0 0.0
        %3337 = vmatpush1.msra.mxu0 %v3215
        %3338 = vmatprep.subr.mxu0 0.0
        %3339 = vmatpush1.msra.mxu0 %v3216
        %3340 = vmatprep.subr.mxu0 0.0
        %3341 = vmatpush1.msra.mxu0 %v3217
        %3342 = vmatprep.subr.mxu0 0.0
        %3343 = vmatpush1.msra.mxu0 0.0
        %3344 = vmatprep.subr.mxu0 0.0
        %3345 = vmatpush1.msra.mxu0 0.0
        %3346 = vmatprep.subr.mxu0 0.0
        %3347 = vmatpush1.msra.mxu0 0.0
        %3348 = vmatprep.subr.mxu0 0.0
        %3349 = vmatpush1.msra.mxu0 0.0
        %3350 = vmatprep.subr.mxu0 0.0
        %3351 = vmatpush1.msra.mxu0 0.0
        %3352 = vmatprep.subr.mxu0 0.0
        %3353 = vmatpush1.msra.mxu0 0.0
        %3354 = vmatprep.subr.mxu0 0.0
        %3355 = vmatpush1.msra.mxu0 0.0
        %3356 = vmatprep.subr.mxu0 0.0
        %3357 = vmatpush1.msra.mxu0 0.0
        %3358 = vmatprep.subr.mxu0 0.0
        %3359 = vmatpush1.msra.mxu0 0.0
        %3360 = vmatprep.subr.mxu0 0.0
        %3361 = vmatpush1.msra.mxu0 0.0
        %3362 = vmatprep.subr.mxu0 0.0
        %3363 = vmatpush1.msra.mxu0 0.0
        %3364 = vmatprep.subr.mxu0 0.0
        %3365 = vmatpush1.msra.mxu0 0.0
        %3366 = vmatprep.subr.mxu0 0.0
        %3367 = vmatpush1.msra.mxu0 0.0
        %3368 = vmatprep.subr.mxu0 0.0
        %3369 = vmatpush1.msra.mxu0 0.0
        %3370 = vmatprep.subr.mxu0 0.0
        %3371 = vmatpush1.msra.mxu0 0.0
        %3372 = vmatprep.subr.mxu0 0.0
        %3373 = vmatpush1.msra.mxu0 0.0
        %3374 = vmatprep.subr.mxu0 0.0
        %3375 = vmatpush1.msra.mxu0 0.0
        %3376 = vmatprep.subr.mxu0 0.0
        %3377 = vmatpush1.msra.mxu0 0.0
        %3378 = vmatprep.subr.mxu0 0.0
        %3379 = vmatpush1.msra.mxu0 0.0
        %3380 = vmatprep.subr.mxu0 0.0
        %3381 = vmatpush1.msra.mxu0 0.0
        %3382 = vmatprep.subr.mxu0 0.0
        %3383 = vmatpush1.msra.mxu0 0.0
        %3384 = vmatprep.subr.mxu0 0.0
        %3385 = vmatpush1.msra.mxu0 0.0
        %3386 = vmatprep.subr.mxu0 0.0
        %3387 = vmatpush1.msra.mxu0 0.0
        %3388 = vmatprep.subr.mxu0 0.0
        %3389 = vmatpush1.msra.mxu0 0.0
        %3390 = vmatprep.mubr.f32.mxu0 0.0
        %3391 = vmatmul.mubr.f32.gmra.mrb[0].mxu0 %v3219
        %v3392 = vpop.f32.mrb[0].mxu0
        %v3393 = vadd.f32 0.0, %v3392
        %v3394 = vpop.f32.mrb[0].mxu0
        %3395 = vmatprep.mubr.f32.mxu0 0.0
        %3396 = vmatmul.mubr.f32.gmra.mrb[0].mxu0 %v3222
        %v3397 = vpop.f32.mrb[0].mxu0
        %v3398 = vadd.f32 0.0, %v3397
        %v3399 = vpop.f32.mrb[0].mxu0
        %3400 = vmatprep.mubr.f32.mxu0 0.0
        %3401 = vmatmul.mubr.f32.gmra.mrb[0].mxu0 %v3225
        %v3402 = vpop.f32.mrb[0].mxu0
        %v3403 = vadd.f32 0.0, %v3402
        %v3404 = vpop.f32.mrb[0].mxu0
        %3405 = vmatprep.mubr.f32.mxu0 0.0
        %3406 = vmatmul.mubr.f32.gmra.mrb[0].mxu0 %v3228
        %v3407 = vpop.f32.mrb[0].mxu0
        %v3408 = vadd.f32 0.0, %v3407
        %v3409 = vpop.f32.mrb[0].mxu0
        %3410 = vmatprep.mubr.f32.mxu0 0.0
        %3411 = vmatmul.mubr.f32.gmra.mrb[0].mxu0 %v3231
        %v3412 = vpop.f32.mrb[0].mxu0
        %v3413 = vadd.f32 0.0, %v3412
        %v3414 = vpop.f32.mrb[0].mxu0
        %3415 = vmatprep.mubr.f32.mxu0 0.0
        %3416 = vmatmul.mubr.f32.gmra.mrb[0].mxu0 %v3234
        %v3417 = vpop.f32.mrb[0].mxu0
        %v3418 = vadd.f32 0.0, %v3417
        %v3419 = vpop.f32.mrb[0].mxu0
        %3420 = vmatprep.mubr.f32.mxu0 0.0
        %3421 = vmatmul.mubr.f32.gmra.mrb[0].mxu0 %v3237
        %v3422 = vpop.f32.mrb[0].mxu0
        %v3423 = vadd.f32 0.0, %v3422
        %v3424 = vpop.f32.mrb[0].mxu0
        %3425 = vmatprep.mubr.f32.mxu0 0.0
        %3426 = vmatmul.mubr.f32.gmra.mrb[0].mxu0 %v3240
        %v3427 = vpop.f32.mrb[0].mxu0
        %v3428 = vadd.f32 0.0, %v3427
        %v3429 = vpop.f32.mrb[0].mxu0
        %3430 = vmatprep.mubr.f32.mxu0 0.0
        %3431 = vmatmul.mubr.f32.gmra.mrb[0].mxu0 %v3243
        %v3432 = vpop.f32.mrb[0].mxu0
        %v3433 = vadd.f32 0.0, %v3432
        %v3434 = vpop.f32.mrb[0].mxu0
        %3435 = vmatprep.mubr.f32.mxu0 0.0
        %3436 = vmatmul.mubr.f32.gmra.mrb[0].mxu0 %v3246
        %v3437 = vpop.f32.mrb[0].mxu0
        %v3438 = vadd.f32 0.0, %v3437
        %v3439 = vpop.f32.mrb[0].mxu0
        %3440 = vmatprep.mubr.f32.mxu0 0.0
        %3441 = vmatmul.mubr.f32.gmra.mrb[0].mxu0 %v3249
        %v3442 = vpop.f32.mrb[0].mxu0
        %v3443 = vadd.f32 0.0, %v3442
        %v3444 = vpop.f32.mrb[0].mxu0
        %3445 = vmatprep.mubr.f32.mxu0 0.0
        %3446 = vmatmul.mubr.f32.gmra.mrb[0].mxu0 %v3252
        %v3447 = vpop.f32.mrb[0].mxu0
        %v3448 = vadd.f32 0.0, %v3447
        %v3449 = vpop.f32.mrb[0].mxu0
        %3450 = vmatprep.mubr.f32.mxu0 0.0
        %3451 = vmatmul.mubr.f32.gmra.mrb[0].mxu0 %v3255
        %v3452 = vpop.f32.mrb[0].mxu0
        %v3453 = vadd.f32 0.0, %v3452
        %v3454 = vpop.f32.mrb[0].mxu0
        %3455 = vmatprep.mubr.f32.mxu0 0.0
        %3456 = vmatmul.mubr.f32.gmra.mrb[0].mxu0 %v3258
        %v3457 = vpop.f32.mrb[0].mxu0
        %v3458 = vadd.f32 0.0, %v3457
        %v3459 = vpop.f32.mrb[0].mxu0
        %3460 = vmatprep.mubr.f32.mxu0 0.0
        %3461 = vmatmul.mubr.f32.gmra.mrb[0].mxu0 %v3261
        %v3462 = vpop.f32.mrb[0].mxu0
        %v3463 = vadd.f32 0.0, %v3462
        %v3464 = vpop.f32.mrb[0].mxu0
        %3465 = vmatprep.mubr.f32.mxu0 0.0
        %3466 = vmatmul.mubr.f32.gmra.mrb[0].mxu0 %v3264
        %v3467 = vpop.f32.mrb[0].mxu0
        %v3468 = vadd.f32 0.0, %v3467
        %v3469 = vpop.f32.mrb[0].mxu0
        %3470 = vmatprep.mubr.f32.mxu0 0.0
        %3471 = vmatmul.mubr.f32.gmra.mrb[0].mxu0 %v3267
        %v3472 = vpop.f32.mrb[0].mxu0
        %v3473 = vadd.f32 0.0, %v3472
        %v3474 = vpop.f32.mrb[0].mxu0
        %3475 = vmatprep.mubr.f32.mxu0 0.0
        %3476 = vmatmul.mubr.f32.gmra.mrb[0].mxu0 %v3270
        %v3477 = vpop.f32.mrb[0].mxu0
        %v3478 = vadd.f32 0.0, %v3477
        %v3479 = vpop.f32.mrb[0].mxu0
        %3480 = vmatprep.mubr.f32.mxu0 0.0
        %3481 = vmatmul.mubr.f32.gmra.mrb[0].mxu0 %v3273
        %v3482 = vpop.f32.mrb[0].mxu0
        %v3483 = vadd.f32 0.0, %v3482
        %v3484 = vpop.f32.mrb[0].mxu0
        %3485 = vmatprep.mubr.f32.mxu0 0.0
        %3486 = vmatmul.mubr.f32.gmra.mrb[0].mxu0 %v3276
        %v3487 = vpop.f32.mrb[0].mxu0
        %v3488 = vadd.f32 0.0, %v3487
        %v3489 = vpop.f32.mrb[0].mxu0
        %3490 = vmatprep.mubr.f32.mxu0 0.0
        %3491 = vmatmul.mubr.f32.gmra.mrb[0].mxu0 %v3279
        %v3492 = vpop.f32.mrb[0].mxu0
        %v3493 = vadd.f32 0.0, %v3492
        %v3494 = vpop.f32.mrb[0].mxu0
        %3495 = vmatprep.mubr.f32.mxu0 0.0
        %3496 = vmatmul.mubr.f32.gmra.mrb[0].mxu0 %v3282
        %v3497 = vpop.f32.mrb[0].mxu0
        %v3498 = vadd.f32 0.0, %v3497
        %v3499 = vpop.f32.mrb[0].mxu0
        %3500 = vmatprep.mubr.f32.mxu0 0.0
        %3501 = vmatmul.mubr.f32.gmra.mrb[0].mxu0 %v3285
        %v3502 = vpop.f32.mrb[0].mxu0
        %v3503 = vadd.f32 0.0, %v3502
        %v3504 = vpop.f32.mrb[0].mxu0
        %3505 = vmatprep.mubr.f32.mxu0 0.0
        %3506 = vmatmul.mubr.f32.gmra.mrb[0].mxu0 %v3288
        %v3507 = vpop.f32.mrb[0].mxu0
        %v3508 = vadd.f32 0.0, %v3507
        %v3509 = vpop.f32.mrb[0].mxu0
        %3510 = vmatprep.mubr.f32.mxu0 0.0
        %3511 = vmatmul.mubr.f32.gmra.mrb[0].mxu0 %v3291
        %v3512 = vpop.f32.mrb[0].mxu0
        %v3513 = vadd.f32 0.0, %v3512
        %v3514 = vpop.f32.mrb[0].mxu0
        %3515 = vmatprep.mubr.f32.mxu0 0.0
        %3516 = vmatmul.mubr.f32.gmra.mrb[0].mxu0 %v3294
        %v3517 = vpop.f32.mrb[0].mxu0
        %v3518 = vadd.f32 0.0, %v3517
        %v3519 = vpop.f32.mrb[0].mxu0
        %3520 = vmatprep.mubr.f32.mxu0 0.0
        %3521 = vmatmul.mubr.f32.gmra.mrb[0].mxu0 %v3297
        %v3522 = vpop.f32.mrb[0].mxu0
        %v3523 = vadd.f32 0.0, %v3522
        %v3524 = vpop.f32.mrb[0].mxu0
        %3525 = vmatprep.mubr.f32.mxu0 0.0
        %3526 = vmatmul.mubr.f32.gmra.mrb[0].mxu0 %v3300
        %v3527 = vpop.f32.mrb[0].mxu0
        %v3528 = vadd.f32 0.0, %v3527
        %v3529 = vpop.f32.mrb[0].mxu0
        %3530 = vmatprep.mubr.f32.mxu0 0.0
        %3531 = vmatmul.mubr.f32.gmra.mrb[0].mxu0 %v3303
        %v3532 = vpop.f32.mrb[0].mxu0
        %v3533 = vadd.f32 0.0, %v3532
        %v3534 = vpop.f32.mrb[0].mxu0
        %3535 = vmatprep.mubr.f32.mxu0 0.0
        %3536 = vmatmul.mubr.f32.gmra.mrb[0].mxu0 %v3306
        %v3537 = vpop.f32.mrb[0].mxu0
        %v3538 = vadd.f32 0.0, %v3537
        %v3539 = vpop.f32.mrb[0].mxu0
        %3540 = vmatprep.mubr.f32.mxu0 0.0
        %3541 = vmatmul.mubr.f32.gmra.mrb[0].mxu0 %v3309
        %v3542 = vpop.f32.mrb[0].mxu0
        %v3543 = vadd.f32 0.0, %v3542
        %v3544 = vpop.f32.mrb[0].mxu0
        %3545 = vmatprep.mubr.f32.mxu0 0.0
        %3546 = vmatmul.mubr.f32.gmra.mrb[0].mxu0 %v3312
        %v3547 = vpop.f32.mrb[0].mxu0
        %v3548 = vadd.f32 0.0, %v3547
        %v3549 = vpop.f32.mrb[0].mxu0
        %3550 = vmatprep.mubr.f32.mxu0 0.0
        %3551 = vmatmul.mubr.f32.gmra.mrb[0].mxu0 %v3315
        %v3552 = vpop.f32.mrb[0].mxu0
        %v3553 = vadd.f32 0.0, %v3552
        %v3554 = vpop.f32.mrb[0].mxu0
        %3555 = vmatprep.mubr.f32.mxu0 0.0
        %3556 = vmatmul.mubr.f32.gmra.mrb[0].mxu0 %v3318
        %v3557 = vpop.f32.mrb[0].mxu0
        %v3558 = vadd.f32 0.0, %v3557
        %v3559 = vpop.f32.mrb[0].mxu0
        %3560 = vmatprep.mubr.f32.mxu0 0.0
        %3561 = vmatmul.mubr.f32.gmra.mrb[0].mxu0 %v3321
        %v3562 = vpop.f32.mrb[0].mxu0
        %v3563 = vadd.f32 0.0, %v3562
        %v3564 = vpop.f32.mrb[0].mxu0
        %3565 = vmatprep.mubr.f32.mxu0 0.0
        %3566 = vmatmul.mubr.f32.gmra.mrb[0].mxu0 %v3324
        %v3567 = vpop.f32.mrb[0].mxu0
        %v3568 = vadd.f32 0.0, %v3567
        %v3569 = vpop.f32.mrb[0].mxu0
        %3570 = vdwg.mxu0
        %v3571 = vld [vmem:[%s191] sm:$0xff]
        %v3572 = vld [vmem:[%s191 + $0x8] sm:$0xff]
        %v3573 = vld [vmem:[%s191 + $0x10] sm:$0xff]
        %v3574 = vld [vmem:[%s191 + $0x18] sm:$0xff]
        %v3575 = vld [vmem:[%s191 + $0x20] sm:$0xff]
        %v3576 = vld [vmem:[%s191 + $0x28] sm:$0xff]
        %v3577 = vld [vmem:[%s191 + $0x30] sm:$0xff]
        %v3578 = vld [vmem:[%s191 + $0x38] sm:$0xff]
        %v3579 = vld [vmem:[%s191 + $0x40] sm:$0xff]
        %v3580 = vld [vmem:[%s191 + $0x48] sm:$0xff]
        %v3581 = vld [vmem:[%s191 + $0x50] sm:$0xff]
        %v3582 = vld [vmem:[%s191 + $0x58] sm:$0xff]
        %v3583 = vld [vmem:[%s191 + $0x60] sm:$0xff]
        %v3584 = vld [vmem:[%s191 + $0x68] sm:$0xff]
        %v3585 = vld [vmem:[%s191 + $0x70] sm:$0xff]
        %v3586 = vld [vmem:[%s191 + $0x78] sm:$0xff]
        %v3587 = vld [vmem:[%s191 + $0x80] sm:$0xff]
        %v3588 = vld [vmem:[%s191 + $0x88] sm:$0xff]
        %v3589 = vld [vmem:[%s191 + $0x90] sm:$0xff]
        %v3590 = vld [vmem:[%s191 + $0x98] sm:$0xff]
        %v3591 = vld [vmem:[%s191 + $0xa0] sm:$0xff]
        %v3592 = vld [vmem:[%s191 + $0xa8] sm:$0xff]
        %v3593 = vld [vmem:[%s191 + $0xb0] sm:$0xff]
        %v3594 = vld [vmem:[%s191 + $0xb8] sm:$0xff]
        %v3595 = vld [vmem:[%s191 + $0xc0] sm:$0xff]
        %v3596 = vld [vmem:[%s191 + $0xc8] sm:$0xff]
        %v3597 = vld [vmem:[%s191 + $0xd0] sm:$0xff]
        %v3598 = vld [vmem:[%s191 + $0xd8] sm:$0xff]
        %v3599 = vld [vmem:[%s191 + $0xe0] sm:$0xff]
        %v3600 = vld [vmem:[%s191 + $0xe8] sm:$0xff]
        %v3601 = vld [vmem:[%s191 + $0xf0] sm:$0xff]
        %v3602 = vld [vmem:[%s191 + $0xf8] sm:$0xff]
        %v3603 = vld [vmem:[%s191 + $0x100] sm:$0xff]
        %v3604 = vld [vmem:[%s191 + $0x108] sm:$0xff]
        %v3605 = vld [vmem:[%s191 + $0x110] sm:$0xff]
        %v3606 = vld [vmem:[%s191 + $0x118] sm:$0xff]
        %v3607 = vadd.f32 %v3571, %v3393
        %v3608 = vadd.f32 %v3572, %v3398
        %v3609 = vadd.f32 %v3573, %v3403
        %v3610 = vadd.f32 %v3574, %v3408
        %v3611 = vadd.f32 %v3575, %v3413
        %v3612 = vadd.f32 %v3576, %v3418
        %v3613 = vadd.f32 %v3577, %v3423
        %v3614 = vadd.f32 %v3578, %v3428
        %v3615 = vadd.f32 %v3579, %v3433
        %v3616 = vadd.f32 %v3580, %v3438
        %v3617 = vadd.f32 %v3581, %v3443
        %v3618 = vadd.f32 %v3582, %v3448
        %v3619 = vadd.f32 %v3583, %v3453
        %v3620 = vadd.f32 %v3584, %v3458
        %v3621 = vadd.f32 %v3585, %v3463
        %v3622 = vadd.f32 %v3586, %v3468
        %v3623 = vadd.f32 %v3587, %v3473
        %v3624 = vadd.f32 %v3588, %v3478
        %v3625 = vadd.f32 %v3589, %v3483
        %v3626 = vadd.f32 %v3590, %v3488
        %v3627 = vadd.f32 %v3591, %v3493
        %v3628 = vadd.f32 %v3592, %v3498
        %v3629 = vadd.f32 %v3593, %v3503
        %v3630 = vadd.f32 %v3594, %v3508
        %v3631 = vadd.f32 %v3595, %v3513
        %v3632 = vadd.f32 %v3596, %v3518
        %v3633 = vadd.f32 %v3597, %v3523
        %v3634 = vadd.f32 %v3598, %v3528
        %v3635 = vadd.f32 %v3599, %v3533
        %v3636 = vadd.f32 %v3600, %v3538
        %v3637 = vadd.f32 %v3601, %v3543
        %v3638 = vadd.f32 %v3602, %v3548
        %v3639 = vadd.f32 %v3603, %v3553
        %v3640 = vadd.f32 %v3604, %v3558
        %v3641 = vadd.f32 %v3605, %v3563
        %v3642 = vadd.f32 %v3606, %v3568
        %3643 = vst [vmem:[%s191] sm:$0xff] %v3607
        %3644 = vst [vmem:[%s191 + $0x8] sm:$0xff] %v3608
        %3645 = vst [vmem:[%s191 + $0x10] sm:$0xff] %v3609
        %3646 = vst [vmem:[%s191 + $0x18] sm:$0xff] %v3610
        %3647 = vst [vmem:[%s191 + $0x20] sm:$0xff] %v3611
        %3648 = vst [vmem:[%s191 + $0x28] sm:$0xff] %v3612
        %3649 = vst [vmem:[%s191 + $0x30] sm:$0xff] %v3613
        %3650 = vst [vmem:[%s191 + $0x38] sm:$0xff] %v3614
        %3651 = vst [vmem:[%s191 + $0x40] sm:$0xff] %v3615
        %3652 = vst [vmem:[%s191 + $0x48] sm:$0xff] %v3616
        %3653 = vst [vmem:[%s191 + $0x50] sm:$0xff] %v3617
        %3654 = vst [vmem:[%s191 + $0x58] sm:$0xff] %v3618
        %3655 = vst [vmem:[%s191 + $0x60] sm:$0xff] %v3619
        %3656 = vst [vmem:[%s191 + $0x68] sm:$0xff] %v3620
        %3657 = vst [vmem:[%s191 + $0x70] sm:$0xff] %v3621
        %3658 = vst [vmem:[%s191 + $0x78] sm:$0xff] %v3622
        %3659 = vst [vmem:[%s191 + $0x80] sm:$0xff] %v3623
        %3660 = vst [vmem:[%s191 + $0x88] sm:$0xff] %v3624
        %3661 = vst [vmem:[%s191 + $0x90] sm:$0xff] %v3625
        %3662 = vst [vmem:[%s191 + $0x98] sm:$0xff] %v3626
        %3663 = vst [vmem:[%s191 + $0xa0] sm:$0xff] %v3627
        %3664 = vst [vmem:[%s191 + $0xa8] sm:$0xff] %v3628
        %3665 = vst [vmem:[%s191 + $0xb0] sm:$0xff] %v3629
        %3666 = vst [vmem:[%s191 + $0xb8] sm:$0xff] %v3630
        %3667 = vst [vmem:[%s191 + $0xc0] sm:$0xff] %v3631
        %3668 = vst [vmem:[%s191 + $0xc8] sm:$0xff] %v3632
        %3669 = vst [vmem:[%s191 + $0xd0] sm:$0xff] %v3633
        %3670 = vst [vmem:[%s191 + $0xd8] sm:$0xff] %v3634
        %3671 = vst [vmem:[%s191 + $0xe0] sm:$0xff] %v3635
        %3672 = vst [vmem:[%s191 + $0xe8] sm:$0xff] %v3636
        %3673 = vst [vmem:[%s191 + $0xf0] sm:$0xff] %v3637
        %3674 = vst [vmem:[%s191 + $0xf8] sm:$0xff] %v3638
        %3675 = vst [vmem:[%s191 + $0x100] sm:$0xff] %v3639
        %3676 = vst [vmem:[%s191 + $0x108] sm:$0xff] %v3640
        %3677 = vst [vmem:[%s191 + $0x110] sm:$0xff] %v3641
        %3678 = vst [vmem:[%s191 + $0x118] sm:$0xff] %v3642
        %v3679 = vld [vmem:[%s207 + $0x25] sm:$0xff]
        %v3680 = vld [vmem:[%s207 + $0x2d] sm:$0xff]
        %v3681 = vld [vmem:[%s207 + $0x35] sm:$0xff]
        %v3682 = vld [vmem:[%s207 + $0x3d] sm:$0xff]
        %v3683 = vld [vmem:[%s207 + $0x45] sm:$0xff]
        %v3684 = vld [vmem:[%s207 + $0x4d] sm:$0xff]
        %v3685 = vld [vmem:[%s207 + $0x55] sm:$0xff]
        %v3686 = vld [vmem:[%s207 + $0x5d] sm:$0xff]
        %v3687 = vld [vmem:[%s207 + $0x65] sm:$0xff]
        %v3688 = vld [vmem:[%s207 + $0x6d] sm:$0xff]
        %v3689 = vld [vmem:[%s207 + $0x75] sm:$0xff]
        %v3690 = vld [vmem:[%s207 + $0x7d] sm:$0xff]
        %v3691 = vld [vmem:[%s207 + $0x85] sm:$0xff]
        %v3692 = vld [vmem:[%s207 + $0x8d] sm:$0xff]
        %v3693 = vld [vmem:[%s207 + $0x95] sm:$0xff]
        %v3694 = vld [vmem:[%s207 + $0x9d] sm:$0xff]
        %v3695 = vld [vmem:[%s207 + $0xa5] sm:$0xff]
        %v3696 = vld [vmem:[%s207 + $0xad] sm:$0xff]
        %v3697 = vld [vmem:[%s207 + $0xb5] sm:$0xff]
        %v3698 = vld [vmem:[%s207 + $0xbd] sm:$0xff]
        %v3699 = vld [vmem:[%s207 + $0xc5] sm:$0xff]
        %v3700 = vld [vmem:[%s207 + $0xcd] sm:$0xff]
        %v3701 = vld [vmem:[%s207 + $0xd5] sm:$0xff]
        %v3702 = vld [vmem:[%s207 + $0xdd] sm:$0xff]
        %v3703 = vld [vmem:[%s207 + $0xe5] sm:$0xff]
        %v3704 = vld [vmem:[%s207 + $0xed] sm:$0xff]
        %v3705 = vld [vmem:[%s207 + $0xf5] sm:$0xff]
        %v3706 = vld [vmem:[%s207 + $0xfd] sm:$0xff]
        %v3707 = vld [vmem:[%s207 + $0x105] sm:$0xff]
        %v3708 = vld [vmem:[%s207 + $0x10d] sm:$0xff]
        %v3709 = vld [vmem:[%s207 + $0x115] sm:$0xff]
        %v3710 = vld [vmem:[%s207 + $0x11d] sm:$0xff]
        %v3711 = vld [vmem:[%s207 + $0x125] sm:$0xff]
        %v3712 = vld [vmem:[%s207 + $0x12d] sm:$0xff]
        %v3713 = vld [vmem:[%s207 + $0x135] sm:$0xff]
        %v3714 = vld [vmem:[%s207 + $0x13d] sm:$0xff]
        %s3715 = scalar_lea.vmem %s1, 448
        %v3716 = vld [vmem:[%s3715] sm:$0xff]
        %v3717 = vld [vmem:[%s3715 + $0x8] sm:$0xff]
        %v3718 = vld [vmem:[%s3715 + $0x10] sm:$0xff]
        %v3719 = vld [vmem:[%s3715 + $0x18] sm:$0xff]
        %v3720 = vld [vmem:[%s3715 + $0x20] sm:$0xff]
        %v3721 = vld [vmem:[%s3715 + $0x28] sm:$0xff]
        %v3722 = vld [vmem:[%s3715 + $0x30] sm:$0xff]
        %v3723 = vld [vmem:[%s3715 + $0x38] sm:$0xff]
        %v3725 = vsel %vm253, %v3679, 0
        %v3728 = vsel %vm253, %v3680, 0
        %v3731 = vsel %vm253, %v3681, 0
        %v3734 = vsel %vm253, %v3682, 0
        %v3737 = vsel %vm253, %v3683, 0
        %v3740 = vsel %vm253, %v3684, 0
        %v3743 = vsel %vm253, %v3685, 0
        %v3746 = vsel %vm253, %v3686, 0
        %v3749 = vsel %vm253, %v3687, 0
        %v3752 = vsel %vm253, %v3688, 0
        %v3755 = vsel %vm253, %v3689, 0
        %v3758 = vsel %vm253, %v3690, 0
        %v3761 = vsel %vm253, %v3691, 0
        %v3764 = vsel %vm253, %v3692, 0
        %v3767 = vsel %vm253, %v3693, 0
        %v3770 = vsel %vm253, %v3694, 0
        %v3773 = vsel %vm253, %v3695, 0
        %v3776 = vsel %vm253, %v3696, 0
        %v3779 = vsel %vm253, %v3697, 0
        %v3782 = vsel %vm253, %v3698, 0
        %v3785 = vsel %vm253, %v3699, 0
        %v3788 = vsel %vm253, %v3700, 0
        %v3791 = vsel %vm253, %v3701, 0
        %v3794 = vsel %vm253, %v3702, 0
        %v3797 = vsel %vm253, %v3703, 0
        %v3800 = vsel %vm253, %v3704, 0
        %v3803 = vsel %vm253, %v3705, 0
        %v3806 = vsel %vm253, %v3706, 0
        %v3809 = vsel %vm253, %v3707, 0
        %v3812 = vsel %vm253, %v3708, 0
        %v3815 = vsel %vm253, %v3709, 0
        %v3818 = vsel %vm253, %v3710, 0
        %v3821 = vsel %vm253, %v3711, 0
        %v3824 = vsel %vm253, %v3712, 0
        %v3827 = vsel %vm253, %v3713, 0
        %v3830 = vsel %vm253, %v3714, 0
        %3832 = vmatprep.subr.mxu0 0.0
        %3833 = vmatpush1.msra.mxu0 %v3716
        %3834 = vmatprep.subr.mxu0 0.0
        %3835 = vmatpush1.msra.mxu0 %v3717
        %3836 = vmatprep.subr.mxu0 0.0
        %3837 = vmatpush1.msra.mxu0 %v3718
        %3838 = vmatprep.subr.mxu0 0.0
        %3839 = vmatpush1.msra.mxu0 %v3719
        %3840 = vmatprep.subr.mxu0 0.0
        %3841 = vmatpush1.msra.mxu0 %v3720
        %3842 = vmatprep.subr.mxu0 0.0
        %3843 = vmatpush1.msra.mxu0 %v3721
        %3844 = vmatprep.subr.mxu0 0.0
        %3845 = vmatpush1.msra.mxu0 %v3722
        %3846 = vmatprep.subr.mxu0 0.0
        %3847 = vmatpush1.msra.mxu0 %v3723
        %3848 = vmatprep.subr.mxu0 0.0
        %3849 = vmatpush1.msra.mxu0 0.0
        %3850 = vmatprep.subr.mxu0 0.0
        %3851 = vmatpush1.msra.mxu0 0.0
        %3852 = vmatprep.subr.mxu0 0.0
        %3853 = vmatpush1.msra.mxu0 0.0
        %3854 = vmatprep.subr.mxu0 0.0
        %3855 = vmatpush1.msra.mxu0 0.0
        %3856 = vmatprep.subr.mxu0 0.0
        %3857 = vmatpush1.msra.mxu0 0.0
        %3858 = vmatprep.subr.mxu0 0.0
        %3859 = vmatpush1.msra.mxu0 0.0
        %3860 = vmatprep.subr.mxu0 0.0
        %3861 = vmatpush1.msra.mxu0 0.0
        %3862 = vmatprep.subr.mxu0 0.0
        %3863 = vmatpush1.msra.mxu0 0.0
        %3864 = vmatprep.subr.mxu0 0.0
        %3865 = vmatpush1.msra.mxu0 0.0
        %3866 = vmatprep.subr.mxu0 0.0
        %3867 = vmatpush1.msra.mxu0 0.0
        %3868 = vmatprep.subr.mxu0 0.0
        %3869 = vmatpush1.msra.mxu0 0.0
        %3870 = vmatprep.subr.mxu0 0.0
        %3871 = vmatpush1.msra.mxu0 0.0
        %3872 = vmatprep.subr.mxu0 0.0
        %3873 = vmatpush1.msra.mxu0 0.0
        %3874 = vmatprep.subr.mxu0 0.0
        %3875 = vmatpush1.msra.mxu0 0.0
        %3876 = vmatprep.subr.mxu0 0.0
        %3877 = vmatpush1.msra.mxu0 0.0
        %3878 = vmatprep.subr.mxu0 0.0
        %3879 = vmatpush1.msra.mxu0 0.0
        %3880 = vmatprep.subr.mxu0 0.0
        %3881 = vmatpush1.msra.mxu0 0.0
        %3882 = vmatprep.subr.mxu0 0.0
        %3883 = vmatpush1.msra.mxu0 0.0
        %3884 = vmatprep.subr.mxu0 0.0
        %3885 = vmatpush1.msra.mxu0 0.0
        %3886 = vmatprep.subr.mxu0 0.0
        %3887 = vmatpush1.msra.mxu0 0.0
        %3888 = vmatprep.subr.mxu0 0.0
        %3889 = vmatpush1.msra.mxu0 0.0
        %3890 = vmatprep.subr.mxu0 0.0
        %3891 = vmatpush1.msra.mxu0 0.0
        %3892 = vmatprep.subr.mxu0 0.0
        %3893 = vmatpush1.msra.mxu0 0.0
        %3894 = vmatprep.subr.mxu0 0.0
        %3895 = vmatpush1.msra.mxu0 0.0
        %3896 = vmatprep.mubr.f32.mxu0 0.0
        %3897 = vmatmul.mubr.f32.gmra.mrb[0].mxu0 %v3725
        %v3898 = vpop.f32.mrb[0].mxu0
        %v3899 = vadd.f32 0.0, %v3898
        %v3900 = vpop.f32.mrb[0].mxu0
        %3901 = vmatprep.mubr.f32.mxu0 0.0
        %3902 = vmatmul.mubr.f32.gmra.mrb[0].mxu0 %v3728
        %v3903 = vpop.f32.mrb[0].mxu0
        %v3904 = vadd.f32 0.0, %v3903
        %v3905 = vpop.f32.mrb[0].mxu0
        %3906 = vmatprep.mubr.f32.mxu0 0.0
        %3907 = vmatmul.mubr.f32.gmra.mrb[0].mxu0 %v3731
        %v3908 = vpop.f32.mrb[0].mxu0
        %v3909 = vadd.f32 0.0, %v3908
        %v3910 = vpop.f32.mrb[0].mxu0
        %3911 = vmatprep.mubr.f32.mxu0 0.0
        %3912 = vmatmul.mubr.f32.gmra.mrb[0].mxu0 %v3734
        %v3913 = vpop.f32.mrb[0].mxu0
        %v3914 = vadd.f32 0.0, %v3913
        %v3915 = vpop.f32.mrb[0].mxu0
        %3916 = vmatprep.mubr.f32.mxu0 0.0
        %3917 = vmatmul.mubr.f32.gmra.mrb[0].mxu0 %v3737
        %v3918 = vpop.f32.mrb[0].mxu0
        %v3919 = vadd.f32 0.0, %v3918
        %v3920 = vpop.f32.mrb[0].mxu0
        %3921 = vmatprep.mubr.f32.mxu0 0.0
        %3922 = vmatmul.mubr.f32.gmra.mrb[0].mxu0 %v3740
        %v3923 = vpop.f32.mrb[0].mxu0
        %v3924 = vadd.f32 0.0, %v3923
        %v3925 = vpop.f32.mrb[0].mxu0
        %3926 = vmatprep.mubr.f32.mxu0 0.0
        %3927 = vmatmul.mubr.f32.gmra.mrb[0].mxu0 %v3743
        %v3928 = vpop.f32.mrb[0].mxu0
        %v3929 = vadd.f32 0.0, %v3928
        %v3930 = vpop.f32.mrb[0].mxu0
        %3931 = vmatprep.mubr.f32.mxu0 0.0
        %3932 = vmatmul.mubr.f32.gmra.mrb[0].mxu0 %v3746
        %v3933 = vpop.f32.mrb[0].mxu0
        %v3934 = vadd.f32 0.0, %v3933
        %v3935 = vpop.f32.mrb[0].mxu0
        %3936 = vmatprep.mubr.f32.mxu0 0.0
        %3937 = vmatmul.mubr.f32.gmra.mrb[0].mxu0 %v3749
        %v3938 = vpop.f32.mrb[0].mxu0
        %v3939 = vadd.f32 0.0, %v3938
        %v3940 = vpop.f32.mrb[0].mxu0
        %3941 = vmatprep.mubr.f32.mxu0 0.0
        %3942 = vmatmul.mubr.f32.gmra.mrb[0].mxu0 %v3752
        %v3943 = vpop.f32.mrb[0].mxu0
        %v3944 = vadd.f32 0.0, %v3943
        %v3945 = vpop.f32.mrb[0].mxu0
        %3946 = vmatprep.mubr.f32.mxu0 0.0
        %3947 = vmatmul.mubr.f32.gmra.mrb[0].mxu0 %v3755
        %v3948 = vpop.f32.mrb[0].mxu0
        %v3949 = vadd.f32 0.0, %v3948
        %v3950 = vpop.f32.mrb[0].mxu0
        %3951 = vmatprep.mubr.f32.mxu0 0.0
        %3952 = vmatmul.mubr.f32.gmra.mrb[0].mxu0 %v3758
        %v3953 = vpop.f32.mrb[0].mxu0
        %v3954 = vadd.f32 0.0, %v3953
        %v3955 = vpop.f32.mrb[0].mxu0
        %3956 = vmatprep.mubr.f32.mxu0 0.0
        %3957 = vmatmul.mubr.f32.gmra.mrb[0].mxu0 %v3761
        %v3958 = vpop.f32.mrb[0].mxu0
        %v3959 = vadd.f32 0.0, %v3958
        %v3960 = vpop.f32.mrb[0].mxu0
        %3961 = vmatprep.mubr.f32.mxu0 0.0
        %3962 = vmatmul.mubr.f32.gmra.mrb[0].mxu0 %v3764
        %v3963 = vpop.f32.mrb[0].mxu0
        %v3964 = vadd.f32 0.0, %v3963
        %v3965 = vpop.f32.mrb[0].mxu0
        %3966 = vmatprep.mubr.f32.mxu0 0.0
        %3967 = vmatmul.mubr.f32.gmra.mrb[0].mxu0 %v3767
        %v3968 = vpop.f32.mrb[0].mxu0
        %v3969 = vadd.f32 0.0, %v3968
        %v3970 = vpop.f32.mrb[0].mxu0
        %3971 = vmatprep.mubr.f32.mxu0 0.0
        %3972 = vmatmul.mubr.f32.gmra.mrb[0].mxu0 %v3770
        %v3973 = vpop.f32.mrb[0].mxu0
        %v3974 = vadd.f32 0.0, %v3973
        %v3975 = vpop.f32.mrb[0].mxu0
        %3976 = vmatprep.mubr.f32.mxu0 0.0
        %3977 = vmatmul.mubr.f32.gmra.mrb[0].mxu0 %v3773
        %v3978 = vpop.f32.mrb[0].mxu0
        %v3979 = vadd.f32 0.0, %v3978
        %v3980 = vpop.f32.mrb[0].mxu0
        %3981 = vmatprep.mubr.f32.mxu0 0.0
        %3982 = vmatmul.mubr.f32.gmra.mrb[0].mxu0 %v3776
        %v3983 = vpop.f32.mrb[0].mxu0
        %v3984 = vadd.f32 0.0, %v3983
        %v3985 = vpop.f32.mrb[0].mxu0
        %3986 = vmatprep.mubr.f32.mxu0 0.0
        %3987 = vmatmul.mubr.f32.gmra.mrb[0].mxu0 %v3779
        %v3988 = vpop.f32.mrb[0].mxu0
        %v3989 = vadd.f32 0.0, %v3988
        %v3990 = vpop.f32.mrb[0].mxu0
        %3991 = vmatprep.mubr.f32.mxu0 0.0
        %3992 = vmatmul.mubr.f32.gmra.mrb[0].mxu0 %v3782
        %v3993 = vpop.f32.mrb[0].mxu0
        %v3994 = vadd.f32 0.0, %v3993
        %v3995 = vpop.f32.mrb[0].mxu0
        %3996 = vmatprep.mubr.f32.mxu0 0.0
        %3997 = vmatmul.mubr.f32.gmra.mrb[0].mxu0 %v3785
        %v3998 = vpop.f32.mrb[0].mxu0
        %v3999 = vadd.f32 0.0, %v3998
        %v4000 = vpop.f32.mrb[0].mxu0
        %4001 = vmatprep.mubr.f32.mxu0 0.0
        %4002 = vmatmul.mubr.f32.gmra.mrb[0].mxu0 %v3788
        %v4003 = vpop.f32.mrb[0].mxu0
        %v4004 = vadd.f32 0.0, %v4003
        %v4005 = vpop.f32.mrb[0].mxu0
        %4006 = vmatprep.mubr.f32.mxu0 0.0
        %4007 = vmatmul.mubr.f32.gmra.mrb[0].mxu0 %v3791
        %v4008 = vpop.f32.mrb[0].mxu0
        %v4009 = vadd.f32 0.0, %v4008
        %v4010 = vpop.f32.mrb[0].mxu0
        %4011 = vmatprep.mubr.f32.mxu0 0.0
        %4012 = vmatmul.mubr.f32.gmra.mrb[0].mxu0 %v3794
        %v4013 = vpop.f32.mrb[0].mxu0
        %v4014 = vadd.f32 0.0, %v4013
        %v4015 = vpop.f32.mrb[0].mxu0
        %4016 = vmatprep.mubr.f32.mxu0 0.0
        %4017 = vmatmul.mubr.f32.gmra.mrb[0].mxu0 %v3797
        %v4018 = vpop.f32.mrb[0].mxu0
        %v4019 = vadd.f32 0.0, %v4018
        %v4020 = vpop.f32.mrb[0].mxu0
        %4021 = vmatprep.mubr.f32.mxu0 0.0
        %4022 = vmatmul.mubr.f32.gmra.mrb[0].mxu0 %v3800
        %v4023 = vpop.f32.mrb[0].mxu0
        %v4024 = vadd.f32 0.0, %v4023
        %v4025 = vpop.f32.mrb[0].mxu0
        %4026 = vmatprep.mubr.f32.mxu0 0.0
        %4027 = vmatmul.mubr.f32.gmra.mrb[0].mxu0 %v3803
        %v4028 = vpop.f32.mrb[0].mxu0
        %v4029 = vadd.f32 0.0, %v4028
        %v4030 = vpop.f32.mrb[0].mxu0
        %4031 = vmatprep.mubr.f32.mxu0 0.0
        %4032 = vmatmul.mubr.f32.gmra.mrb[0].mxu0 %v3806
        %v4033 = vpop.f32.mrb[0].mxu0
        %v4034 = vadd.f32 0.0, %v4033
        %v4035 = vpop.f32.mrb[0].mxu0
        %4036 = vmatprep.mubr.f32.mxu0 0.0
        %4037 = vmatmul.mubr.f32.gmra.mrb[0].mxu0 %v3809
        %v4038 = vpop.f32.mrb[0].mxu0
        %v4039 = vadd.f32 0.0, %v4038
        %v4040 = vpop.f32.mrb[0].mxu0
        %4041 = vmatprep.mubr.f32.mxu0 0.0
        %4042 = vmatmul.mubr.f32.gmra.mrb[0].mxu0 %v3812
        %v4043 = vpop.f32.mrb[0].mxu0
        %v4044 = vadd.f32 0.0, %v4043
        %v4045 = vpop.f32.mrb[0].mxu0
        %4046 = vmatprep.mubr.f32.mxu0 0.0
        %4047 = vmatmul.mubr.f32.gmra.mrb[0].mxu0 %v3815
        %v4048 = vpop.f32.mrb[0].mxu0
        %v4049 = vadd.f32 0.0, %v4048
        %v4050 = vpop.f32.mrb[0].mxu0
        %4051 = vmatprep.mubr.f32.mxu0 0.0
        %4052 = vmatmul.mubr.f32.gmra.mrb[0].mxu0 %v3818
        %v4053 = vpop.f32.mrb[0].mxu0
        %v4054 = vadd.f32 0.0, %v4053
        %v4055 = vpop.f32.mrb[0].mxu0
        %4056 = vmatprep.mubr.f32.mxu0 0.0
        %4057 = vmatmul.mubr.f32.gmra.mrb[0].mxu0 %v3821
        %v4058 = vpop.f32.mrb[0].mxu0
        %v4059 = vadd.f32 0.0, %v4058
        %v4060 = vpop.f32.mrb[0].mxu0
        %4061 = vmatprep.mubr.f32.mxu0 0.0
        %4062 = vmatmul.mubr.f32.gmra.mrb[0].mxu0 %v3824
        %v4063 = vpop.f32.mrb[0].mxu0
        %v4064 = vadd.f32 0.0, %v4063
        %v4065 = vpop.f32.mrb[0].mxu0
        %4066 = vmatprep.mubr.f32.mxu0 0.0
        %4067 = vmatmul.mubr.f32.gmra.mrb[0].mxu0 %v3827
        %v4068 = vpop.f32.mrb[0].mxu0
        %v4069 = vadd.f32 0.0, %v4068
        %v4070 = vpop.f32.mrb[0].mxu0
        %4071 = vmatprep.mubr.f32.mxu0 0.0
        %4072 = vmatmul.mubr.f32.gmra.mrb[0].mxu0 %v3830
        %v4073 = vpop.f32.mrb[0].mxu0
        %v4074 = vadd.f32 0.0, %v4073
        %v4075 = vpop.f32.mrb[0].mxu0
        %4076 = vdwg.mxu0
        %v4077 = vld [vmem:[%s191] sm:$0xff]
        %v4078 = vld [vmem:[%s191 + $0x8] sm:$0xff]
        %v4079 = vld [vmem:[%s191 + $0x10] sm:$0xff]
        %v4080 = vld [vmem:[%s191 + $0x18] sm:$0xff]
        %v4081 = vld [vmem:[%s191 + $0x20] sm:$0xff]
        %v4082 = vld [vmem:[%s191 + $0x28] sm:$0xff]
        %v4083 = vld [vmem:[%s191 + $0x30] sm:$0xff]
        %v4084 = vld [vmem:[%s191 + $0x38] sm:$0xff]
        %v4085 = vld [vmem:[%s191 + $0x40] sm:$0xff]
        %v4086 = vld [vmem:[%s191 + $0x48] sm:$0xff]
        %v4087 = vld [vmem:[%s191 + $0x50] sm:$0xff]
        %v4088 = vld [vmem:[%s191 + $0x58] sm:$0xff]
        %v4089 = vld [vmem:[%s191 + $0x60] sm:$0xff]
        %v4090 = vld [vmem:[%s191 + $0x68] sm:$0xff]
        %v4091 = vld [vmem:[%s191 + $0x70] sm:$0xff]
        %v4092 = vld [vmem:[%s191 + $0x78] sm:$0xff]
        %v4093 = vld [vmem:[%s191 + $0x80] sm:$0xff]
        %v4094 = vld [vmem:[%s191 + $0x88] sm:$0xff]
        %v4095 = vld [vmem:[%s191 + $0x90] sm:$0xff]
        %v4096 = vld [vmem:[%s191 + $0x98] sm:$0xff]
        %v4097 = vld [vmem:[%s191 + $0xa0] sm:$0xff]
        %v4098 = vld [vmem:[%s191 + $0xa8] sm:$0xff]
        %v4099 = vld [vmem:[%s191 + $0xb0] sm:$0xff]
        %v4100 = vld [vmem:[%s191 + $0xb8] sm:$0xff]
        %v4101 = vld [vmem:[%s191 + $0xc0] sm:$0xff]
        %v4102 = vld [vmem:[%s191 + $0xc8] sm:$0xff]
        %v4103 = vld [vmem:[%s191 + $0xd0] sm:$0xff]
        %v4104 = vld [vmem:[%s191 + $0xd8] sm:$0xff]
        %v4105 = vld [vmem:[%s191 + $0xe0] sm:$0xff]
        %v4106 = vld [vmem:[%s191 + $0xe8] sm:$0xff]
        %v4107 = vld [vmem:[%s191 + $0xf0] sm:$0xff]
        %v4108 = vld [vmem:[%s191 + $0xf8] sm:$0xff]
        %v4109 = vld [vmem:[%s191 + $0x100] sm:$0xff]
        %v4110 = vld [vmem:[%s191 + $0x108] sm:$0xff]
        %v4111 = vld [vmem:[%s191 + $0x110] sm:$0xff]
        %v4112 = vld [vmem:[%s191 + $0x118] sm:$0xff]
        %v4113 = vadd.f32 %v4077, %v3899
        %v4114 = vadd.f32 %v4078, %v3904
        %v4115 = vadd.f32 %v4079, %v3909
        %v4116 = vadd.f32 %v4080, %v3914
        %v4117 = vadd.f32 %v4081, %v3919
        %v4118 = vadd.f32 %v4082, %v3924
        %v4119 = vadd.f32 %v4083, %v3929
        %v4120 = vadd.f32 %v4084, %v3934
        %v4121 = vadd.f32 %v4085, %v3939
        %v4122 = vadd.f32 %v4086, %v3944
        %v4123 = vadd.f32 %v4087, %v3949
        %v4124 = vadd.f32 %v4088, %v3954
        %v4125 = vadd.f32 %v4089, %v3959
        %v4126 = vadd.f32 %v4090, %v3964
        %v4127 = vadd.f32 %v4091, %v3969
        %v4128 = vadd.f32 %v4092, %v3974
        %v4129 = vadd.f32 %v4093, %v3979
        %v4130 = vadd.f32 %v4094, %v3984
        %v4131 = vadd.f32 %v4095, %v3989
        %v4132 = vadd.f32 %v4096, %v3994
        %v4133 = vadd.f32 %v4097, %v3999
        %v4134 = vadd.f32 %v4098, %v4004
        %v4135 = vadd.f32 %v4099, %v4009
        %v4136 = vadd.f32 %v4100, %v4014
        %v4137 = vadd.f32 %v4101, %v4019
        %v4138 = vadd.f32 %v4102, %v4024
        %v4139 = vadd.f32 %v4103, %v4029
        %v4140 = vadd.f32 %v4104, %v4034
        %v4141 = vadd.f32 %v4105, %v4039
        %v4142 = vadd.f32 %v4106, %v4044
        %v4143 = vadd.f32 %v4107, %v4049
        %v4144 = vadd.f32 %v4108, %v4054
        %v4145 = vadd.f32 %v4109, %v4059
        %v4146 = vadd.f32 %v4110, %v4064
        %v4147 = vadd.f32 %v4111, %v4069
        %v4148 = vadd.f32 %v4112, %v4074
        %4149 = vst [vmem:[%s191] sm:$0xff] %v4113
        %4150 = vst [vmem:[%s191 + $0x8] sm:$0xff] %v4114
        %4151 = vst [vmem:[%s191 + $0x10] sm:$0xff] %v4115
        %4152 = vst [vmem:[%s191 + $0x18] sm:$0xff] %v4116
        %4153 = vst [vmem:[%s191 + $0x20] sm:$0xff] %v4117
        %4154 = vst [vmem:[%s191 + $0x28] sm:$0xff] %v4118
        %4155 = vst [vmem:[%s191 + $0x30] sm:$0xff] %v4119
        %4156 = vst [vmem:[%s191 + $0x38] sm:$0xff] %v4120
        %4157 = vst [vmem:[%s191 + $0x40] sm:$0xff] %v4121
        %4158 = vst [vmem:[%s191 + $0x48] sm:$0xff] %v4122
        %4159 = vst [vmem:[%s191 + $0x50] sm:$0xff] %v4123
        %4160 = vst [vmem:[%s191 + $0x58] sm:$0xff] %v4124
        %4161 = vst [vmem:[%s191 + $0x60] sm:$0xff] %v4125
        %4162 = vst [vmem:[%s191 + $0x68] sm:$0xff] %v4126
        %4163 = vst [vmem:[%s191 + $0x70] sm:$0xff] %v4127
        %4164 = vst [vmem:[%s191 + $0x78] sm:$0xff] %v4128
        %4165 = vst [vmem:[%s191 + $0x80] sm:$0xff] %v4129
        %4166 = vst [vmem:[%s191 + $0x88] sm:$0xff] %v4130
        %4167 = vst [vmem:[%s191 + $0x90] sm:$0xff] %v4131
        %4168 = vst [vmem:[%s191 + $0x98] sm:$0xff] %v4132
        %4169 = vst [vmem:[%s191 + $0xa0] sm:$0xff] %v4133
        %4170 = vst [vmem:[%s191 + $0xa8] sm:$0xff] %v4134
        %4171 = vst [vmem:[%s191 + $0xb0] sm:$0xff] %v4135
        %4172 = vst [vmem:[%s191 + $0xb8] sm:$0xff] %v4136
        %4173 = vst [vmem:[%s191 + $0xc0] sm:$0xff] %v4137
        %4174 = vst [vmem:[%s191 + $0xc8] sm:$0xff] %v4138
        %4175 = vst [vmem:[%s191 + $0xd0] sm:$0xff] %v4139
        %4176 = vst [vmem:[%s191 + $0xd8] sm:$0xff] %v4140
        %4177 = vst [vmem:[%s191 + $0xe0] sm:$0xff] %v4141
        %4178 = vst [vmem:[%s191 + $0xe8] sm:$0xff] %v4142
        %4179 = vst [vmem:[%s191 + $0xf0] sm:$0xff] %v4143
        %4180 = vst [vmem:[%s191 + $0xf8] sm:$0xff] %v4144
        %4181 = vst [vmem:[%s191 + $0x100] sm:$0xff] %v4145
        %4182 = vst [vmem:[%s191 + $0x108] sm:$0xff] %v4146
        %4183 = vst [vmem:[%s191 + $0x110] sm:$0xff] %v4147
        %4184 = vst [vmem:[%s191 + $0x118] sm:$0xff] %v4148
        %v4185 = vld [vmem:[%s207 + $0x26] sm:$0xff]
        %v4186 = vld [vmem:[%s207 + $0x2e] sm:$0xff]
        %v4187 = vld [vmem:[%s207 + $0x36] sm:$0xff]
        %v4188 = vld [vmem:[%s207 + $0x3e] sm:$0xff]
        %v4189 = vld [vmem:[%s207 + $0x46] sm:$0xff]
        %v4190 = vld [vmem:[%s207 + $0x4e] sm:$0xff]
        %v4191 = vld [vmem:[%s207 + $0x56] sm:$0xff]
        %v4192 = vld [vmem:[%s207 + $0x5e] sm:$0xff]
        %v4193 = vld [vmem:[%s207 + $0x66] sm:$0xff]
        %v4194 = vld [vmem:[%s207 + $0x6e] sm:$0xff]
        %v4195 = vld [vmem:[%s207 + $0x76] sm:$0xff]
        %v4196 = vld [vmem:[%s207 + $0x7e] sm:$0xff]
        %v4197 = vld [vmem:[%s207 + $0x86] sm:$0xff]
        %v4198 = vld [vmem:[%s207 + $0x8e] sm:$0xff]
        %v4199 = vld [vmem:[%s207 + $0x96] sm:$0xff]
        %v4200 = vld [vmem:[%s207 + $0x9e] sm:$0xff]
        %v4201 = vld [vmem:[%s207 + $0xa6] sm:$0xff]
        %v4202 = vld [vmem:[%s207 + $0xae] sm:$0xff]
        %v4203 = vld [vmem:[%s207 + $0xb6] sm:$0xff]
        %v4204 = vld [vmem:[%s207 + $0xbe] sm:$0xff]
        %v4205 = vld [vmem:[%s207 + $0xc6] sm:$0xff]
        %v4206 = vld [vmem:[%s207 + $0xce] sm:$0xff]
        %v4207 = vld [vmem:[%s207 + $0xd6] sm:$0xff]
        %v4208 = vld [vmem:[%s207 + $0xde] sm:$0xff]
        %v4209 = vld [vmem:[%s207 + $0xe6] sm:$0xff]
        %v4210 = vld [vmem:[%s207 + $0xee] sm:$0xff]
        %v4211 = vld [vmem:[%s207 + $0xf6] sm:$0xff]
        %v4212 = vld [vmem:[%s207 + $0xfe] sm:$0xff]
        %v4213 = vld [vmem:[%s207 + $0x106] sm:$0xff]
        %v4214 = vld [vmem:[%s207 + $0x10e] sm:$0xff]
        %v4215 = vld [vmem:[%s207 + $0x116] sm:$0xff]
        %v4216 = vld [vmem:[%s207 + $0x11e] sm:$0xff]
        %v4217 = vld [vmem:[%s207 + $0x126] sm:$0xff]
        %v4218 = vld [vmem:[%s207 + $0x12e] sm:$0xff]
        %v4219 = vld [vmem:[%s207 + $0x136] sm:$0xff]
        %v4220 = vld [vmem:[%s207 + $0x13e] sm:$0xff]
        %s4221 = scalar_lea.vmem %s1, 512
        %v4222 = vld [vmem:[%s4221] sm:$0xff]
        %v4223 = vld [vmem:[%s4221 + $0x8] sm:$0xff]
        %v4224 = vld [vmem:[%s4221 + $0x10] sm:$0xff]
        %v4225 = vld [vmem:[%s4221 + $0x18] sm:$0xff]
        %v4226 = vld [vmem:[%s4221 + $0x20] sm:$0xff]
        %v4227 = vld [vmem:[%s4221 + $0x28] sm:$0xff]
        %v4228 = vld [vmem:[%s4221 + $0x30] sm:$0xff]
        %v4229 = vld [vmem:[%s4221 + $0x38] sm:$0xff]
        %v4231 = vsel %vm253, %v4185, 0
        %v4234 = vsel %vm253, %v4186, 0
        %v4237 = vsel %vm253, %v4187, 0
        %v4240 = vsel %vm253, %v4188, 0
        %v4243 = vsel %vm253, %v4189, 0
        %v4246 = vsel %vm253, %v4190, 0
        %v4249 = vsel %vm253, %v4191, 0
        %v4252 = vsel %vm253, %v4192, 0
        %v4255 = vsel %vm253, %v4193, 0
        %v4258 = vsel %vm253, %v4194, 0
        %v4261 = vsel %vm253, %v4195, 0
        %v4264 = vsel %vm253, %v4196, 0
        %v4267 = vsel %vm253, %v4197, 0
        %v4270 = vsel %vm253, %v4198, 0
        %v4273 = vsel %vm253, %v4199, 0
        %v4276 = vsel %vm253, %v4200, 0
        %v4279 = vsel %vm253, %v4201, 0
        %v4282 = vsel %vm253, %v4202, 0
        %v4285 = vsel %vm253, %v4203, 0
        %v4288 = vsel %vm253, %v4204, 0
        %v4291 = vsel %vm253, %v4205, 0
        %v4294 = vsel %vm253, %v4206, 0
        %v4297 = vsel %vm253, %v4207, 0
        %v4300 = vsel %vm253, %v4208, 0
        %v4303 = vsel %vm253, %v4209, 0
        %v4306 = vsel %vm253, %v4210, 0
        %v4309 = vsel %vm253, %v4211, 0
        %v4312 = vsel %vm253, %v4212, 0
        %v4315 = vsel %vm253, %v4213, 0
        %v4318 = vsel %vm253, %v4214, 0
        %v4321 = vsel %vm253, %v4215, 0
        %v4324 = vsel %vm253, %v4216, 0
        %v4327 = vsel %vm253, %v4217, 0
        %v4330 = vsel %vm253, %v4218, 0
        %v4333 = vsel %vm253, %v4219, 0
        %v4336 = vsel %vm253, %v4220, 0
        %4338 = vmatprep.subr.mxu0 0.0
        %4339 = vmatpush1.msra.mxu0 %v4222
        %4340 = vmatprep.subr.mxu0 0.0
        %4341 = vmatpush1.msra.mxu0 %v4223
        %4342 = vmatprep.subr.mxu0 0.0
        %4343 = vmatpush1.msra.mxu0 %v4224
        %4344 = vmatprep.subr.mxu0 0.0
        %4345 = vmatpush1.msra.mxu0 %v4225
        %4346 = vmatprep.subr.mxu0 0.0
        %4347 = vmatpush1.msra.mxu0 %v4226
        %4348 = vmatprep.subr.mxu0 0.0
        %4349 = vmatpush1.msra.mxu0 %v4227
        %4350 = vmatprep.subr.mxu0 0.0
        %4351 = vmatpush1.msra.mxu0 %v4228
        %4352 = vmatprep.subr.mxu0 0.0
        %4353 = vmatpush1.msra.mxu0 %v4229
        %4354 = vmatprep.subr.mxu0 0.0
        %4355 = vmatpush1.msra.mxu0 0.0
        %4356 = vmatprep.subr.mxu0 0.0
        %4357 = vmatpush1.msra.mxu0 0.0
        %4358 = vmatprep.subr.mxu0 0.0
        %4359 = vmatpush1.msra.mxu0 0.0
        %4360 = vmatprep.subr.mxu0 0.0
        %4361 = vmatpush1.msra.mxu0 0.0
        %4362 = vmatprep.subr.mxu0 0.0
        %4363 = vmatpush1.msra.mxu0 0.0
        %4364 = vmatprep.subr.mxu0 0.0
        %4365 = vmatpush1.msra.mxu0 0.0
        %4366 = vmatprep.subr.mxu0 0.0
        %4367 = vmatpush1.msra.mxu0 0.0
        %4368 = vmatprep.subr.mxu0 0.0
        %4369 = vmatpush1.msra.mxu0 0.0
        %4370 = vmatprep.subr.mxu0 0.0
        %4371 = vmatpush1.msra.mxu0 0.0
        %4372 = vmatprep.subr.mxu0 0.0
        %4373 = vmatpush1.msra.mxu0 0.0
        %4374 = vmatprep.subr.mxu0 0.0
        %4375 = vmatpush1.msra.mxu0 0.0
        %4376 = vmatprep.subr.mxu0 0.0
        %4377 = vmatpush1.msra.mxu0 0.0
        %4378 = vmatprep.subr.mxu0 0.0
        %4379 = vmatpush1.msra.mxu0 0.0
        %4380 = vmatprep.subr.mxu0 0.0
        %4381 = vmatpush1.msra.mxu0 0.0
        %4382 = vmatprep.subr.mxu0 0.0
        %4383 = vmatpush1.msra.mxu0 0.0
        %4384 = vmatprep.subr.mxu0 0.0
        %4385 = vmatpush1.msra.mxu0 0.0
        %4386 = vmatprep.subr.mxu0 0.0
        %4387 = vmatpush1.msra.mxu0 0.0
        %4388 = vmatprep.subr.mxu0 0.0
        %4389 = vmatpush1.msra.mxu0 0.0
        %4390 = vmatprep.subr.mxu0 0.0
        %4391 = vmatpush1.msra.mxu0 0.0
        %4392 = vmatprep.subr.mxu0 0.0
        %4393 = vmatpush1.msra.mxu0 0.0
        %4394 = vmatprep.subr.mxu0 0.0
        %4395 = vmatpush1.msra.mxu0 0.0
        %4396 = vmatprep.subr.mxu0 0.0
        %4397 = vmatpush1.msra.mxu0 0.0
        %4398 = vmatprep.subr.mxu0 0.0
        %4399 = vmatpush1.msra.mxu0 0.0
        %4400 = vmatprep.subr.mxu0 0.0
        %4401 = vmatpush1.msra.mxu0 0.0
        %4402 = vmatprep.mubr.f32.mxu0 0.0
        %4403 = vmatmul.mubr.f32.gmra.mrb[0].mxu0 %v4231
        %v4404 = vpop.f32.mrb[0].mxu0
        %v4405 = vadd.f32 0.0, %v4404
        %v4406 = vpop.f32.mrb[0].mxu0
        %4407 = vmatprep.mubr.f32.mxu0 0.0
        %4408 = vmatmul.mubr.f32.gmra.mrb[0].mxu0 %v4234
        %v4409 = vpop.f32.mrb[0].mxu0
        %v4410 = vadd.f32 0.0, %v4409
        %v4411 = vpop.f32.mrb[0].mxu0
        %4412 = vmatprep.mubr.f32.mxu0 0.0
        %4413 = vmatmul.mubr.f32.gmra.mrb[0].mxu0 %v4237
        %v4414 = vpop.f32.mrb[0].mxu0
        %v4415 = vadd.f32 0.0, %v4414
        %v4416 = vpop.f32.mrb[0].mxu0
        %4417 = vmatprep.mubr.f32.mxu0 0.0
        %4418 = vmatmul.mubr.f32.gmra.mrb[0].mxu0 %v4240
        %v4419 = vpop.f32.mrb[0].mxu0
        %v4420 = vadd.f32 0.0, %v4419
        %v4421 = vpop.f32.mrb[0].mxu0
        %4422 = vmatprep.mubr.f32.mxu0 0.0
        %4423 = vmatmul.mubr.f32.gmra.mrb[0].mxu0 %v4243
        %v4424 = vpop.f32.mrb[0].mxu0
        %v4425 = vadd.f32 0.0, %v4424
        %v4426 = vpop.f32.mrb[0].mxu0
        %4427 = vmatprep.mubr.f32.mxu0 0.0
        %4428 = vmatmul.mubr.f32.gmra.mrb[0].mxu0 %v4246
        %v4429 = vpop.f32.mrb[0].mxu0
        %v4430 = vadd.f32 0.0, %v4429
        %v4431 = vpop.f32.mrb[0].mxu0
        %4432 = vmatprep.mubr.f32.mxu0 0.0
        %4433 = vmatmul.mubr.f32.gmra.mrb[0].mxu0 %v4249
        %v4434 = vpop.f32.mrb[0].mxu0
        %v4435 = vadd.f32 0.0, %v4434
        %v4436 = vpop.f32.mrb[0].mxu0
        %4437 = vmatprep.mubr.f32.mxu0 0.0
        %4438 = vmatmul.mubr.f32.gmra.mrb[0].mxu0 %v4252
        %v4439 = vpop.f32.mrb[0].mxu0
        %v4440 = vadd.f32 0.0, %v4439
        %v4441 = vpop.f32.mrb[0].mxu0
        %4442 = vmatprep.mubr.f32.mxu0 0.0
        %4443 = vmatmul.mubr.f32.gmra.mrb[0].mxu0 %v4255
        %v4444 = vpop.f32.mrb[0].mxu0
        %v4445 = vadd.f32 0.0, %v4444
        %v4446 = vpop.f32.mrb[0].mxu0
        %4447 = vmatprep.mubr.f32.mxu0 0.0
        %4448 = vmatmul.mubr.f32.gmra.mrb[0].mxu0 %v4258
        %v4449 = vpop.f32.mrb[0].mxu0
        %v4450 = vadd.f32 0.0, %v4449
        %v4451 = vpop.f32.mrb[0].mxu0
        %4452 = vmatprep.mubr.f32.mxu0 0.0
        %4453 = vmatmul.mubr.f32.gmra.mrb[0].mxu0 %v4261
        %v4454 = vpop.f32.mrb[0].mxu0
        %v4455 = vadd.f32 0.0, %v4454
        %v4456 = vpop.f32.mrb[0].mxu0
        %4457 = vmatprep.mubr.f32.mxu0 0.0
        %4458 = vmatmul.mubr.f32.gmra.mrb[0].mxu0 %v4264
        %v4459 = vpop.f32.mrb[0].mxu0
        %v4460 = vadd.f32 0.0, %v4459
        %v4461 = vpop.f32.mrb[0].mxu0
        %4462 = vmatprep.mubr.f32.mxu0 0.0
        %4463 = vmatmul.mubr.f32.gmra.mrb[0].mxu0 %v4267
        %v4464 = vpop.f32.mrb[0].mxu0
        %v4465 = vadd.f32 0.0, %v4464
        %v4466 = vpop.f32.mrb[0].mxu0
        %4467 = vmatprep.mubr.f32.mxu0 0.0
        %4468 = vmatmul.mubr.f32.gmra.mrb[0].mxu0 %v4270
        %v4469 = vpop.f32.mrb[0].mxu0
        %v4470 = vadd.f32 0.0, %v4469
        %v4471 = vpop.f32.mrb[0].mxu0
        %4472 = vmatprep.mubr.f32.mxu0 0.0
        %4473 = vmatmul.mubr.f32.gmra.mrb[0].mxu0 %v4273
        %v4474 = vpop.f32.mrb[0].mxu0
        %v4475 = vadd.f32 0.0, %v4474
        %v4476 = vpop.f32.mrb[0].mxu0
        %4477 = vmatprep.mubr.f32.mxu0 0.0
        %4478 = vmatmul.mubr.f32.gmra.mrb[0].mxu0 %v4276
        %v4479 = vpop.f32.mrb[0].mxu0
        %v4480 = vadd.f32 0.0, %v4479
        %v4481 = vpop.f32.mrb[0].mxu0
        %4482 = vmatprep.mubr.f32.mxu0 0.0
        %4483 = vmatmul.mubr.f32.gmra.mrb[0].mxu0 %v4279
        %v4484 = vpop.f32.mrb[0].mxu0
        %v4485 = vadd.f32 0.0, %v4484
        %v4486 = vpop.f32.mrb[0].mxu0
        %4487 = vmatprep.mubr.f32.mxu0 0.0
        %4488 = vmatmul.mubr.f32.gmra.mrb[0].mxu0 %v4282
        %v4489 = vpop.f32.mrb[0].mxu0
        %v4490 = vadd.f32 0.0, %v4489
        %v4491 = vpop.f32.mrb[0].mxu0
        %4492 = vmatprep.mubr.f32.mxu0 0.0
        %4493 = vmatmul.mubr.f32.gmra.mrb[0].mxu0 %v4285
        %v4494 = vpop.f32.mrb[0].mxu0
        %v4495 = vadd.f32 0.0, %v4494
        %v4496 = vpop.f32.mrb[0].mxu0
        %4497 = vmatprep.mubr.f32.mxu0 0.0
        %4498 = vmatmul.mubr.f32.gmra.mrb[0].mxu0 %v4288
        %v4499 = vpop.f32.mrb[0].mxu0
        %v4500 = vadd.f32 0.0, %v4499
        %v4501 = vpop.f32.mrb[0].mxu0
        %4502 = vmatprep.mubr.f32.mxu0 0.0
        %4503 = vmatmul.mubr.f32.gmra.mrb[0].mxu0 %v4291
        %v4504 = vpop.f32.mrb[0].mxu0
        %v4505 = vadd.f32 0.0, %v4504
        %v4506 = vpop.f32.mrb[0].mxu0
        %4507 = vmatprep.mubr.f32.mxu0 0.0
        %4508 = vmatmul.mubr.f32.gmra.mrb[0].mxu0 %v4294
        %v4509 = vpop.f32.mrb[0].mxu0
        %v4510 = vadd.f32 0.0, %v4509
        %v4511 = vpop.f32.mrb[0].mxu0
        %4512 = vmatprep.mubr.f32.mxu0 0.0
        %4513 = vmatmul.mubr.f32.gmra.mrb[0].mxu0 %v4297
        %v4514 = vpop.f32.mrb[0].mxu0
        %v4515 = vadd.f32 0.0, %v4514
        %v4516 = vpop.f32.mrb[0].mxu0
        %4517 = vmatprep.mubr.f32.mxu0 0.0
        %4518 = vmatmul.mubr.f32.gmra.mrb[0].mxu0 %v4300
        %v4519 = vpop.f32.mrb[0].mxu0
        %v4520 = vadd.f32 0.0, %v4519
        %v4521 = vpop.f32.mrb[0].mxu0
        %4522 = vmatprep.mubr.f32.mxu0 0.0
        %4523 = vmatmul.mubr.f32.gmra.mrb[0].mxu0 %v4303
        %v4524 = vpop.f32.mrb[0].mxu0
        %v4525 = vadd.f32 0.0, %v4524
        %v4526 = vpop.f32.mrb[0].mxu0
        %4527 = vmatprep.mubr.f32.mxu0 0.0
        %4528 = vmatmul.mubr.f32.gmra.mrb[0].mxu0 %v4306
        %v4529 = vpop.f32.mrb[0].mxu0
        %v4530 = vadd.f32 0.0, %v4529
        %v4531 = vpop.f32.mrb[0].mxu0
        %4532 = vmatprep.mubr.f32.mxu0 0.0
        %4533 = vmatmul.mubr.f32.gmra.mrb[0].mxu0 %v4309
        %v4534 = vpop.f32.mrb[0].mxu0
        %v4535 = vadd.f32 0.0, %v4534
        %v4536 = vpop.f32.mrb[0].mxu0
        %4537 = vmatprep.mubr.f32.mxu0 0.0
        %4538 = vmatmul.mubr.f32.gmra.mrb[0].mxu0 %v4312
        %v4539 = vpop.f32.mrb[0].mxu0
        %v4540 = vadd.f32 0.0, %v4539
        %v4541 = vpop.f32.mrb[0].mxu0
        %4542 = vmatprep.mubr.f32.mxu0 0.0
        %4543 = vmatmul.mubr.f32.gmra.mrb[0].mxu0 %v4315
        %v4544 = vpop.f32.mrb[0].mxu0
        %v4545 = vadd.f32 0.0, %v4544
        %v4546 = vpop.f32.mrb[0].mxu0
        %4547 = vmatprep.mubr.f32.mxu0 0.0
        %4548 = vmatmul.mubr.f32.gmra.mrb[0].mxu0 %v4318
        %v4549 = vpop.f32.mrb[0].mxu0
        %v4550 = vadd.f32 0.0, %v4549
        %v4551 = vpop.f32.mrb[0].mxu0
        %4552 = vmatprep.mubr.f32.mxu0 0.0
        %4553 = vmatmul.mubr.f32.gmra.mrb[0].mxu0 %v4321
        %v4554 = vpop.f32.mrb[0].mxu0
        %v4555 = vadd.f32 0.0, %v4554
        %v4556 = vpop.f32.mrb[0].mxu0
        %4557 = vmatprep.mubr.f32.mxu0 0.0
        %4558 = vmatmul.mubr.f32.gmra.mrb[0].mxu0 %v4324
        %v4559 = vpop.f32.mrb[0].mxu0
        %v4560 = vadd.f32 0.0, %v4559
        %v4561 = vpop.f32.mrb[0].mxu0
        %4562 = vmatprep.mubr.f32.mxu0 0.0
        %4563 = vmatmul.mubr.f32.gmra.mrb[0].mxu0 %v4327
        %v4564 = vpop.f32.mrb[0].mxu0
        %v4565 = vadd.f32 0.0, %v4564
        %v4566 = vpop.f32.mrb[0].mxu0
        %4567 = vmatprep.mubr.f32.mxu0 0.0
        %4568 = vmatmul.mubr.f32.gmra.mrb[0].mxu0 %v4330
        %v4569 = vpop.f32.mrb[0].mxu0
        %v4570 = vadd.f32 0.0, %v4569
        %v4571 = vpop.f32.mrb[0].mxu0
        %4572 = vmatprep.mubr.f32.mxu0 0.0
        %4573 = vmatmul.mubr.f32.gmra.mrb[0].mxu0 %v4333
        %v4574 = vpop.f32.mrb[0].mxu0
        %v4575 = vadd.f32 0.0, %v4574
        %v4576 = vpop.f32.mrb[0].mxu0
        %4577 = vmatprep.mubr.f32.mxu0 0.0
        %4578 = vmatmul.mubr.f32.gmra.mrb[0].mxu0 %v4336
        %v4579 = vpop.f32.mrb[0].mxu0
        %v4580 = vadd.f32 0.0, %v4579
        %v4581 = vpop.f32.mrb[0].mxu0
        %4582 = vdwg.mxu0
        %v4583 = vld [vmem:[%s191] sm:$0xff]
        %v4584 = vld [vmem:[%s191 + $0x8] sm:$0xff]
        %v4585 = vld [vmem:[%s191 + $0x10] sm:$0xff]
        %v4586 = vld [vmem:[%s191 + $0x18] sm:$0xff]
        %v4587 = vld [vmem:[%s191 + $0x20] sm:$0xff]
        %v4588 = vld [vmem:[%s191 + $0x28] sm:$0xff]
        %v4589 = vld [vmem:[%s191 + $0x30] sm:$0xff]
        %v4590 = vld [vmem:[%s191 + $0x38] sm:$0xff]
        %v4591 = vld [vmem:[%s191 + $0x40] sm:$0xff]
        %v4592 = vld [vmem:[%s191 + $0x48] sm:$0xff]
        %v4593 = vld [vmem:[%s191 + $0x50] sm:$0xff]
        %v4594 = vld [vmem:[%s191 + $0x58] sm:$0xff]
        %v4595 = vld [vmem:[%s191 + $0x60] sm:$0xff]
        %v4596 = vld [vmem:[%s191 + $0x68] sm:$0xff]
        %v4597 = vld [vmem:[%s191 + $0x70] sm:$0xff]
        %v4598 = vld [vmem:[%s191 + $0x78] sm:$0xff]
        %v4599 = vld [vmem:[%s191 + $0x80] sm:$0xff]
        %v4600 = vld [vmem:[%s191 + $0x88] sm:$0xff]
        %v4601 = vld [vmem:[%s191 + $0x90] sm:$0xff]
        %v4602 = vld [vmem:[%s191 + $0x98] sm:$0xff]
        %v4603 = vld [vmem:[%s191 + $0xa0] sm:$0xff]
        %v4604 = vld [vmem:[%s191 + $0xa8] sm:$0xff]
        %v4605 = vld [vmem:[%s191 + $0xb0] sm:$0xff]
        %v4606 = vld [vmem:[%s191 + $0xb8] sm:$0xff]
        %v4607 = vld [vmem:[%s191 + $0xc0] sm:$0xff]
        %v4608 = vld [vmem:[%s191 + $0xc8] sm:$0xff]
        %v4609 = vld [vmem:[%s191 + $0xd0] sm:$0xff]
        %v4610 = vld [vmem:[%s191 + $0xd8] sm:$0xff]
        %v4611 = vld [vmem:[%s191 + $0xe0] sm:$0xff]
        %v4612 = vld [vmem:[%s191 + $0xe8] sm:$0xff]
        %v4613 = vld [vmem:[%s191 + $0xf0] sm:$0xff]
        %v4614 = vld [vmem:[%s191 + $0xf8] sm:$0xff]
        %v4615 = vld [vmem:[%s191 + $0x100] sm:$0xff]
        %v4616 = vld [vmem:[%s191 + $0x108] sm:$0xff]
        %v4617 = vld [vmem:[%s191 + $0x110] sm:$0xff]
        %v4618 = vld [vmem:[%s191 + $0x118] sm:$0xff]
        %v4619 = vadd.f32 %v4583, %v4405
        %v4620 = vadd.f32 %v4584, %v4410
        %v4621 = vadd.f32 %v4585, %v4415
        %v4622 = vadd.f32 %v4586, %v4420
        %v4623 = vadd.f32 %v4587, %v4425
        %v4624 = vadd.f32 %v4588, %v4430
        %v4625 = vadd.f32 %v4589, %v4435
        %v4626 = vadd.f32 %v4590, %v4440
        %v4627 = vadd.f32 %v4591, %v4445
        %v4628 = vadd.f32 %v4592, %v4450
        %v4629 = vadd.f32 %v4593, %v4455
        %v4630 = vadd.f32 %v4594, %v4460
        %v4631 = vadd.f32 %v4595, %v4465
        %v4632 = vadd.f32 %v4596, %v4470
        %v4633 = vadd.f32 %v4597, %v4475
        %v4634 = vadd.f32 %v4598, %v4480
        %v4635 = vadd.f32 %v4599, %v4485
        %v4636 = vadd.f32 %v4600, %v4490
        %v4637 = vadd.f32 %v4601, %v4495
        %v4638 = vadd.f32 %v4602, %v4500
        %v4639 = vadd.f32 %v4603, %v4505
        %v4640 = vadd.f32 %v4604, %v4510
        %v4641 = vadd.f32 %v4605, %v4515
        %v4642 = vadd.f32 %v4606, %v4520
        %v4643 = vadd.f32 %v4607, %v4525
        %v4644 = vadd.f32 %v4608, %v4530
        %v4645 = vadd.f32 %v4609, %v4535
        %v4646 = vadd.f32 %v4610, %v4540
        %v4647 = vadd.f32 %v4611, %v4545
        %v4648 = vadd.f32 %v4612, %v4550
        %v4649 = vadd.f32 %v4613, %v4555
        %v4650 = vadd.f32 %v4614, %v4560
        %v4651 = vadd.f32 %v4615, %v4565
        %v4652 = vadd.f32 %v4616, %v4570
        %v4653 = vadd.f32 %v4617, %v4575
        %v4654 = vadd.f32 %v4618, %v4580
        %4655 = vst [vmem:[%s191] sm:$0xff] %v4619
        %4656 = vst [vmem:[%s191 + $0x8] sm:$0xff] %v4620
        %4657 = vst [vmem:[%s191 + $0x10] sm:$0xff] %v4621
        %4658 = vst [vmem:[%s191 + $0x18] sm:$0xff] %v4622
        %4659 = vst [vmem:[%s191 + $0x20] sm:$0xff] %v4623
        %4660 = vst [vmem:[%s191 + $0x28] sm:$0xff] %v4624
        %4661 = vst [vmem:[%s191 + $0x30] sm:$0xff] %v4625
        %4662 = vst [vmem:[%s191 + $0x38] sm:$0xff] %v4626
        %4663 = vst [vmem:[%s191 + $0x40] sm:$0xff] %v4627
        %4664 = vst [vmem:[%s191 + $0x48] sm:$0xff] %v4628
        %4665 = vst [vmem:[%s191 + $0x50] sm:$0xff] %v4629
        %4666 = vst [vmem:[%s191 + $0x58] sm:$0xff] %v4630
        %4667 = vst [vmem:[%s191 + $0x60] sm:$0xff] %v4631
        %4668 = vst [vmem:[%s191 + $0x68] sm:$0xff] %v4632
        %4669 = vst [vmem:[%s191 + $0x70] sm:$0xff] %v4633
        %4670 = vst [vmem:[%s191 + $0x78] sm:$0xff] %v4634
        %4671 = vst [vmem:[%s191 + $0x80] sm:$0xff] %v4635
        %4672 = vst [vmem:[%s191 + $0x88] sm:$0xff] %v4636
        %4673 = vst [vmem:[%s191 + $0x90] sm:$0xff] %v4637
        %4674 = vst [vmem:[%s191 + $0x98] sm:$0xff] %v4638
        %4675 = vst [vmem:[%s191 + $0xa0] sm:$0xff] %v4639
        %4676 = vst [vmem:[%s191 + $0xa8] sm:$0xff] %v4640
        %4677 = vst [vmem:[%s191 + $0xb0] sm:$0xff] %v4641
        %4678 = vst [vmem:[%s191 + $0xb8] sm:$0xff] %v4642
        %4679 = vst [vmem:[%s191 + $0xc0] sm:$0xff] %v4643
        %4680 = vst [vmem:[%s191 + $0xc8] sm:$0xff] %v4644
        %4681 = vst [vmem:[%s191 + $0xd0] sm:$0xff] %v4645
        %4682 = vst [vmem:[%s191 + $0xd8] sm:$0xff] %v4646
        %4683 = vst [vmem:[%s191 + $0xe0] sm:$0xff] %v4647
        %4684 = vst [vmem:[%s191 + $0xe8] sm:$0xff] %v4648
        %4685 = vst [vmem:[%s191 + $0xf0] sm:$0xff] %v4649
        %4686 = vst [vmem:[%s191 + $0xf8] sm:$0xff] %v4650
        %4687 = vst [vmem:[%s191 + $0x100] sm:$0xff] %v4651
        %4688 = vst [vmem:[%s191 + $0x108] sm:$0xff] %v4652
        %4689 = vst [vmem:[%s191 + $0x110] sm:$0xff] %v4653
        %4690 = vst [vmem:[%s191 + $0x118] sm:$0xff] %v4654
        %v4691 = vld [vmem:[%s191] sm:$0xff]
        %v4692 = vld [vmem:[%s191 + $0x8] sm:$0xff]
        %v4693 = vld [vmem:[%s191 + $0x10] sm:$0xff]
        %v4694 = vld [vmem:[%s191 + $0x18] sm:$0xff]
        %v4695 = vld [vmem:[%s191 + $0x20] sm:$0xff]
        %v4696 = vld [vmem:[%s191 + $0x28] sm:$0xff]
        %v4697 = vld [vmem:[%s191 + $0x30] sm:$0xff]
        %v4698 = vld [vmem:[%s191 + $0x38] sm:$0xff]
        %v4699 = vld [vmem:[%s191 + $0x40] sm:$0xff]
        %v4700 = vld [vmem:[%s191 + $0x48] sm:$0xff]
        %v4701 = vld [vmem:[%s191 + $0x50] sm:$0xff]
        %v4702 = vld [vmem:[%s191 + $0x58] sm:$0xff]
        %v4703 = vld [vmem:[%s191 + $0x60] sm:$0xff]
        %v4704 = vld [vmem:[%s191 + $0x68] sm:$0xff]
        %v4705 = vld [vmem:[%s191 + $0x70] sm:$0xff]
        %v4706 = vld [vmem:[%s191 + $0x78] sm:$0xff]
        %v4707 = vld [vmem:[%s191 + $0x80] sm:$0xff]
        %v4708 = vld [vmem:[%s191 + $0x88] sm:$0xff]
        %v4709 = vld [vmem:[%s191 + $0x90] sm:$0xff]
        %v4710 = vld [vmem:[%s191 + $0x98] sm:$0xff]
        %v4711 = vld [vmem:[%s191 + $0xa0] sm:$0xff]
        %v4712 = vld [vmem:[%s191 + $0xa8] sm:$0xff]
        %v4713 = vld [vmem:[%s191 + $0xb0] sm:$0xff]
        %v4714 = vld [vmem:[%s191 + $0xb8] sm:$0xff]
        %v4715 = vld [vmem:[%s191 + $0xc0] sm:$0xff]
        %v4716 = vld [vmem:[%s191 + $0xc8] sm:$0xff]
        %v4717 = vld [vmem:[%s191 + $0xd0] sm:$0xff]
        %v4718 = vld [vmem:[%s191 + $0xd8] sm:$0xff]
        %v4719 = vld [vmem:[%s191 + $0xe0] sm:$0xff]
        %v4720 = vld [vmem:[%s191 + $0xe8] sm:$0xff]
        %v4721 = vld [vmem:[%s191 + $0xf0] sm:$0xff]
        %v4722 = vld [vmem:[%s191 + $0xf8] sm:$0xff]
        %v4723 = vld [vmem:[%s191 + $0x100] sm:$0xff]
        %v4724 = vld [vmem:[%s191 + $0x108] sm:$0xff]
        %v4725 = vld [vmem:[%s191 + $0x110] sm:$0xff]
        %v4726 = vld [vmem:[%s191 + $0x118] sm:$0xff]
        %v4727 = vlaneseq
        %v4728 = vshrl.u32 %v4727, 7
        %v4729 = vadd.s32 %v4728, 8
        %v4730 = vadd.s32 %v4728, 16
        %v4731 = vadd.s32 %v4728, 24
        %v4732 = vadd.s32 %v4728, 32
        %v4733 = vadd.s32 %v4728, 40
        %v4734 = vadd.s32 %v4728, 48
        %v4735 = vadd.s32 %v4728, 56
        %v4736 = vadd.s32 %v4728, 64
        %v4737 = vadd.s32 %v4728, 72
        %v4738 = vadd.s32 %v4728, 80
        %v4739 = vadd.s32 %v4728, 88
        %v4740 = vadd.s32 %v4728, 96
        %v4741 = vadd.s32 %v4728, 104
        %v4742 = vadd.s32 %v4728, 112
        %v4743 = vadd.s32 %v4728, 120
        %v4744 = vadd.s32 %v4728, 128
        %v4745 = vadd.s32 %v4728, 136
        %v4746 = vadd.s32 %v4728, 144
        %v4747 = vadd.s32 %v4728, 152
        %v4748 = vadd.s32 %v4728, 160
        %v4749 = vadd.s32 %v4728, 168
        %v4750 = vadd.s32 %v4728, 176
        %v4751 = vadd.s32 %v4728, 184
        %v4752 = vadd.s32 %v4728, 192
        %v4753 = vadd.s32 %v4728, 200
        %v4754 = vadd.s32 %v4728, 208
        %v4755 = vadd.s32 %v4728, 216
        %v4756 = vadd.s32 %v4728, 224
        %v4757 = vadd.s32 %v4728, 232
        %v4758 = vadd.s32 %v4728, 240
        %v4759 = vadd.s32 %v4728, 248
        %v4760 = vadd.s32 %v4728, 256
        %v4761 = vadd.s32 %v4728, 264
        %v4762 = vadd.s32 %v4728, 272
        %v4763 = vadd.s32 %v4728, 280
        %vm4764 = vcmp.lt.s32.totalorder %v4728, 0
        %v4765 = vsub.s32 0, %v4728
        %v4766 = vsel %vm4764, %v4765, %v4728
        %v4767 = vmul.u32.u64.compose %v4766, 3817748708
        %v4768 = vextract.low.u32 %v4767
        %v4769 = vextract.high.u32 %v4767
        %v4770 = vshrl.u32 %v4769, 4
        %v4771 = vmul.u32 %v4770, 18
        %v4772 = vsub.s32 %v4766, %v4771
        %v4773 = vsub.s32 0, %v4772
        %v4774 = vsel %vm4764, %v4773, %v4772
        %vm4775 = vcmp.lt.s32.totalorder %v4729, 0
        %v4776 = vsub.s32 0, %v4729
        %v4777 = vsel %vm4775, %v4776, %v4729
        %v4778 = vmul.u32.u64.compose %v4777, 3817748708
        %v4779 = vextract.low.u32 %v4778
        %v4780 = vextract.high.u32 %v4778
        %v4781 = vshrl.u32 %v4780, 4
        %v4782 = vmul.u32 %v4781, 18
        %v4783 = vsub.s32 %v4777, %v4782
        %v4784 = vsub.s32 0, %v4783
        %v4785 = vsel %vm4775, %v4784, %v4783
        %vm4786 = vcmp.lt.s32.totalorder %v4730, 0
        %v4787 = vsub.s32 0, %v4730
        %v4788 = vsel %vm4786, %v4787, %v4730
        %v4789 = vmul.u32.u64.compose %v4788, 3817748708
        %v4790 = vextract.low.u32 %v4789
        %v4791 = vextract.high.u32 %v4789
        %v4792 = vshrl.u32 %v4791, 4
        %v4793 = vmul.u32 %v4792, 18
        %v4794 = vsub.s32 %v4788, %v4793
        %v4795 = vsub.s32 0, %v4794
        %v4796 = vsel %vm4786, %v4795, %v4794
        %vm4797 = vcmp.lt.s32.totalorder %v4731, 0
        %v4798 = vsub.s32 0, %v4731
        %v4799 = vsel %vm4797, %v4798, %v4731
        %v4800 = vmul.u32.u64.compose %v4799, 3817748708
        %v4801 = vextract.low.u32 %v4800
        %v4802 = vextract.high.u32 %v4800
        %v4803 = vshrl.u32 %v4802, 4
        %v4804 = vmul.u32 %v4803, 18
        %v4805 = vsub.s32 %v4799, %v4804
        %v4806 = vsub.s32 0, %v4805
        %v4807 = vsel %vm4797, %v4806, %v4805
        %vm4808 = vcmp.lt.s32.totalorder %v4732, 0
        %v4809 = vsub.s32 0, %v4732
        %v4810 = vsel %vm4808, %v4809, %v4732
        %v4811 = vmul.u32.u64.compose %v4810, 3817748708
        %v4812 = vextract.low.u32 %v4811
        %v4813 = vextract.high.u32 %v4811
        %v4814 = vshrl.u32 %v4813, 4
        %v4815 = vmul.u32 %v4814, 18
        %v4816 = vsub.s32 %v4810, %v4815
        %v4817 = vsub.s32 0, %v4816
        %v4818 = vsel %vm4808, %v4817, %v4816
        %vm4819 = vcmp.lt.s32.totalorder %v4733, 0
        %v4820 = vsub.s32 0, %v4733
        %v4821 = vsel %vm4819, %v4820, %v4733
        %v4822 = vmul.u32.u64.compose %v4821, 3817748708
        %v4823 = vextract.low.u32 %v4822
        %v4824 = vextract.high.u32 %v4822
        %v4825 = vshrl.u32 %v4824, 4
        %v4826 = vmul.u32 %v4825, 18
        %v4827 = vsub.s32 %v4821, %v4826
        %v4828 = vsub.s32 0, %v4827
        %v4829 = vsel %vm4819, %v4828, %v4827
        %vm4830 = vcmp.lt.s32.totalorder %v4734, 0
        %v4831 = vsub.s32 0, %v4734
        %v4832 = vsel %vm4830, %v4831, %v4734
        %v4833 = vmul.u32.u64.compose %v4832, 3817748708
        %v4834 = vextract.low.u32 %v4833
        %v4835 = vextract.high.u32 %v4833
        %v4836 = vshrl.u32 %v4835, 4
        %v4837 = vmul.u32 %v4836, 18
        %v4838 = vsub.s32 %v4832, %v4837
        %v4839 = vsub.s32 0, %v4838
        %v4840 = vsel %vm4830, %v4839, %v4838
        %vm4841 = vcmp.lt.s32.totalorder %v4735, 0
        %v4842 = vsub.s32 0, %v4735
        %v4843 = vsel %vm4841, %v4842, %v4735
        %v4844 = vmul.u32.u64.compose %v4843, 3817748708
        %v4845 = vextract.low.u32 %v4844
        %v4846 = vextract.high.u32 %v4844
        %v4847 = vshrl.u32 %v4846, 4
        %v4848 = vmul.u32 %v4847, 18
        %v4849 = vsub.s32 %v4843, %v4848
        %v4850 = vsub.s32 0, %v4849
        %v4851 = vsel %vm4841, %v4850, %v4849
        %vm4852 = vcmp.lt.s32.totalorder %v4736, 0
        %v4853 = vsub.s32 0, %v4736
        %v4854 = vsel %vm4852, %v4853, %v4736
        %v4855 = vmul.u32.u64.compose %v4854, 3817748708
        %v4856 = vextract.low.u32 %v4855
        %v4857 = vextract.high.u32 %v4855
        %v4858 = vshrl.u32 %v4857, 4
        %v4859 = vmul.u32 %v4858, 18
        %v4860 = vsub.s32 %v4854, %v4859
        %v4861 = vsub.s32 0, %v4860
        %v4862 = vsel %vm4852, %v4861, %v4860
        %vm4863 = vcmp.lt.s32.totalorder %v4737, 0
        %v4864 = vsub.s32 0, %v4737
        %v4865 = vsel %vm4863, %v4864, %v4737
        %v4866 = vmul.u32.u64.compose %v4865, 3817748708
        %v4867 = vextract.low.u32 %v4866
        %v4868 = vextract.high.u32 %v4866
        %v4869 = vshrl.u32 %v4868, 4
        %v4870 = vmul.u32 %v4869, 18
        %v4871 = vsub.s32 %v4865, %v4870
        %v4872 = vsub.s32 0, %v4871
        %v4873 = vsel %vm4863, %v4872, %v4871
        %vm4874 = vcmp.lt.s32.totalorder %v4738, 0
        %v4875 = vsub.s32 0, %v4738
        %v4876 = vsel %vm4874, %v4875, %v4738
        %v4877 = vmul.u32.u64.compose %v4876, 3817748708
        %v4878 = vextract.low.u32 %v4877
        %v4879 = vextract.high.u32 %v4877
        %v4880 = vshrl.u32 %v4879, 4
        %v4881 = vmul.u32 %v4880, 18
        %v4882 = vsub.s32 %v4876, %v4881
        %v4883 = vsub.s32 0, %v4882
        %v4884 = vsel %vm4874, %v4883, %v4882
        %vm4885 = vcmp.lt.s32.totalorder %v4739, 0
        %v4886 = vsub.s32 0, %v4739
        %v4887 = vsel %vm4885, %v4886, %v4739
        %v4888 = vmul.u32.u64.compose %v4887, 3817748708
        %v4889 = vextract.low.u32 %v4888
        %v4890 = vextract.high.u32 %v4888
        %v4891 = vshrl.u32 %v4890, 4
        %v4892 = vmul.u32 %v4891, 18
        %v4893 = vsub.s32 %v4887, %v4892
        %v4894 = vsub.s32 0, %v4893
        %v4895 = vsel %vm4885, %v4894, %v4893
        %vm4896 = vcmp.lt.s32.totalorder %v4740, 0
        %v4897 = vsub.s32 0, %v4740
        %v4898 = vsel %vm4896, %v4897, %v4740
        %v4899 = vmul.u32.u64.compose %v4898, 3817748708
        %v4900 = vextract.low.u32 %v4899
        %v4901 = vextract.high.u32 %v4899
        %v4902 = vshrl.u32 %v4901, 4
        %v4903 = vmul.u32 %v4902, 18
        %v4904 = vsub.s32 %v4898, %v4903
        %v4905 = vsub.s32 0, %v4904
        %v4906 = vsel %vm4896, %v4905, %v4904
        %vm4907 = vcmp.lt.s32.totalorder %v4741, 0
        %v4908 = vsub.s32 0, %v4741
        %v4909 = vsel %vm4907, %v4908, %v4741
        %v4910 = vmul.u32.u64.compose %v4909, 3817748708
        %v4911 = vextract.low.u32 %v4910
        %v4912 = vextract.high.u32 %v4910
        %v4913 = vshrl.u32 %v4912, 4
        %v4914 = vmul.u32 %v4913, 18
        %v4915 = vsub.s32 %v4909, %v4914
        %v4916 = vsub.s32 0, %v4915
        %v4917 = vsel %vm4907, %v4916, %v4915
        %vm4918 = vcmp.lt.s32.totalorder %v4742, 0
        %v4919 = vsub.s32 0, %v4742
        %v4920 = vsel %vm4918, %v4919, %v4742
        %v4921 = vmul.u32.u64.compose %v4920, 3817748708
        %v4922 = vextract.low.u32 %v4921
        %v4923 = vextract.high.u32 %v4921
        %v4924 = vshrl.u32 %v4923, 4
        %v4925 = vmul.u32 %v4924, 18
        %v4926 = vsub.s32 %v4920, %v4925
        %v4927 = vsub.s32 0, %v4926
        %v4928 = vsel %vm4918, %v4927, %v4926
        %vm4929 = vcmp.lt.s32.totalorder %v4743, 0
        %v4930 = vsub.s32 0, %v4743
        %v4931 = vsel %vm4929, %v4930, %v4743
        %v4932 = vmul.u32.u64.compose %v4931, 3817748708
        %v4933 = vextract.low.u32 %v4932
        %v4934 = vextract.high.u32 %v4932
        %v4935 = vshrl.u32 %v4934, 4
        %v4936 = vmul.u32 %v4935, 18
        %v4937 = vsub.s32 %v4931, %v4936
        %v4938 = vsub.s32 0, %v4937
        %v4939 = vsel %vm4929, %v4938, %v4937
        %vm4940 = vcmp.lt.s32.totalorder %v4744, 0
        %v4941 = vsub.s32 0, %v4744
        %v4942 = vsel %vm4940, %v4941, %v4744
        %v4943 = vmul.u32.u64.compose %v4942, 3817748708
        %v4944 = vextract.low.u32 %v4943
        %v4945 = vextract.high.u32 %v4943
        %v4946 = vshrl.u32 %v4945, 4
        %v4947 = vmul.u32 %v4946, 18
        %v4948 = vsub.s32 %v4942, %v4947
        %v4949 = vsub.s32 0, %v4948
        %v4950 = vsel %vm4940, %v4949, %v4948
        %vm4951 = vcmp.lt.s32.totalorder %v4745, 0
        %v4952 = vsub.s32 0, %v4745
        %v4953 = vsel %vm4951, %v4952, %v4745
        %v4954 = vmul.u32.u64.compose %v4953, 3817748708
        %v4955 = vextract.low.u32 %v4954
        %v4956 = vextract.high.u32 %v4954
        %v4957 = vshrl.u32 %v4956, 4
        %v4958 = vmul.u32 %v4957, 18
        %v4959 = vsub.s32 %v4953, %v4958
        %v4960 = vsub.s32 0, %v4959
        %v4961 = vsel %vm4951, %v4960, %v4959
        %vm4962 = vcmp.lt.s32.totalorder %v4746, 0
        %v4963 = vsub.s32 0, %v4746
        %v4964 = vsel %vm4962, %v4963, %v4746
        %v4965 = vmul.u32.u64.compose %v4964, 3817748708
        %v4966 = vextract.low.u32 %v4965
        %v4967 = vextract.high.u32 %v4965
        %v4968 = vshrl.u32 %v4967, 4
        %v4969 = vmul.u32 %v4968, 18
        %v4970 = vsub.s32 %v4964, %v4969
        %v4971 = vsub.s32 0, %v4970
        %v4972 = vsel %vm4962, %v4971, %v4970
        %vm4973 = vcmp.lt.s32.totalorder %v4747, 0
        %v4974 = vsub.s32 0, %v4747
        %v4975 = vsel %vm4973, %v4974, %v4747
        %v4976 = vmul.u32.u64.compose %v4975, 3817748708
        %v4977 = vextract.low.u32 %v4976
        %v4978 = vextract.high.u32 %v4976
        %v4979 = vshrl.u32 %v4978, 4
        %v4980 = vmul.u32 %v4979, 18
        %v4981 = vsub.s32 %v4975, %v4980
        %v4982 = vsub.s32 0, %v4981
        %v4983 = vsel %vm4973, %v4982, %v4981
        %vm4984 = vcmp.lt.s32.totalorder %v4748, 0
        %v4985 = vsub.s32 0, %v4748
        %v4986 = vsel %vm4984, %v4985, %v4748
        %v4987 = vmul.u32.u64.compose %v4986, 3817748708
        %v4988 = vextract.low.u32 %v4987
        %v4989 = vextract.high.u32 %v4987
        %v4990 = vshrl.u32 %v4989, 4
        %v4991 = vmul.u32 %v4990, 18
        %v4992 = vsub.s32 %v4986, %v4991
        %v4993 = vsub.s32 0, %v4992
        %v4994 = vsel %vm4984, %v4993, %v4992
        %vm4995 = vcmp.lt.s32.totalorder %v4749, 0
        %v4996 = vsub.s32 0, %v4749
        %v4997 = vsel %vm4995, %v4996, %v4749
        %v4998 = vmul.u32.u64.compose %v4997, 3817748708
        %v4999 = vextract.low.u32 %v4998
        %v5000 = vextract.high.u32 %v4998
        %v5001 = vshrl.u32 %v5000, 4
        %v5002 = vmul.u32 %v5001, 18
        %v5003 = vsub.s32 %v4997, %v5002
        %v5004 = vsub.s32 0, %v5003
        %v5005 = vsel %vm4995, %v5004, %v5003
        %vm5006 = vcmp.lt.s32.totalorder %v4750, 0
        %v5007 = vsub.s32 0, %v4750
        %v5008 = vsel %vm5006, %v5007, %v4750
        %v5009 = vmul.u32.u64.compose %v5008, 3817748708
        %v5010 = vextract.low.u32 %v5009
        %v5011 = vextract.high.u32 %v5009
        %v5012 = vshrl.u32 %v5011, 4
        %v5013 = vmul.u32 %v5012, 18
        %v5014 = vsub.s32 %v5008, %v5013
        %v5015 = vsub.s32 0, %v5014
        %v5016 = vsel %vm5006, %v5015, %v5014
        %vm5017 = vcmp.lt.s32.totalorder %v4751, 0
        %v5018 = vsub.s32 0, %v4751
        %v5019 = vsel %vm5017, %v5018, %v4751
        %v5020 = vmul.u32.u64.compose %v5019, 3817748708
        %v5021 = vextract.low.u32 %v5020
        %v5022 = vextract.high.u32 %v5020
        %v5023 = vshrl.u32 %v5022, 4
        %v5024 = vmul.u32 %v5023, 18
        %v5025 = vsub.s32 %v5019, %v5024
        %v5026 = vsub.s32 0, %v5025
        %v5027 = vsel %vm5017, %v5026, %v5025
        %vm5028 = vcmp.lt.s32.totalorder %v4752, 0
        %v5029 = vsub.s32 0, %v4752
        %v5030 = vsel %vm5028, %v5029, %v4752
        %v5031 = vmul.u32.u64.compose %v5030, 3817748708
        %v5032 = vextract.low.u32 %v5031
        %v5033 = vextract.high.u32 %v5031
        %v5034 = vshrl.u32 %v5033, 4
        %v5035 = vmul.u32 %v5034, 18
        %v5036 = vsub.s32 %v5030, %v5035
        %v5037 = vsub.s32 0, %v5036
        %v5038 = vsel %vm5028, %v5037, %v5036
        %vm5039 = vcmp.lt.s32.totalorder %v4753, 0
        %v5040 = vsub.s32 0, %v4753
        %v5041 = vsel %vm5039, %v5040, %v4753
        %v5042 = vmul.u32.u64.compose %v5041, 3817748708
        %v5043 = vextract.low.u32 %v5042
        %v5044 = vextract.high.u32 %v5042
        %v5045 = vshrl.u32 %v5044, 4
        %v5046 = vmul.u32 %v5045, 18
        %v5047 = vsub.s32 %v5041, %v5046
        %v5048 = vsub.s32 0, %v5047
        %v5049 = vsel %vm5039, %v5048, %v5047
        %vm5050 = vcmp.lt.s32.totalorder %v4754, 0
        %v5051 = vsub.s32 0, %v4754
        %v5052 = vsel %vm5050, %v5051, %v4754
        %v5053 = vmul.u32.u64.compose %v5052, 3817748708
        %v5054 = vextract.low.u32 %v5053
        %v5055 = vextract.high.u32 %v5053
        %v5056 = vshrl.u32 %v5055, 4
        %v5057 = vmul.u32 %v5056, 18
        %v5058 = vsub.s32 %v5052, %v5057
        %v5059 = vsub.s32 0, %v5058
        %v5060 = vsel %vm5050, %v5059, %v5058
        %vm5061 = vcmp.lt.s32.totalorder %v4755, 0
        %v5062 = vsub.s32 0, %v4755
        %v5063 = vsel %vm5061, %v5062, %v4755
        %v5064 = vmul.u32.u64.compose %v5063, 3817748708
        %v5065 = vextract.low.u32 %v5064
        %v5066 = vextract.high.u32 %v5064
        %v5067 = vshrl.u32 %v5066, 4
        %v5068 = vmul.u32 %v5067, 18
        %v5069 = vsub.s32 %v5063, %v5068
        %v5070 = vsub.s32 0, %v5069
        %v5071 = vsel %vm5061, %v5070, %v5069
        %vm5072 = vcmp.lt.s32.totalorder %v4756, 0
        %v5073 = vsub.s32 0, %v4756
        %v5074 = vsel %vm5072, %v5073, %v4756
        %v5075 = vmul.u32.u64.compose %v5074, 3817748708
        %v5076 = vextract.low.u32 %v5075
        %v5077 = vextract.high.u32 %v5075
        %v5078 = vshrl.u32 %v5077, 4
        %v5079 = vmul.u32 %v5078, 18
        %v5080 = vsub.s32 %v5074, %v5079
        %v5081 = vsub.s32 0, %v5080
        %v5082 = vsel %vm5072, %v5081, %v5080
        %vm5083 = vcmp.lt.s32.totalorder %v4757, 0
        %v5084 = vsub.s32 0, %v4757
        %v5085 = vsel %vm5083, %v5084, %v4757
        %v5086 = vmul.u32.u64.compose %v5085, 3817748708
        %v5087 = vextract.low.u32 %v5086
        %v5088 = vextract.high.u32 %v5086
        %v5089 = vshrl.u32 %v5088, 4
        %v5090 = vmul.u32 %v5089, 18
        %v5091 = vsub.s32 %v5085, %v5090
        %v5092 = vsub.s32 0, %v5091
        %v5093 = vsel %vm5083, %v5092, %v5091
        %vm5094 = vcmp.lt.s32.totalorder %v4758, 0
        %v5095 = vsub.s32 0, %v4758
        %v5096 = vsel %vm5094, %v5095, %v4758
        %v5097 = vmul.u32.u64.compose %v5096, 3817748708
        %v5098 = vextract.low.u32 %v5097
        %v5099 = vextract.high.u32 %v5097
        %v5100 = vshrl.u32 %v5099, 4
        %v5101 = vmul.u32 %v5100, 18
        %v5102 = vsub.s32 %v5096, %v5101
        %v5103 = vsub.s32 0, %v5102
        %v5104 = vsel %vm5094, %v5103, %v5102
        %vm5105 = vcmp.lt.s32.totalorder %v4759, 0
        %v5106 = vsub.s32 0, %v4759
        %v5107 = vsel %vm5105, %v5106, %v4759
        %v5108 = vmul.u32.u64.compose %v5107, 3817748708
        %v5109 = vextract.low.u32 %v5108
        %v5110 = vextract.high.u32 %v5108
        %v5111 = vshrl.u32 %v5110, 4
        %v5112 = vmul.u32 %v5111, 18
        %v5113 = vsub.s32 %v5107, %v5112
        %v5114 = vsub.s32 0, %v5113
        %v5115 = vsel %vm5105, %v5114, %v5113
        %vm5116 = vcmp.lt.s32.totalorder %v4760, 0
        %v5117 = vsub.s32 0, %v4760
        %v5118 = vsel %vm5116, %v5117, %v4760
        %v5119 = vmul.u32.u64.compose %v5118, 3817748708
        %v5120 = vextract.low.u32 %v5119
        %v5121 = vextract.high.u32 %v5119
        %v5122 = vshrl.u32 %v5121, 4
        %v5123 = vmul.u32 %v5122, 18
        %v5124 = vsub.s32 %v5118, %v5123
        %v5125 = vsub.s32 0, %v5124
        %v5126 = vsel %vm5116, %v5125, %v5124
        %vm5127 = vcmp.lt.s32.totalorder %v4761, 0
        %v5128 = vsub.s32 0, %v4761
        %v5129 = vsel %vm5127, %v5128, %v4761
        %v5130 = vmul.u32.u64.compose %v5129, 3817748708
        %v5131 = vextract.low.u32 %v5130
        %v5132 = vextract.high.u32 %v5130
        %v5133 = vshrl.u32 %v5132, 4
        %v5134 = vmul.u32 %v5133, 18
        %v5135 = vsub.s32 %v5129, %v5134
        %v5136 = vsub.s32 0, %v5135
        %v5137 = vsel %vm5127, %v5136, %v5135
        %vm5138 = vcmp.lt.s32.totalorder %v4762, 0
        %v5139 = vsub.s32 0, %v4762
        %v5140 = vsel %vm5138, %v5139, %v4762
        %v5141 = vmul.u32.u64.compose %v5140, 3817748708
        %v5142 = vextract.low.u32 %v5141
        %v5143 = vextract.high.u32 %v5141
        %v5144 = vshrl.u32 %v5143, 4
        %v5145 = vmul.u32 %v5144, 18
        %v5146 = vsub.s32 %v5140, %v5145
        %v5147 = vsub.s32 0, %v5146
        %v5148 = vsel %vm5138, %v5147, %v5146
        %vm5149 = vcmp.lt.s32.totalorder %v4763, 0
        %v5150 = vsub.s32 0, %v4763
        %v5151 = vsel %vm5149, %v5150, %v4763
        %v5152 = vmul.u32.u64.compose %v5151, 3817748708
        %v5153 = vextract.low.u32 %v5152
        %v5154 = vextract.high.u32 %v5152
        %v5155 = vshrl.u32 %v5154, 4
        %v5156 = vmul.u32 %v5155, 18
        %v5157 = vsub.s32 %v5151, %v5156
        %v5158 = vsub.s32 0, %v5157
        %v5159 = vsel %vm5149, %v5158, %v5157
        %vm5160 = vcmp.ne.s32.totalorder %v4774, 0
        %vm5161 = vcmp.ne.s32.totalorder %v4785, 0
        %vm5162 = vcmp.ne.s32.totalorder %v4796, 0
        %vm5163 = vcmp.ne.s32.totalorder %v4807, 0
        %vm5164 = vcmp.ne.s32.totalorder %v4818, 0
        %vm5165 = vcmp.ne.s32.totalorder %v4829, 0
        %vm5166 = vcmp.ne.s32.totalorder %v4840, 0
        %vm5167 = vcmp.ne.s32.totalorder %v4851, 0
        %vm5168 = vcmp.ne.s32.totalorder %v4862, 0
        %vm5169 = vcmp.ne.s32.totalorder %v4873, 0
        %vm5170 = vcmp.ne.s32.totalorder %v4884, 0
        %vm5171 = vcmp.ne.s32.totalorder %v4895, 0
        %vm5172 = vcmp.ne.s32.totalorder %v4906, 0
        %vm5173 = vcmp.ne.s32.totalorder %v4917, 0
        %vm5174 = vcmp.ne.s32.totalorder %v4928, 0
        %vm5175 = vcmp.ne.s32.totalorder %v4939, 0
        %vm5176 = vcmp.ne.s32.totalorder %v4950, 0
        %vm5177 = vcmp.ne.s32.totalorder %v4961, 0
        %vm5178 = vcmp.ne.s32.totalorder %v4972, 0
        %vm5179 = vcmp.ne.s32.totalorder %v4983, 0
        %vm5180 = vcmp.ne.s32.totalorder %v4994, 0
        %vm5181 = vcmp.ne.s32.totalorder %v5005, 0
        %vm5182 = vcmp.ne.s32.totalorder %v5016, 0
        %vm5183 = vcmp.ne.s32.totalorder %v5027, 0
        %vm5184 = vcmp.ne.s32.totalorder %v5038, 0
        %vm5185 = vcmp.ne.s32.totalorder %v5049, 0
        %vm5186 = vcmp.ne.s32.totalorder %v5060, 0
        %vm5187 = vcmp.ne.s32.totalorder %v5071, 0
        %vm5188 = vcmp.ne.s32.totalorder %v5082, 0
        %vm5189 = vcmp.ne.s32.totalorder %v5093, 0
        %vm5190 = vcmp.ne.s32.totalorder %v5104, 0
        %vm5191 = vcmp.ne.s32.totalorder %v5115, 0
        %vm5192 = vcmp.ne.s32.totalorder %v5126, 0
        %vm5193 = vcmp.ne.s32.totalorder %v5137, 0
        %vm5194 = vcmp.ne.s32.totalorder %v5148, 0
        %vm5195 = vcmp.ne.s32.totalorder %v5159, 0
        %vm5196 = vcmp.lt.s32.totalorder %v4774, 0
        %vm5197 = vcmp.lt.s32.totalorder %v4785, 0
        %vm5198 = vcmp.lt.s32.totalorder %v4796, 0
        %vm5199 = vcmp.lt.s32.totalorder %v4807, 0
        %vm5200 = vcmp.lt.s32.totalorder %v4818, 0
        %vm5201 = vcmp.lt.s32.totalorder %v4829, 0
        %vm5202 = vcmp.lt.s32.totalorder %v4840, 0
        %vm5203 = vcmp.lt.s32.totalorder %v4851, 0
        %vm5204 = vcmp.lt.s32.totalorder %v4862, 0
        %vm5205 = vcmp.lt.s32.totalorder %v4873, 0
        %vm5206 = vcmp.lt.s32.totalorder %v4884, 0
        %vm5207 = vcmp.lt.s32.totalorder %v4895, 0
        %vm5208 = vcmp.lt.s32.totalorder %v4906, 0
        %vm5209 = vcmp.lt.s32.totalorder %v4917, 0
        %vm5210 = vcmp.lt.s32.totalorder %v4928, 0
        %vm5211 = vcmp.lt.s32.totalorder %v4939, 0
        %vm5212 = vcmp.lt.s32.totalorder %v4950, 0
        %vm5213 = vcmp.lt.s32.totalorder %v4961, 0
        %vm5214 = vcmp.lt.s32.totalorder %v4972, 0
        %vm5215 = vcmp.lt.s32.totalorder %v4983, 0
        %vm5216 = vcmp.lt.s32.totalorder %v4994, 0
        %vm5217 = vcmp.lt.s32.totalorder %v5005, 0
        %vm5218 = vcmp.lt.s32.totalorder %v5016, 0
        %vm5219 = vcmp.lt.s32.totalorder %v5027, 0
        %vm5220 = vcmp.lt.s32.totalorder %v5038, 0
        %vm5221 = vcmp.lt.s32.totalorder %v5049, 0
        %vm5222 = vcmp.lt.s32.totalorder %v5060, 0
        %vm5223 = vcmp.lt.s32.totalorder %v5071, 0
        %vm5224 = vcmp.lt.s32.totalorder %v5082, 0
        %vm5225 = vcmp.lt.s32.totalorder %v5093, 0
        %vm5226 = vcmp.lt.s32.totalorder %v5104, 0
        %vm5227 = vcmp.lt.s32.totalorder %v5115, 0
        %vm5228 = vcmp.lt.s32.totalorder %v5126, 0
        %vm5229 = vcmp.lt.s32.totalorder %v5137, 0
        %vm5230 = vcmp.lt.s32.totalorder %v5148, 0
        %vm5231 = vcmp.lt.s32.totalorder %v5159, 0
        %vm5232 = vmand %vm5196, %vm5160
        %vm5233 = vmand %vm5197, %vm5161
        %vm5234 = vmand %vm5198, %vm5162
        %vm5235 = vmand %vm5199, %vm5163
        %vm5236 = vmand %vm5200, %vm5164
        %vm5237 = vmand %vm5201, %vm5165
        %vm5238 = vmand %vm5202, %vm5166
        %vm5239 = vmand %vm5203, %vm5167
        %vm5240 = vmand %vm5204, %vm5168
        %vm5241 = vmand %vm5205, %vm5169
        %vm5242 = vmand %vm5206, %vm5170
        %vm5243 = vmand %vm5207, %vm5171
        %vm5244 = vmand %vm5208, %vm5172
        %vm5245 = vmand %vm5209, %vm5173
        %vm5246 = vmand %vm5210, %vm5174
        %vm5247 = vmand %vm5211, %vm5175
        %vm5248 = vmand %vm5212, %vm5176
        %vm5249 = vmand %vm5213, %vm5177
        %vm5250 = vmand %vm5214, %vm5178
        %vm5251 = vmand %vm5215, %vm5179
        %vm5252 = vmand %vm5216, %vm5180
        %vm5253 = vmand %vm5217, %vm5181
        %vm5254 = vmand %vm5218, %vm5182
        %vm5255 = vmand %vm5219, %vm5183
        %vm5256 = vmand %vm5220, %vm5184
        %vm5257 = vmand %vm5221, %vm5185
        %vm5258 = vmand %vm5222, %vm5186
        %vm5259 = vmand %vm5223, %vm5187
        %vm5260 = vmand %vm5224, %vm5188
        %vm5261 = vmand %vm5225, %vm5189
        %vm5262 = vmand %vm5226, %vm5190
        %vm5263 = vmand %vm5227, %vm5191
        %vm5264 = vmand %vm5228, %vm5192
        %vm5265 = vmand %vm5229, %vm5193
        %vm5266 = vmand %vm5230, %vm5194
        %vm5267 = vmand %vm5231, %vm5195
        %v5268 = vadd.s32 %v4774, 18
        %v5269 = vadd.s32 %v4785, 18
        %v5270 = vadd.s32 %v4796, 18
        %v5271 = vadd.s32 %v4807, 18
        %v5272 = vadd.s32 %v4818, 18
        %v5273 = vadd.s32 %v4829, 18
        %v5274 = vadd.s32 %v4840, 18
        %v5275 = vadd.s32 %v4851, 18
        %v5276 = vadd.s32 %v4862, 18
        %v5277 = vadd.s32 %v4873, 18
        %v5278 = vadd.s32 %v4884, 18
        %v5279 = vadd.s32 %v4895, 18
        %v5280 = vadd.s32 %v4906, 18
        %v5281 = vadd.s32 %v4917, 18
        %v5282 = vadd.s32 %v4928, 18
        %v5283 = vadd.s32 %v4939, 18
        %v5284 = vadd.s32 %v4950, 18
        %v5285 = vadd.s32 %v4961, 18
        %v5286 = vadd.s32 %v4972, 18
        %v5287 = vadd.s32 %v4983, 18
        %v5288 = vadd.s32 %v4994, 18
        %v5289 = vadd.s32 %v5005, 18
        %v5290 = vadd.s32 %v5016, 18
        %v5291 = vadd.s32 %v5027, 18
        %v5292 = vadd.s32 %v5038, 18
        %v5293 = vadd.s32 %v5049, 18
        %v5294 = vadd.s32 %v5060, 18
        %v5295 = vadd.s32 %v5071, 18
        %v5296 = vadd.s32 %v5082, 18
        %v5297 = vadd.s32 %v5093, 18
        %v5298 = vadd.s32 %v5104, 18
        %v5299 = vadd.s32 %v5115, 18
        %v5300 = vadd.s32 %v5126, 18
        %v5301 = vadd.s32 %v5137, 18
        %v5302 = vadd.s32 %v5148, 18
        %v5303 = vadd.s32 %v5159, 18
        %v5304 = vsel %vm5232, %v5268, %v4774
        %v5305 = vsel %vm5233, %v5269, %v4785
        %v5306 = vsel %vm5234, %v5270, %v4796
        %v5307 = vsel %vm5235, %v5271, %v4807
        %v5308 = vsel %vm5236, %v5272, %v4818
        %v5309 = vsel %vm5237, %v5273, %v4829
        %v5310 = vsel %vm5238, %v5274, %v4840
        %v5311 = vsel %vm5239, %v5275, %v4851
        %v5312 = vsel %vm5240, %v5276, %v4862
        %v5313 = vsel %vm5241, %v5277, %v4873
        %v5314 = vsel %vm5242, %v5278, %v4884
        %v5315 = vsel %vm5243, %v5279, %v4895
        %v5316 = vsel %vm5244, %v5280, %v4906
        %v5317 = vsel %vm5245, %v5281, %v4917
        %v5318 = vsel %vm5246, %v5282, %v4928
        %v5319 = vsel %vm5247, %v5283, %v4939
        %v5320 = vsel %vm5248, %v5284, %v4950
        %v5321 = vsel %vm5249, %v5285, %v4961
        %v5322 = vsel %vm5250, %v5286, %v4972
        %v5323 = vsel %vm5251, %v5287, %v4983
        %v5324 = vsel %vm5252, %v5288, %v4994
        %v5325 = vsel %vm5253, %v5289, %v5005
        %v5326 = vsel %vm5254, %v5290, %v5016
        %v5327 = vsel %vm5255, %v5291, %v5027
        %v5328 = vsel %vm5256, %v5292, %v5038
        %v5329 = vsel %vm5257, %v5293, %v5049
        %v5330 = vsel %vm5258, %v5294, %v5060
        %v5331 = vsel %vm5259, %v5295, %v5071
        %v5332 = vsel %vm5260, %v5296, %v5082
        %v5333 = vsel %vm5261, %v5297, %v5093
        %v5334 = vsel %vm5262, %v5298, %v5104
        %v5335 = vsel %vm5263, %v5299, %v5115
        %v5336 = vsel %vm5264, %v5300, %v5126
        %v5337 = vsel %vm5265, %v5301, %v5137
        %v5338 = vsel %vm5266, %v5302, %v5148
        %v5339 = vsel %vm5267, %v5303, %v5159
        %vm5340 = vcmp.lt.s32.totalorder %v5304, 16
        %vm5341 = vcmp.lt.s32.totalorder %v5305, 16
        %vm5342 = vcmp.lt.s32.totalorder %v5306, 16
        %vm5343 = vcmp.lt.s32.totalorder %v5307, 16
        %vm5344 = vcmp.lt.s32.totalorder %v5308, 16
        %vm5345 = vcmp.lt.s32.totalorder %v5309, 16
        %vm5346 = vcmp.lt.s32.totalorder %v5310, 16
        %vm5347 = vcmp.lt.s32.totalorder %v5311, 16
        %vm5348 = vcmp.lt.s32.totalorder %v5312, 16
        %vm5349 = vcmp.lt.s32.totalorder %v5313, 16
        %vm5350 = vcmp.lt.s32.totalorder %v5314, 16
        %vm5351 = vcmp.lt.s32.totalorder %v5315, 16
        %vm5352 = vcmp.lt.s32.totalorder %v5316, 16
        %vm5353 = vcmp.lt.s32.totalorder %v5317, 16
        %vm5354 = vcmp.lt.s32.totalorder %v5318, 16
        %vm5355 = vcmp.lt.s32.totalorder %v5319, 16
        %vm5356 = vcmp.lt.s32.totalorder %v5320, 16
        %vm5357 = vcmp.lt.s32.totalorder %v5321, 16
        %vm5358 = vcmp.lt.s32.totalorder %v5322, 16
        %vm5359 = vcmp.lt.s32.totalorder %v5323, 16
        %vm5360 = vcmp.lt.s32.totalorder %v5324, 16
        %vm5361 = vcmp.lt.s32.totalorder %v5325, 16
        %vm5362 = vcmp.lt.s32.totalorder %v5326, 16
        %vm5363 = vcmp.lt.s32.totalorder %v5327, 16
        %vm5364 = vcmp.lt.s32.totalorder %v5328, 16
        %vm5365 = vcmp.lt.s32.totalorder %v5329, 16
        %vm5366 = vcmp.lt.s32.totalorder %v5330, 16
        %vm5367 = vcmp.lt.s32.totalorder %v5331, 16
        %vm5368 = vcmp.lt.s32.totalorder %v5332, 16
        %vm5369 = vcmp.lt.s32.totalorder %v5333, 16
        %vm5370 = vcmp.lt.s32.totalorder %v5334, 16
        %vm5371 = vcmp.lt.s32.totalorder %v5335, 16
        %vm5372 = vcmp.lt.s32.totalorder %v5336, 16
        %vm5373 = vcmp.lt.s32.totalorder %v5337, 16
        %vm5374 = vcmp.lt.s32.totalorder %v5338, 16
        %vm5375 = vcmp.lt.s32.totalorder %v5339, 16
        %v5376 = vsel %vm5340, 1, 0
        %v5377 = vsel %vm5341, 1, 0
        %v5378 = vsel %vm5342, 1, 0
        %v5379 = vsel %vm5343, 1, 0
        %v5380 = vsel %vm5344, 1, 0
        %v5381 = vsel %vm5345, 1, 0
        %v5382 = vsel %vm5346, 1, 0
        %v5383 = vsel %vm5347, 1, 0
        %v5384 = vsel %vm5348, 1, 0
        %v5385 = vsel %vm5349, 1, 0
        %v5386 = vsel %vm5350, 1, 0
        %v5387 = vsel %vm5351, 1, 0
        %v5388 = vsel %vm5352, 1, 0
        %v5389 = vsel %vm5353, 1, 0
        %v5390 = vsel %vm5354, 1, 0
        %v5391 = vsel %vm5355, 1, 0
        %v5392 = vsel %vm5356, 1, 0
        %v5393 = vsel %vm5357, 1, 0
        %v5394 = vsel %vm5358, 1, 0
        %v5395 = vsel %vm5359, 1, 0
        %v5396 = vsel %vm5360, 1, 0
        %v5397 = vsel %vm5361, 1, 0
        %v5398 = vsel %vm5362, 1, 0
        %v5399 = vsel %vm5363, 1, 0
        %v5400 = vsel %vm5364, 1, 0
        %v5401 = vsel %vm5365, 1, 0
        %v5402 = vsel %vm5366, 1, 0
        %v5403 = vsel %vm5367, 1, 0
        %v5404 = vsel %vm5368, 1, 0
        %v5405 = vsel %vm5369, 1, 0
        %v5406 = vsel %vm5370, 1, 0
        %v5407 = vsel %vm5371, 1, 0
        %v5408 = vsel %vm5372, 1, 0
        %v5409 = vsel %vm5373, 1, 0
        %v5410 = vsel %vm5374, 1, 0
        %v5411 = vsel %vm5375, 1, 0
        %v5412 = vcvt.s32.f32 %v5376
        %v5413 = vcvt.s32.f32 %v5377
        %v5414 = vcvt.s32.f32 %v5378
        %v5415 = vcvt.s32.f32 %v5379
        %v5416 = vcvt.s32.f32 %v5380
        %v5417 = vcvt.s32.f32 %v5381
        %v5418 = vcvt.s32.f32 %v5382
        %v5419 = vcvt.s32.f32 %v5383
        %v5420 = vcvt.s32.f32 %v5384
        %v5421 = vcvt.s32.f32 %v5385
        %v5422 = vcvt.s32.f32 %v5386
        %v5423 = vcvt.s32.f32 %v5387
        %v5424 = vcvt.s32.f32 %v5388
        %v5425 = vcvt.s32.f32 %v5389
        %v5426 = vcvt.s32.f32 %v5390
        %v5427 = vcvt.s32.f32 %v5391
        %v5428 = vcvt.s32.f32 %v5392
        %v5429 = vcvt.s32.f32 %v5393
        %v5430 = vcvt.s32.f32 %v5394
        %v5431 = vcvt.s32.f32 %v5395
        %v5432 = vcvt.s32.f32 %v5396
        %v5433 = vcvt.s32.f32 %v5397
        %v5434 = vcvt.s32.f32 %v5398
        %v5435 = vcvt.s32.f32 %v5399
        %v5436 = vcvt.s32.f32 %v5400
        %v5437 = vcvt.s32.f32 %v5401
        %v5438 = vcvt.s32.f32 %v5402
        %v5439 = vcvt.s32.f32 %v5403
        %v5440 = vcvt.s32.f32 %v5404
        %v5441 = vcvt.s32.f32 %v5405
        %v5442 = vcvt.s32.f32 %v5406
        %v5443 = vcvt.s32.f32 %v5407
        %v5444 = vcvt.s32.f32 %v5408
        %v5445 = vcvt.s32.f32 %v5409
        %v5446 = vcvt.s32.f32 %v5410
        %v5447 = vcvt.s32.f32 %v5411
        %v5448 = vmul.f32 %v4691, %v5412
        %v5449 = vmul.f32 %v4692, %v5413
        %v5450 = vmul.f32 %v4693, %v5414
        %v5451 = vmul.f32 %v4694, %v5415
        %v5452 = vmul.f32 %v4695, %v5416
        %v5453 = vmul.f32 %v4696, %v5417
        %v5454 = vmul.f32 %v4697, %v5418
        %v5455 = vmul.f32 %v4698, %v5419
        %v5456 = vmul.f32 %v4699, %v5420
        %v5457 = vmul.f32 %v4700, %v5421
        %v5458 = vmul.f32 %v4701, %v5422
        %v5459 = vmul.f32 %v4702, %v5423
        %v5460 = vmul.f32 %v4703, %v5424
        %v5461 = vmul.f32 %v4704, %v5425
        %v5462 = vmul.f32 %v4705, %v5426
        %v5463 = vmul.f32 %v4706, %v5427
        %v5464 = vmul.f32 %v4707, %v5428
        %v5465 = vmul.f32 %v4708, %v5429
        %v5466 = vmul.f32 %v4709, %v5430
        %v5467 = vmul.f32 %v4710, %v5431
        %v5468 = vmul.f32 %v4711, %v5432
        %v5469 = vmul.f32 %v4712, %v5433
        %v5470 = vmul.f32 %v4713, %v5434
        %v5471 = vmul.f32 %v4714, %v5435
        %v5472 = vmul.f32 %v4715, %v5436
        %v5473 = vmul.f32 %v4716, %v5437
        %v5474 = vmul.f32 %v4717, %v5438
        %v5475 = vmul.f32 %v4718, %v5439
        %v5476 = vmul.f32 %v4719, %v5440
        %v5477 = vmul.f32 %v4720, %v5441
        %v5478 = vmul.f32 %v4721, %v5442
        %v5479 = vmul.f32 %v4722, %v5443
        %v5480 = vmul.f32 %v4723, %v5444
        %v5481 = vmul.f32 %v4724, %v5445
        %v5482 = vmul.f32 %v4725, %v5446
        %v5483 = vmul.f32 %v4726, %v5447
        %v5484 = vadd.f32 %v5448, %v5449
        %v5485 = vadd.f32 %v5484, %v5450
        %v5486 = vadd.f32 %v5485, %v5451
        %v5487 = vadd.f32 %v5486, %v5452
        %v5488 = vadd.f32 %v5487, %v5453
        %v5489 = vadd.f32 %v5488, %v5454
        %v5490 = vadd.f32 %v5489, %v5455
        %v5491 = vadd.f32 %v5490, %v5456
        %v5492 = vadd.f32 %v5491, %v5457
        %v5493 = vadd.f32 %v5492, %v5458
        %v5494 = vadd.f32 %v5493, %v5459
        %v5495 = vadd.f32 %v5494, %v5460
        %v5496 = vadd.f32 %v5495, %v5461
        %v5497 = vadd.f32 %v5496, %v5462
        %v5498 = vadd.f32 %v5497, %v5463
        %v5499 = vadd.f32 %v5498, %v5464
        %v5500 = vadd.f32 %v5499, %v5465
        %v5501 = vadd.f32 %v5500, %v5466
        %v5502 = vadd.f32 %v5501, %v5467
        %v5503 = vadd.f32 %v5502, %v5468
        %v5504 = vadd.f32 %v5503, %v5469
        %v5505 = vadd.f32 %v5504, %v5470
        %v5506 = vadd.f32 %v5505, %v5471
        %v5507 = vadd.f32 %v5506, %v5472
        %v5508 = vadd.f32 %v5507, %v5473
        %v5509 = vadd.f32 %v5508, %v5474
        %v5510 = vadd.f32 %v5509, %v5475
        %v5511 = vadd.f32 %v5510, %v5476
        %v5512 = vadd.f32 %v5511, %v5477
        %v5513 = vadd.f32 %v5512, %v5478
        %v5514 = vadd.f32 %v5513, %v5479
        %v5515 = vadd.f32 %v5514, %v5480
        %v5516 = vadd.f32 %v5515, %v5481
        %v5517 = vadd.f32 %v5516, %v5482
        %v5518 = vadd.f32 %v5517, %v5483
        %v5519 = vrot.slane %v5518, 4
        %v5520 = vadd.f32 %v5518, %v5519
        %v5521 = vrot.slane %v5520, 2
        %v5522 = vadd.f32 %v5520, %v5521
        %v5523 = vrot.slane %v5522, 1
        %v5524 = vadd.f32 %v5522, %v5523
        %v5525 = vmul.f32 %v5448, %v4691
        %v5526 = vmul.f32 %v5449, %v4692
        %v5527 = vmul.f32 %v5450, %v4693
        %v5528 = vmul.f32 %v5451, %v4694
        %v5529 = vmul.f32 %v5452, %v4695
        %v5530 = vmul.f32 %v5453, %v4696
        %v5531 = vmul.f32 %v5454, %v4697
        %v5532 = vmul.f32 %v5455, %v4698
        %v5533 = vmul.f32 %v5456, %v4699
        %v5534 = vmul.f32 %v5457, %v4700
        %v5535 = vmul.f32 %v5458, %v4701
        %v5536 = vmul.f32 %v5459, %v4702
        %v5537 = vmul.f32 %v5460, %v4703
        %v5538 = vmul.f32 %v5461, %v4704
        %v5539 = vmul.f32 %v5462, %v4705
        %v5540 = vmul.f32 %v5463, %v4706
        %v5541 = vmul.f32 %v5464, %v4707
        %v5542 = vmul.f32 %v5465, %v4708
        %v5543 = vmul.f32 %v5466, %v4709
        %v5544 = vmul.f32 %v5467, %v4710
        %v5545 = vmul.f32 %v5468, %v4711
        %v5546 = vmul.f32 %v5469, %v4712
        %v5547 = vmul.f32 %v5470, %v4713
        %v5548 = vmul.f32 %v5471, %v4714
        %v5549 = vmul.f32 %v5472, %v4715
        %v5550 = vmul.f32 %v5473, %v4716
        %v5551 = vmul.f32 %v5474, %v4717
        %v5552 = vmul.f32 %v5475, %v4718
        %v5553 = vmul.f32 %v5476, %v4719
        %v5554 = vmul.f32 %v5477, %v4720
        %v5555 = vmul.f32 %v5478, %v4721
        %v5556 = vmul.f32 %v5479, %v4722
        %v5557 = vmul.f32 %v5480, %v4723
        %v5558 = vmul.f32 %v5481, %v4724
        %v5559 = vmul.f32 %v5482, %v4725
        %v5560 = vmul.f32 %v5483, %v4726
        %v5561 = vadd.f32 %v5525, %v5526
        %v5562 = vadd.f32 %v5561, %v5527
        %v5563 = vadd.f32 %v5562, %v5528
        %v5564 = vadd.f32 %v5563, %v5529
        %v5565 = vadd.f32 %v5564, %v5530
        %v5566 = vadd.f32 %v5565, %v5531
        %v5567 = vadd.f32 %v5566, %v5532
        %v5568 = vadd.f32 %v5567, %v5533
        %v5569 = vadd.f32 %v5568, %v5534
        %v5570 = vadd.f32 %v5569, %v5535
        %v5571 = vadd.f32 %v5570, %v5536
        %v5572 = vadd.f32 %v5571, %v5537
        %v5573 = vadd.f32 %v5572, %v5538
        %v5574 = vadd.f32 %v5573, %v5539
        %v5575 = vadd.f32 %v5574, %v5540
        %v5576 = vadd.f32 %v5575, %v5541
        %v5577 = vadd.f32 %v5576, %v5542
        %v5578 = vadd.f32 %v5577, %v5543
        %v5579 = vadd.f32 %v5578, %v5544
        %v5580 = vadd.f32 %v5579, %v5545
        %v5581 = vadd.f32 %v5580, %v5546
        %v5582 = vadd.f32 %v5581, %v5547
        %v5583 = vadd.f32 %v5582, %v5548
        %v5584 = vadd.f32 %v5583, %v5549
        %v5585 = vadd.f32 %v5584, %v5550
        %v5586 = vadd.f32 %v5585, %v5551
        %v5587 = vadd.f32 %v5586, %v5552
        %v5588 = vadd.f32 %v5587, %v5553
        %v5589 = vadd.f32 %v5588, %v5554
        %v5590 = vadd.f32 %v5589, %v5555
        %v5591 = vadd.f32 %v5590, %v5556
        %v5592 = vadd.f32 %v5591, %v5557
        %v5593 = vadd.f32 %v5592, %v5558
        %v5594 = vadd.f32 %v5593, %v5559
        %v5595 = vadd.f32 %v5594, %v5560
        %v5596 = vrot.slane %v5595, 4
        %v5597 = vadd.f32 %v5595, %v5596
        %v5598 = vrot.slane %v5597, 2
        %v5599 = vadd.f32 %v5597, %v5598
        %v5600 = vrot.slane %v5599, 1
        %v5601 = vadd.f32 %v5599, %v5600
        %vm5602 = vcmask 1040384
        %v5603 = vsel %vm5602, %v5524, %v5601
        %p5604 = scmp.eq.s32.totalorder %s26, 0
        // Predicated region
        $region29: #{tpu_custom_call.1} parent=27 // pred_check
          %p5605 = pneg %p5604
        $region30: #{tpu_custom_call.1} parent=27 // pred_check_branch
          %5607 = sbr.rel (%p5605) target = $region32
        $region31: #{tpu_custom_call.1} parent=27 // pred_region
          %5608 = vst [vmem:[%s198] sm:$0x3] %v5603
        $region32: #{tpu_custom_call.1} parent=27 // pred_fallthru
          _
        %p5609 = scmp.gt.s32.totalorder %s26, 0
        // Predicated region
        $region33: #{tpu_custom_call.1} parent=27 // pred_check
          %p5610 = pneg %p5609
        $region34: #{tpu_custom_call.1} parent=27 // pred_check_branch
          %5612 = sbr.rel (%p5610) target = $region36
        $region35: #{tpu_custom_call.1} parent=27 // pred_region
          %v5613 = vld [vmem:[%s198] sm:$0x3]
          %v5614 = vadd.f32 %v5613, %v5603
          %5615 = vst [vmem:[%s198] sm:$0x3] %v5614
        $region36: #{tpu_custom_call.1} parent=27 // pred_fallthru
          _
        %s5616 = sand.u32 %s92, 1
        %s5617 = scalar_lea.sflag [#allocation3], %s5616
        %s5618 = sand.u32 %s92, 1
        %s5619 = smul.addr %s5618, 288
        %s5620 = scalar_lea.vmem [#allocation2], %s5619
        %s5621 = sand.u32 %s118, 1
        %s5622 = scalar_lea.sflag [#allocation5], %s5621
        %s5623 = sand.u32 %s118, 1
        %s5624 = smul.addr %s5623, 2
        %s5625 = scalar_lea.vmem [#allocation4], %s5624
        // Predicated region
        $region37: #{tpu_custom_call.1} parent=27 // pred_check
          %p5626 = pneg %p102
        $region38: #{tpu_custom_call.1} parent=27 // pred_check_branch
          %5628 = sbr.rel (%p5626) target = $region40
        $region39: #{tpu_custom_call.1} parent=27 // pred_region
          %s5629 = smul.u32 36, %s26
          %s5631 = ssub.s32 4608, 4608
          %5632 = vsyncadd %s5617, %s5631
          %s5633 = smul.addr %s25, 36
          %s5634 = sadd.s32 %s5629, %s5633
          %s5635 = smul.addr %s5634, 128
          %s5636 = scalar_lea.hbm %s2, %s5635
          %s5637 = sshll.u32 %s5620, 4
          %s5638 = int_to_ptr.vmem [resolvable:$true] %s5637
          %5643 = dma.vmem_to_hbm [thread:$0]  %s5638, 4608, %s5636, %s5617, 128, 128, 8
        $region40: #{tpu_custom_call.1} parent=27 // pred_fallthru
          _
        // Predicated region
        $region41: #{tpu_custom_call.1} parent=27 // pred_check
          %p5644 = pneg %p128
        $region42: #{tpu_custom_call.1} parent=27 // pred_check_branch
          %5646 = sbr.rel (%p5644) target = $region44
        $region43: #{tpu_custom_call.1} parent=27 // pred_region
          %s5648 = ssub.s32 32, 32
          %5649 = vsyncadd %s5622, %s5648
          %s5650 = smul.addr %s25, 32
          %s5651 = scalar_lea.hbm %s3, %s5650
          %s5653 = sshll.u32 %s5625, 4
          %s5654 = int_to_ptr.vmem [resolvable:$true] %s5653
          %5656 = dma.vmem_to_hbm [thread:$0]  %s5654, 32, %s5651, %s5622
        $region44: #{tpu_custom_call.1} parent=27 // pred_fallthru
          _
      $region28: #{tpu_custom_call.1} parent=5 // pred_fallthru
        _
      %p5657 = scmp.le.s32.totalorder 2, %s16
      // Predicated region
      $region45: #{tpu_custom_call.1} parent=5 // pred_check
        %p5658 = pneg %p5657
      $region46: #{tpu_custom_call.1} parent=5 // pred_check_branch
        %5660 = sbr.rel (%p5658) target = $region48
      $region47: #{tpu_custom_call.1} parent=5 // pred_region
        %s5661 = ssub.s32 %s16, 2
        // Predicated region
        $region49: #{tpu_custom_call.1} parent=47 // pred_check
          %p5662 = pneg %p108
        $region50: #{tpu_custom_call.1} parent=47 // pred_check_branch
          %5664 = sbr.rel (%p5662) target = $region52
        $region51: #{tpu_custom_call.1} parent=47 // pred_region
          %s5665 = sand.u32 %s93, 1
          %s5666 = scalar_lea.sflag [#allocation3], %s5665
          %s5667 = sand.u32 %s93, 1
          %s5668 = smul.addr %s5667, 288
          %s5669 = scalar_lea.vmem [#allocation2], %s5668
          %5670 = dma.done %s5666, 4608
        $region52: #{tpu_custom_call.1} parent=47 // pred_fallthru
          _
        // Predicated region
        $region53: #{tpu_custom_call.1} parent=47 // pred_check
          %p5671 = pneg %p134
        $region54: #{tpu_custom_call.1} parent=47 // pred_check_branch
          %5673 = sbr.rel (%p5671) target = $region56
        $region55: #{tpu_custom_call.1} parent=47 // pred_region
          %s5674 = sand.u32 %s119, 1
          %s5675 = scalar_lea.sflag [#allocation5], %s5674
          %s5676 = sand.u32 %s119, 1
          %s5677 = smul.addr %s5676, 2
          %s5678 = scalar_lea.vmem [#allocation4], %s5677
          %5679 = dma.done %s5675, 32
        $region56: #{tpu_custom_call.1} parent=47 // pred_fallthru
          _
      $region48: #{tpu_custom_call.1} parent=5 // pred_fallthru
        _
    $region6: #{tpu_custom_call.1} parent=1 // loop_footer
      %s20 = sadd.s32 1, %s16
    $region7: #{tpu_custom_call.1} parent=1 // loop_footer_branch
      %15 = sbr.rel target = $region3
    $region8: #{tpu_custom_call.1} parent=1 // loop_exit
      _
    %5680 = vsyncpa [#allocation3], 1
    %s5681 = scalar_lea.sflag [#allocation3], 1
    %5682 = vsyncpa %s5681, 1
    %5683 = vsyncpa [#allocation5], 1
    %s5684 = scalar_lea.sflag [#allocation5], 1
    %5685 = vsyncpa %s5684, 1

</llo_original>
